<compile_context>
chip_gen: v7x
topology: tpu7x:2x2x1
jax: 0.10.0
libtpu: 0.0.40
codegen_flags: <defaults>
</compile_context>

<pallas_src>
import functools

import jax
import jax.numpy as jnp
from jax.experimental import pallas as pl
from jax.experimental.pallas import tpu as pltpu

HALO = 2  # receptive-field halo (rows per side) of two chained 3x3 convs


def _round_up(n, m):
    return ((n + m - 1) // m) * m


def _conv33_kernel(x_ref, w1_ref, b1_ref, w2_ref, b2_ref, out_ref, *, h, w, th):
    """One row tile of conv1(1->Cmid,3x3,p1) -> conv2(Cmid->Cout,3x3,p1).

    x_ref  : (THP, Wp) f32 VMEM, cyclic slab layout for tile i:
               rows [0, th+2)     = input rows [i*th, i*th+th+2)   (main + bottom halo)
               rows [thp-2, thp)  = input rows [i*th-2, i*th)      (top halo)
               rows [th+2, thp-2) = filler (never read)
             Out-of-range / padded entries are zero, so cyclic rolls reproduce
             the conv zero padding with no per-shift masks.
    w*/b*  : flattened f32 SMEM scalars (PyTorch [o, c, ky, kx] order).
    out_ref: (Cout, TH, Wp) f32 VMEM -- full-width, unmasked lane-dense stores.
    """
    cout = out_ref.shape[0]
    thp, wp = x_ref.shape
    cmid = b1_ref.shape[0]

    def vshift(p, dy):  # p[r + dy] via cyclic sublane roll (XLU slot, ~free)
        return pltpu.roll(p, (-dy) % thp, axis=0) if dy else p

    def hshift(p, dx):  # p[:, j + dx] via cyclic lane roll
        return pltpu.roll(p, (-dx) % wp, axis=1) if dx else p

    # Validity mask for the mid activations (== conv2's zero padding), built
    # ONCE per tile (not per shift): global row of each slab row, cols < w.
    r_iota = jax.lax.broadcasted_iota(jnp.int32, (thp, wp), 0)
    c_iota = jax.lax.broadcasted_iota(jnp.int32, (thp, wp), 1)
    g_row = pl.program_id(0) * th + jnp.where(
        r_iota >= thp - HALO, r_iota - thp, r_iota)
    valid = (g_row >= 0) & (g_row < h) & (c_iota < w)

    x = x_ref[...]

    # ---- conv1: 1 -> Cmid.  9 shifted input planes shared by every channel.
    xs = []
    for dy in (-1, 0, 1):
        pv = vshift(x, dy)
        for dx in (-1, 0, 1):
            xs.append(hshift(pv, dx))
    mids = []
    for c in range(cmid):
        acc = w1_ref[c * 9] * xs[0]
        for k in range(1, 9):
            acc = acc + w1_ref[c * 9 + k] * xs[k]
        # Bias once; zero the padding ring so conv2's rolled halo reads are
        # exactly the conv zero padding.
        mids.append(jnp.where(valid, acc + b1_ref[c], 0.0))

    # ---- conv2: Cmid -> Cout.  Hoist all Cmid*9 shifted mid planes once,
    # then one fused sum per output channel (accumulator stays in vregs,
    # single unmasked store per output plane).
    ms = []
    for c in range(cmid):
        for dy in (-1, 0, 1):
            pv = vshift(mids[c], dy)
            for dx in (-1, 0, 1):
                ms.append(hshift(pv, dx))
    n_terms = cmid * 9
    for o in range(cout):
        acc = w2_ref[o * n_terms] * ms[0]
        for k in range(1, n_terms):
            acc = acc + w2_ref[o * n_terms + k] * ms[k]
        out_ref[o] = (acc + b2_ref[o])[:th]  # sublane-aligned, lane-dense


def conv_3_3_forward(x, w1, b1, w2, b2, *, row_tile=256):
    """x: (H, W); weights in PyTorch layout (Cmid,1,3,3)/(Cout,Cmid,3,3).
    Returns (Cout, H, W) float32, matching conv_3_3.forward."""
    h, w = x.shape
    cmid = w1.shape[0]
    cout = w2.shape[0]

    wp = _round_up(w + 1, 128)  # lane-dense + guaranteed >=1 zero halo column

    # Per-generation VMEM budget (~75% of physical: ~48 MiB v7x, ~96 MiB v5e/v6e).
    try:
        phys = getattr(pltpu.get_tpu_info(), "vmem_capacity_bytes", 64 << 20)
    except Exception:
        phys = 64 << 20
    budget = int(phys * 3 // 4)

    # Resident footprint of one tile, INCLUDING the hoisted shifted planes
    # (roll temporaries) and the pipeline's double buffers.
    def footprint(th_):
        thp_ = th_ + 8
        plane = thp_ * wp * 4
        inter = (1 + 9 + cmid + 9 * cmid + cout) * plane
        pipe = 2 * plane + 2 * cout * th_ * wp * 4
        return inter + pipe

    th = min(_round_up(h, 8), _round_up(max(row_tile, 8), 8))
    while th > 8 and footprint(th) > budget:
        th = max(8, _round_up(th // 2, 8))
    thp = th + 8
    nt = -(-h // th)

    # Build per-tile input slabs (cyclic layout; only the 2-row halo duplicated).
    xf = x.astype(jnp.float32)
    xp = jnp.pad(xf, ((HALO, nt * th + HALO - h), (0, wp - w)))  # zero halo/pad
    r = jnp.arange(thp)
    src_rel = jnp.where(r < th + HALO, r + HALO,
                        jnp.where(r >= thp - HALO, r - (thp - HALO), 0))
    idx = jnp.arange(nt)[:, None] * th + src_rel[None, :]         # (nt, thp)
    x_tiles = xp[idx]                                             # (nt, thp, wp)

    w1f = w1.astype(jnp.float32).reshape(-1)   # (Cmid*9,)
    b1f = b1.astype(jnp.float32).reshape(-1)   # (Cmid,)
    w2f = w2.astype(jnp.float32).reshape(-1)   # (Cout*Cmid*9,)
    b2f = b2.astype(jnp.float32).reshape(-1)   # (Cout,)

    smem = pl.BlockSpec(memory_space=pltpu.MemorySpace.SMEM)
    kernel = functools.partial(_conv33_kernel, h=h, w=w, th=th)

    out_padded = pl.pallas_call(
        kernel,
        grid=(nt,),
        out_shape=jax.ShapeDtypeStruct((cout, nt * th, wp), jnp.float32),
        in_specs=[
            pl.BlockSpec((None, thp, wp), lambda i: (i, 0, 0)),
            smem, smem, smem, smem,
        ],
        out_specs=pl.BlockSpec((cout, th, wp), lambda i: (0, i, 0)),
        compiler_params=pltpu.CompilerParams(
            dimension_semantics=("parallel",),   # v7x: 2 TCs split row tiles
            vmem_limit_bytes=budget,
        ),
    )(x_tiles, w1f, b1f, w2f, b2f)

    return out_padded[:, :h, :w]   # crop in the wrapper (unmasked stores in-kernel)


def _ref_forward(x, w1, b1, w2, b2):
    """Pure-JAX reference (lax conv, NCHW)."""
    xi = x.astype(jnp.float32)[None, None]
    hm = jax.lax.conv_general_dilated(
        xi, w1.astype(jnp.float32), (1, 1), "SAME",
        dimension_numbers=("NCHW", "OIHW", "NCHW")) + b1[None, :, None, None]
    y = jax.lax.conv_general_dilated(
        hm, w2.astype(jnp.float32), (1, 1), "SAME",
        dimension_numbers=("NCHW", "OIHW", "NCHW")) + b2[None, :, None, None]
    return y[0]


def _make_params(key, out_channels):
    mid = out_channels // 2
    kw1, kb1, kw2, kb2 = jax.random.split(key, 4)
    l1 = 1.0 / (1 * 9) ** 0.5
    l2 = 1.0 / (mid * 9) ** 0.5
    w1 = jax.random.uniform(kw1, (mid, 1, 3, 3), jnp.float32, -l1, l1)
    b1 = jax.random.uniform(kb1, (mid,), jnp.float32, -l1, l1)
    w2 = jax.random.uniform(kw2, (out_channels, mid, 3, 3), jnp.float32, -l2, l2)
    b2 = jax.random.uniform(kb2, (out_channels,), jnp.float32, -l2, l2)
    return w1, b1, w2, b2


if __name__ == "__main__":
    key = jax.random.PRNGKey(0)
    k1, k2, k3, kp1, kp2 = jax.random.split(key, 5)

    # Case 1: demo-sized plane (out_channels=8, 16x16), single row tile.
    w1, b1, w2, b2 = _make_params(kp1, 8)
    x = jax.random.normal(k1, (16, 16), jnp.float32)
    out = jax.block_until_ready(conv_3_3_forward(x, w1, b1, w2, b2))
    ref = jax.block_until_ready(_ref_forward(x, w1, b1, w2, b2))
    assert out.shape == (8, 16, 16)
    assert jnp.allclose(out, ref, atol=1e-4, rtol=1e-4), "case1 mismatch"

    # Case 2: multi-tile row grid (forced small row_tile) + ragged H/W.
    w1b, b1b, w2b, b2b = _make_params(kp2, 6)
    xb = jax.random.normal(k2, (40, 20), jnp.float32)
    outb = jax.block_until_ready(
        conv_3_3_forward(xb, w1b, b1b, w2b, b2b, row_tile=16))
    refb = jax.block_until_ready(_ref_forward(xb, w1b, b1b, w2b, b2b))
    assert outb.shape == (6, 40, 20)
    assert jnp.allclose(outb, refb, atol=1e-4, rtol=1e-4), "case2 mismatch"

    # Case 3: H not a multiple of 8, single tile taller than H.
    xc = jax.random.normal(k3, (19, 16), jnp.float32)
    outc = jax.block_until_ready(conv_3_3_forward(xc, w1b, b1b, w2b, b2b))
    refc = jax.block_until_ready(_ref_forward(xc, w1b, b1b, w2b, b2b))
    assert outc.shape == (6, 19, 16)
    assert jnp.allclose(outc, refc, atol=1e-4, rtol=1e-4), "case3 mismatch"

    print("KERNEL_OK")
</pallas_src>

<mosaic_0001>
module attributes {stable_mosaic.version = 11 : i64} {
  func.func @_conv33_kernel(%arg0: i32, %arg1: memref<1x24x128xf32, #tpu.memory_space<vmem>>, %arg2: memref<36xf32, #tpu.memory_space<smem>>, %arg3: memref<4xf32, #tpu.memory_space<smem>>, %arg4: memref<288xf32, #tpu.memory_space<smem>>, %arg5: memref<8xf32, #tpu.memory_space<smem>>, %arg6: memref<8x16x128xf32, #tpu.memory_space<vmem>>) attributes {dimension_semantics = [#tpu.dimension_semantics<parallel>], iteration_bounds = array<i64: 1>, scalar_prefetch = 0 : i64, scratch_operands = 0 : i64, tpu.core_type = #tpu.core_type<tc>, window_params = [{transform_indices = @transform_0, window_bounds = array<i64: 1, 24, 128>}, {transform_indices = @transform_1, window_bounds = array<i64: 36>}, {transform_indices = @transform_2, window_bounds = array<i64: 4>}, {transform_indices = @transform_3, window_bounds = array<i64: 288>}, {transform_indices = @transform_4, window_bounds = array<i64: 8>}, {transform_indices = @transform_5, window_bounds = array<i64: 8, 16, 128>}]} {
    %0 = tpu.iota {dimensions = array<i32: 0>} : vector<24x128xi32>
    %1 = tpu.iota {dimensions = array<i32: 1>} : vector<24x128xi32>
    %c16_i32 = arith.constant 16 : i32
    %2 = arith.muli %arg0, %c16_i32 : i32
    %c22_i32 = arith.constant 22 : i32
    %3 = vector.broadcast %c22_i32 : i32 to vector<24x128xi32>
    %4 = arith.cmpi sge, %0, %3 : vector<24x128xi32>
    %c24_i32 = arith.constant 24 : i32
    %5 = vector.broadcast %c24_i32 : i32 to vector<24x128xi32>
    %6 = arith.subi %0, %5 : vector<24x128xi32>
    %7 = arith.select %4, %6, %0 : vector<24x128xi1>, vector<24x128xi32>
    %8 = vector.broadcast %2 : i32 to vector<24x128xi32>
    %9 = arith.addi %8, %7 : vector<24x128xi32>
    %c0_i32 = arith.constant 0 : i32
    %10 = vector.broadcast %c0_i32 : i32 to vector<24x128xi32>
    %11 = arith.cmpi sge, %9, %10 : vector<24x128xi32>
    %c16_i32_0 = arith.constant 16 : i32
    %12 = vector.broadcast %c16_i32_0 : i32 to vector<24x128xi32>
    %13 = arith.cmpi slt, %9, %12 : vector<24x128xi32>
    %14 = arith.andi %11, %13 : vector<24x128xi1>
    %c16_i32_1 = arith.constant 16 : i32
    %15 = vector.broadcast %c16_i32_1 : i32 to vector<24x128xi32>
    %16 = arith.cmpi slt, %1, %15 : vector<24x128xi32>
    %17 = arith.andi %14, %16 : vector<24x128xi1>
    %c0 = arith.constant 0 : index
    %c0_2 = arith.constant 0 : index
    %c0_3 = arith.constant 0 : index
    %18 = vector.load %arg1[%c0, %c0_2, %c0_3] : memref<1x24x128xf32, #tpu.memory_space<vmem>>, vector<1x24x128xf32>
    %19 = vector.shape_cast %18 : vector<1x24x128xf32> to vector<24x128xf32>
    %c1_i32 = arith.constant 1 : i32
    %20 = tpu.dynamic_rotate %19 by %c1_i32 dim 0 : vector<24x128xf32>, i32 -> vector<24x128xf32>
    %c1_i32_4 = arith.constant 1 : i32
    %21 = tpu.dynamic_rotate %20 by %c1_i32_4 dim 1 : vector<24x128xf32>, i32 -> vector<24x128xf32>
    %c127_i32 = arith.constant 127 : i32
    %22 = tpu.dynamic_rotate %20 by %c127_i32 dim 1 : vector<24x128xf32>, i32 -> vector<24x128xf32>
    %c1_i32_5 = arith.constant 1 : i32
    %23 = tpu.dynamic_rotate %19 by %c1_i32_5 dim 1 : vector<24x128xf32>, i32 -> vector<24x128xf32>
    %c127_i32_6 = arith.constant 127 : i32
    %24 = tpu.dynamic_rotate %19 by %c127_i32_6 dim 1 : vector<24x128xf32>, i32 -> vector<24x128xf32>
    %c23_i32 = arith.constant 23 : i32
    %25 = tpu.dynamic_rotate %19 by %c23_i32 dim 0 : vector<24x128xf32>, i32 -> vector<24x128xf32>
    %c1_i32_7 = arith.constant 1 : i32
    %26 = tpu.dynamic_rotate %25 by %c1_i32_7 dim 1 : vector<24x128xf32>, i32 -> vector<24x128xf32>
    %c127_i32_8 = arith.constant 127 : i32
    %27 = tpu.dynamic_rotate %25 by %c127_i32_8 dim 1 : vector<24x128xf32>, i32 -> vector<24x128xf32>
    %c0_9 = arith.constant 0 : index
    %28 = memref.load %arg2[%c0_9] : memref<36xf32, #tpu.memory_space<smem>>
    %29 = vector.broadcast %28 : f32 to vector<24x128xf32>
    %30 = arith.mulf %29, %21 : vector<24x128xf32>
    %c1 = arith.constant 1 : index
    %31 = memref.load %arg2[%c1] : memref<36xf32, #tpu.memory_space<smem>>
    %32 = vector.broadcast %31 : f32 to vector<24x128xf32>
    %33 = arith.mulf %32, %20 : vector<24x128xf32>
    %34 = arith.addf %30, %33 : vector<24x128xf32>
    %c2 = arith.constant 2 : index
    %35 = memref.load %arg2[%c2] : memref<36xf32, #tpu.memory_space<smem>>
    %36 = vector.broadcast %35 : f32 to vector<24x128xf32>
    %37 = arith.mulf %36, %22 : vector<24x128xf32>
    %38 = arith.addf %34, %37 : vector<24x128xf32>
    %c3 = arith.constant 3 : index
    %39 = memref.load %arg2[%c3] : memref<36xf32, #tpu.memory_space<smem>>
    %40 = vector.broadcast %39 : f32 to vector<24x128xf32>
    %41 = arith.mulf %40, %23 : vector<24x128xf32>
    %42 = arith.addf %38, %41 : vector<24x128xf32>
    %c4 = arith.constant 4 : index
    %43 = memref.load %arg2[%c4] : memref<36xf32, #tpu.memory_space<smem>>
    %44 = vector.broadcast %43 : f32 to vector<24x128xf32>
    %45 = arith.mulf %44, %19 : vector<24x128xf32>
    %46 = arith.addf %42, %45 : vector<24x128xf32>
    %c5 = arith.constant 5 : index
    %47 = memref.load %arg2[%c5] : memref<36xf32, #tpu.memory_space<smem>>
    %48 = vector.broadcast %47 : f32 to vector<24x128xf32>
    %49 = arith.mulf %48, %24 : vector<24x128xf32>
    %50 = arith.addf %46, %49 : vector<24x128xf32>
    %c6 = arith.constant 6 : index
    %51 = memref.load %arg2[%c6] : memref<36xf32, #tpu.memory_space<smem>>
    %52 = vector.broadcast %51 : f32 to vector<24x128xf32>
    %53 = arith.mulf %52, %26 : vector<24x128xf32>
    %54 = arith.addf %50, %53 : vector<24x128xf32>
    %c7 = arith.constant 7 : index
    %55 = memref.load %arg2[%c7] : memref<36xf32, #tpu.memory_space<smem>>
    %56 = vector.broadcast %55 : f32 to vector<24x128xf32>
    %57 = arith.mulf %56, %25 : vector<24x128xf32>
    %58 = arith.addf %54, %57 : vector<24x128xf32>
    %c8 = arith.constant 8 : index
    %59 = memref.load %arg2[%c8] : memref<36xf32, #tpu.memory_space<smem>>
    %60 = vector.broadcast %59 : f32 to vector<24x128xf32>
    %61 = arith.mulf %60, %27 : vector<24x128xf32>
    %62 = arith.addf %58, %61 : vector<24x128xf32>
    %c0_10 = arith.constant 0 : index
    %63 = memref.load %arg3[%c0_10] : memref<4xf32, #tpu.memory_space<smem>>
    %64 = vector.broadcast %63 : f32 to vector<24x128xf32>
    %65 = arith.addf %62, %64 : vector<24x128xf32>
    %cst = arith.constant 0.000000e+00 : f32
    %66 = vector.broadcast %cst : f32 to vector<24x128xf32>
    %67 = arith.select %17, %65, %66 : vector<24x128xi1>, vector<24x128xf32>
    %c9 = arith.constant 9 : index
    %68 = memref.load %arg2[%c9] : memref<36xf32, #tpu.memory_space<smem>>
    %69 = vector.broadcast %68 : f32 to vector<24x128xf32>
    %70 = arith.mulf %69, %21 : vector<24x128xf32>
    %c10 = arith.constant 10 : index
    %71 = memref.load %arg2[%c10] : memref<36xf32, #tpu.memory_space<smem>>
    %72 = vector.broadcast %71 : f32 to vector<24x128xf32>
    %73 = arith.mulf %72, %20 : vector<24x128xf32>
    %74 = arith.addf %70, %73 : vector<24x128xf32>
    %c11 = arith.constant 11 : index
    %75 = memref.load %arg2[%c11] : memref<36xf32, #tpu.memory_space<smem>>
    %76 = vector.broadcast %75 : f32 to vector<24x128xf32>
    %77 = arith.mulf %76, %22 : vector<24x128xf32>
    %78 = arith.addf %74, %77 : vector<24x128xf32>
    %c12 = arith.constant 12 : index
    %79 = memref.load %arg2[%c12] : memref<36xf32, #tpu.memory_space<smem>>
    %80 = vector.broadcast %79 : f32 to vector<24x128xf32>
    %81 = arith.mulf %80, %23 : vector<24x128xf32>
    %82 = arith.addf %78, %81 : vector<24x128xf32>
    %c13 = arith.constant 13 : index
    %83 = memref.load %arg2[%c13] : memref<36xf32, #tpu.memory_space<smem>>
    %84 = vector.broadcast %83 : f32 to vector<24x128xf32>
    %85 = arith.mulf %84, %19 : vector<24x128xf32>
    %86 = arith.addf %82, %85 : vector<24x128xf32>
    %c14 = arith.constant 14 : index
    %87 = memref.load %arg2[%c14] : memref<36xf32, #tpu.memory_space<smem>>
    %88 = vector.broadcast %87 : f32 to vector<24x128xf32>
    %89 = arith.mulf %88, %24 : vector<24x128xf32>
    %90 = arith.addf %86, %89 : vector<24x128xf32>
    %c15 = arith.constant 15 : index
    %91 = memref.load %arg2[%c15] : memref<36xf32, #tpu.memory_space<smem>>
    %92 = vector.broadcast %91 : f32 to vector<24x128xf32>
    %93 = arith.mulf %92, %26 : vector<24x128xf32>
    %94 = arith.addf %90, %93 : vector<24x128xf32>
    %c16 = arith.constant 16 : index
    %95 = memref.load %arg2[%c16] : memref<36xf32, #tpu.memory_space<smem>>
    %96 = vector.broadcast %95 : f32 to vector<24x128xf32>
    %97 = arith.mulf %96, %25 : vector<24x128xf32>
    %98 = arith.addf %94, %97 : vector<24x128xf32>
    %c17 = arith.constant 17 : index
    %99 = memref.load %arg2[%c17] : memref<36xf32, #tpu.memory_space<smem>>
    %100 = vector.broadcast %99 : f32 to vector<24x128xf32>
    %101 = arith.mulf %100, %27 : vector<24x128xf32>
    %102 = arith.addf %98, %101 : vector<24x128xf32>
    %c1_11 = arith.constant 1 : index
    %103 = memref.load %arg3[%c1_11] : memref<4xf32, #tpu.memory_space<smem>>
    %104 = vector.broadcast %103 : f32 to vector<24x128xf32>
    %105 = arith.addf %102, %104 : vector<24x128xf32>
    %cst_12 = arith.constant 0.000000e+00 : f32
    %106 = vector.broadcast %cst_12 : f32 to vector<24x128xf32>
    %107 = arith.select %17, %105, %106 : vector<24x128xi1>, vector<24x128xf32>
    %c18 = arith.constant 18 : index
    %108 = memref.load %arg2[%c18] : memref<36xf32, #tpu.memory_space<smem>>
    %109 = vector.broadcast %108 : f32 to vector<24x128xf32>
    %110 = arith.mulf %109, %21 : vector<24x128xf32>
    %c19 = arith.constant 19 : index
    %111 = memref.load %arg2[%c19] : memref<36xf32, #tpu.memory_space<smem>>
    %112 = vector.broadcast %111 : f32 to vector<24x128xf32>
    %113 = arith.mulf %112, %20 : vector<24x128xf32>
    %114 = arith.addf %110, %113 : vector<24x128xf32>
    %c20 = arith.constant 20 : index
    %115 = memref.load %arg2[%c20] : memref<36xf32, #tpu.memory_space<smem>>
    %116 = vector.broadcast %115 : f32 to vector<24x128xf32>
    %117 = arith.mulf %116, %22 : vector<24x128xf32>
    %118 = arith.addf %114, %117 : vector<24x128xf32>
    %c21 = arith.constant 21 : index
    %119 = memref.load %arg2[%c21] : memref<36xf32, #tpu.memory_space<smem>>
    %120 = vector.broadcast %119 : f32 to vector<24x128xf32>
    %121 = arith.mulf %120, %23 : vector<24x128xf32>
    %122 = arith.addf %118, %121 : vector<24x128xf32>
    %c22 = arith.constant 22 : index
    %123 = memref.load %arg2[%c22] : memref<36xf32, #tpu.memory_space<smem>>
    %124 = vector.broadcast %123 : f32 to vector<24x128xf32>
    %125 = arith.mulf %124, %19 : vector<24x128xf32>
    %126 = arith.addf %122, %125 : vector<24x128xf32>
    %c23 = arith.constant 23 : index
    %127 = memref.load %arg2[%c23] : memref<36xf32, #tpu.memory_space<smem>>
    %128 = vector.broadcast %127 : f32 to vector<24x128xf32>
    %129 = arith.mulf %128, %24 : vector<24x128xf32>
    %130 = arith.addf %126, %129 : vector<24x128xf32>
    %c24 = arith.constant 24 : index
    %131 = memref.load %arg2[%c24] : memref<36xf32, #tpu.memory_space<smem>>
    %132 = vector.broadcast %131 : f32 to vector<24x128xf32>
    %133 = arith.mulf %132, %26 : vector<24x128xf32>
    %134 = arith.addf %130, %133 : vector<24x128xf32>
    %c25 = arith.constant 25 : index
    %135 = memref.load %arg2[%c25] : memref<36xf32, #tpu.memory_space<smem>>
    %136 = vector.broadcast %135 : f32 to vector<24x128xf32>
    %137 = arith.mulf %136, %25 : vector<24x128xf32>
    %138 = arith.addf %134, %137 : vector<24x128xf32>
    %c26 = arith.constant 26 : index
    %139 = memref.load %arg2[%c26] : memref<36xf32, #tpu.memory_space<smem>>
    %140 = vector.broadcast %139 : f32 to vector<24x128xf32>
    %141 = arith.mulf %140, %27 : vector<24x128xf32>
    %142 = arith.addf %138, %141 : vector<24x128xf32>
    %c2_13 = arith.constant 2 : index
    %143 = memref.load %arg3[%c2_13] : memref<4xf32, #tpu.memory_space<smem>>
    %144 = vector.broadcast %143 : f32 to vector<24x128xf32>
    %145 = arith.addf %142, %144 : vector<24x128xf32>
    %cst_14 = arith.constant 0.000000e+00 : f32
    %146 = vector.broadcast %cst_14 : f32 to vector<24x128xf32>
    %147 = arith.select %17, %145, %146 : vector<24x128xi1>, vector<24x128xf32>
    %c27 = arith.constant 27 : index
    %148 = memref.load %arg2[%c27] : memref<36xf32, #tpu.memory_space<smem>>
    %149 = vector.broadcast %148 : f32 to vector<24x128xf32>
    %150 = arith.mulf %149, %21 : vector<24x128xf32>
    %c28 = arith.constant 28 : index
    %151 = memref.load %arg2[%c28] : memref<36xf32, #tpu.memory_space<smem>>
    %152 = vector.broadcast %151 : f32 to vector<24x128xf32>
    %153 = arith.mulf %152, %20 : vector<24x128xf32>
    %154 = arith.addf %150, %153 : vector<24x128xf32>
    %c29 = arith.constant 29 : index
    %155 = memref.load %arg2[%c29] : memref<36xf32, #tpu.memory_space<smem>>
    %156 = vector.broadcast %155 : f32 to vector<24x128xf32>
    %157 = arith.mulf %156, %22 : vector<24x128xf32>
    %158 = arith.addf %154, %157 : vector<24x128xf32>
    %c30 = arith.constant 30 : index
    %159 = memref.load %arg2[%c30] : memref<36xf32, #tpu.memory_space<smem>>
    %160 = vector.broadcast %159 : f32 to vector<24x128xf32>
    %161 = arith.mulf %160, %23 : vector<24x128xf32>
    %162 = arith.addf %158, %161 : vector<24x128xf32>
    %c31 = arith.constant 31 : index
    %163 = memref.load %arg2[%c31] : memref<36xf32, #tpu.memory_space<smem>>
    %164 = vector.broadcast %163 : f32 to vector<24x128xf32>
    %165 = arith.mulf %164, %19 : vector<24x128xf32>
    %166 = arith.addf %162, %165 : vector<24x128xf32>
    %c32 = arith.constant 32 : index
    %167 = memref.load %arg2[%c32] : memref<36xf32, #tpu.memory_space<smem>>
    %168 = vector.broadcast %167 : f32 to vector<24x128xf32>
    %169 = arith.mulf %168, %24 : vector<24x128xf32>
    %170 = arith.addf %166, %169 : vector<24x128xf32>
    %c33 = arith.constant 33 : index
    %171 = memref.load %arg2[%c33] : memref<36xf32, #tpu.memory_space<smem>>
    %172 = vector.broadcast %171 : f32 to vector<24x128xf32>
    %173 = arith.mulf %172, %26 : vector<24x128xf32>
    %174 = arith.addf %170, %173 : vector<24x128xf32>
    %c34 = arith.constant 34 : index
    %175 = memref.load %arg2[%c34] : memref<36xf32, #tpu.memory_space<smem>>
    %176 = vector.broadcast %175 : f32 to vector<24x128xf32>
    %177 = arith.mulf %176, %25 : vector<24x128xf32>
    %178 = arith.addf %174, %177 : vector<24x128xf32>
    %c35 = arith.constant 35 : index
    %179 = memref.load %arg2[%c35] : memref<36xf32, #tpu.memory_space<smem>>
    %180 = vector.broadcast %179 : f32 to vector<24x128xf32>
    %181 = arith.mulf %180, %27 : vector<24x128xf32>
    %182 = arith.addf %178, %181 : vector<24x128xf32>
    %c3_15 = arith.constant 3 : index
    %183 = memref.load %arg3[%c3_15] : memref<4xf32, #tpu.memory_space<smem>>
    %184 = vector.broadcast %183 : f32 to vector<24x128xf32>
    %185 = arith.addf %182, %184 : vector<24x128xf32>
    %cst_16 = arith.constant 0.000000e+00 : f32
    %186 = vector.broadcast %cst_16 : f32 to vector<24x128xf32>
    %187 = arith.select %17, %185, %186 : vector<24x128xi1>, vector<24x128xf32>
    %c1_i32_17 = arith.constant 1 : i32
    %188 = tpu.dynamic_rotate %67 by %c1_i32_17 dim 0 : vector<24x128xf32>, i32 -> vector<24x128xf32>
    %c1_i32_18 = arith.constant 1 : i32
    %189 = tpu.dynamic_rotate %188 by %c1_i32_18 dim 1 : vector<24x128xf32>, i32 -> vector<24x128xf32>
    %c127_i32_19 = arith.constant 127 : i32
    %190 = tpu.dynamic_rotate %188 by %c127_i32_19 dim 1 : vector<24x128xf32>, i32 -> vector<24x128xf32>
    %c1_i32_20 = arith.constant 1 : i32
    %191 = tpu.dynamic_rotate %67 by %c1_i32_20 dim 1 : vector<24x128xf32>, i32 -> vector<24x128xf32>
    %c127_i32_21 = arith.constant 127 : i32
    %192 = tpu.dynamic_rotate %67 by %c127_i32_21 dim 1 : vector<24x128xf32>, i32 -> vector<24x128xf32>
    %c23_i32_22 = arith.constant 23 : i32
    %193 = tpu.dynamic_rotate %67 by %c23_i32_22 dim 0 : vector<24x128xf32>, i32 -> vector<24x128xf32>
    %c1_i32_23 = arith.constant 1 : i32
    %194 = tpu.dynamic_rotate %193 by %c1_i32_23 dim 1 : vector<24x128xf32>, i32 -> vector<24x128xf32>
    %c127_i32_24 = arith.constant 127 : i32
    %195 = tpu.dynamic_rotate %193 by %c127_i32_24 dim 1 : vector<24x128xf32>, i32 -> vector<24x128xf32>
    %c1_i32_25 = arith.constant 1 : i32
    %196 = tpu.dynamic_rotate %107 by %c1_i32_25 dim 0 : vector<24x128xf32>, i32 -> vector<24x128xf32>
    %c1_i32_26 = arith.constant 1 : i32
    %197 = tpu.dynamic_rotate %196 by %c1_i32_26 dim 1 : vector<24x128xf32>, i32 -> vector<24x128xf32>
    %c127_i32_27 = arith.constant 127 : i32
    %198 = tpu.dynamic_rotate %196 by %c127_i32_27 dim 1 : vector<24x128xf32>, i32 -> vector<24x128xf32>
    %c1_i32_28 = arith.constant 1 : i32
    %199 = tpu.dynamic_rotate %107 by %c1_i32_28 dim 1 : vector<24x128xf32>, i32 -> vector<24x128xf32>
    %c127_i32_29 = arith.constant 127 : i32
    %200 = tpu.dynamic_rotate %107 by %c127_i32_29 dim 1 : vector<24x128xf32>, i32 -> vector<24x128xf32>
    %c23_i32_30 = arith.constant 23 : i32
    %201 = tpu.dynamic_rotate %107 by %c23_i32_30 dim 0 : vector<24x128xf32>, i32 -> vector<24x128xf32>
    %c1_i32_31 = arith.constant 1 : i32
    %202 = tpu.dynamic_rotate %201 by %c1_i32_31 dim 1 : vector<24x128xf32>, i32 -> vector<24x128xf32>
    %c127_i32_32 = arith.constant 127 : i32
    %203 = tpu.dynamic_rotate %201 by %c127_i32_32 dim 1 : vector<24x128xf32>, i32 -> vector<24x128xf32>
    %c1_i32_33 = arith.constant 1 : i32
    %204 = tpu.dynamic_rotate %147 by %c1_i32_33 dim 0 : vector<24x128xf32>, i32 -> vector<24x128xf32>
    %c1_i32_34 = arith.constant 1 : i32
    %205 = tpu.dynamic_rotate %204 by %c1_i32_34 dim 1 : vector<24x128xf32>, i32 -> vector<24x128xf32>
    %c127_i32_35 = arith.constant 127 : i32
    %206 = tpu.dynamic_rotate %204 by %c127_i32_35 dim 1 : vector<24x128xf32>, i32 -> vector<24x128xf32>
    %c1_i32_36 = arith.constant 1 : i32
    %207 = tpu.dynamic_rotate %147 by %c1_i32_36 dim 1 : vector<24x128xf32>, i32 -> vector<24x128xf32>
    %c127_i32_37 = arith.constant 127 : i32
    %208 = tpu.dynamic_rotate %147 by %c127_i32_37 dim 1 : vector<24x128xf32>, i32 -> vector<24x128xf32>
    %c23_i32_38 = arith.constant 23 : i32
    %209 = tpu.dynamic_rotate %147 by %c23_i32_38 dim 0 : vector<24x128xf32>, i32 -> vector<24x128xf32>
    %c1_i32_39 = arith.constant 1 : i32
    %210 = tpu.dynamic_rotate %209 by %c1_i32_39 dim 1 : vector<24x128xf32>, i32 -> vector<24x128xf32>
    %c127_i32_40 = arith.constant 127 : i32
    %211 = tpu.dynamic_rotate %209 by %c127_i32_40 dim 1 : vector<24x128xf32>, i32 -> vector<24x128xf32>
    %c1_i32_41 = arith.constant 1 : i32
    %212 = tpu.dynamic_rotate %187 by %c1_i32_41 dim 0 : vector<24x128xf32>, i32 -> vector<24x128xf32>
    %c1_i32_42 = arith.constant 1 : i32
    %213 = tpu.dynamic_rotate %212 by %c1_i32_42 dim 1 : vector<24x128xf32>, i32 -> vector<24x128xf32>
    %c127_i32_43 = arith.constant 127 : i32
    %214 = tpu.dynamic_rotate %212 by %c127_i32_43 dim 1 : vector<24x128xf32>, i32 -> vector<24x128xf32>
    %c1_i32_44 = arith.constant 1 : i32
    %215 = tpu.dynamic_rotate %187 by %c1_i32_44 dim 1 : vector<24x128xf32>, i32 -> vector<24x128xf32>
    %c127_i32_45 = arith.constant 127 : i32
    %216 = tpu.dynamic_rotate %187 by %c127_i32_45 dim 1 : vector<24x128xf32>, i32 -> vector<24x128xf32>
    %c23_i32_46 = arith.constant 23 : i32
    %217 = tpu.dynamic_rotate %187 by %c23_i32_46 dim 0 : vector<24x128xf32>, i32 -> vector<24x128xf32>
    %c1_i32_47 = arith.constant 1 : i32
    %218 = tpu.dynamic_rotate %217 by %c1_i32_47 dim 1 : vector<24x128xf32>, i32 -> vector<24x128xf32>
    %c127_i32_48 = arith.constant 127 : i32
    %219 = tpu.dynamic_rotate %217 by %c127_i32_48 dim 1 : vector<24x128xf32>, i32 -> vector<24x128xf32>
    %c0_49 = arith.constant 0 : index
    %220 = memref.load %arg4[%c0_49] : memref<288xf32, #tpu.memory_space<smem>>
    %221 = vector.broadcast %220 : f32 to vector<24x128xf32>
    %222 = arith.mulf %221, %189 : vector<24x128xf32>
    %c1_50 = arith.constant 1 : index
    %223 = memref.load %arg4[%c1_50] : memref<288xf32, #tpu.memory_space<smem>>
    %224 = vector.broadcast %223 : f32 to vector<24x128xf32>
    %225 = arith.mulf %224, %188 : vector<24x128xf32>
    %226 = arith.addf %222, %225 : vector<24x128xf32>
    %c2_51 = arith.constant 2 : index
    %227 = memref.load %arg4[%c2_51] : memref<288xf32, #tpu.memory_space<smem>>
    %228 = vector.broadcast %227 : f32 to vector<24x128xf32>
    %229 = arith.mulf %228, %190 : vector<24x128xf32>
    %230 = arith.addf %226, %229 : vector<24x128xf32>
    %c3_52 = arith.constant 3 : index
    %231 = memref.load %arg4[%c3_52] : memref<288xf32, #tpu.memory_space<smem>>
    %232 = vector.broadcast %231 : f32 to vector<24x128xf32>
    %233 = arith.mulf %232, %191 : vector<24x128xf32>
    %234 = arith.addf %230, %233 : vector<24x128xf32>
    %c4_53 = arith.constant 4 : index
    %235 = memref.load %arg4[%c4_53] : memref<288xf32, #tpu.memory_space<smem>>
    %236 = vector.broadcast %235 : f32 to vector<24x128xf32>
    %237 = arith.mulf %236, %67 : vector<24x128xf32>
    %238 = arith.addf %234, %237 : vector<24x128xf32>
    %c5_54 = arith.constant 5 : index
    %239 = memref.load %arg4[%c5_54] : memref<288xf32, #tpu.memory_space<smem>>
    %240 = vector.broadcast %239 : f32 to vector<24x128xf32>
    %241 = arith.mulf %240, %192 : vector<24x128xf32>
    %242 = arith.addf %238, %241 : vector<24x128xf32>
    %c6_55 = arith.constant 6 : index
    %243 = memref.load %arg4[%c6_55] : memref<288xf32, #tpu.memory_space<smem>>
    %244 = vector.broadcast %243 : f32 to vector<24x128xf32>
    %245 = arith.mulf %244, %194 : vector<24x128xf32>
    %246 = arith.addf %242, %245 : vector<24x128xf32>
    %c7_56 = arith.constant 7 : index
    %247 = memref.load %arg4[%c7_56] : memref<288xf32, #tpu.memory_space<smem>>
    %248 = vector.broadcast %247 : f32 to vector<24x128xf32>
    %249 = arith.mulf %248, %193 : vector<24x128xf32>
    %250 = arith.addf %246, %249 : vector<24x128xf32>
    %c8_57 = arith.constant 8 : index
    %251 = memref.load %arg4[%c8_57] : memref<288xf32, #tpu.memory_space<smem>>
    %252 = vector.broadcast %251 : f32 to vector<24x128xf32>
    %253 = arith.mulf %252, %195 : vector<24x128xf32>
    %254 = arith.addf %250, %253 : vector<24x128xf32>
    %c9_58 = arith.constant 9 : index
    %255 = memref.load %arg4[%c9_58] : memref<288xf32, #tpu.memory_space<smem>>
    %256 = vector.broadcast %255 : f32 to vector<24x128xf32>
    %257 = arith.mulf %256, %197 : vector<24x128xf32>
    %258 = arith.addf %254, %257 : vector<24x128xf32>
    %c10_59 = arith.constant 10 : index
    %259 = memref.load %arg4[%c10_59] : memref<288xf32, #tpu.memory_space<smem>>
    %260 = vector.broadcast %259 : f32 to vector<24x128xf32>
    %261 = arith.mulf %260, %196 : vector<24x128xf32>
    %262 = arith.addf %258, %261 : vector<24x128xf32>
    %c11_60 = arith.constant 11 : index
    %263 = memref.load %arg4[%c11_60] : memref<288xf32, #tpu.memory_space<smem>>
    %264 = vector.broadcast %263 : f32 to vector<24x128xf32>
    %265 = arith.mulf %264, %198 : vector<24x128xf32>
    %266 = arith.addf %262, %265 : vector<24x128xf32>
    %c12_61 = arith.constant 12 : index
    %267 = memref.load %arg4[%c12_61] : memref<288xf32, #tpu.memory_space<smem>>
    %268 = vector.broadcast %267 : f32 to vector<24x128xf32>
    %269 = arith.mulf %268, %199 : vector<24x128xf32>
    %270 = arith.addf %266, %269 : vector<24x128xf32>
    %c13_62 = arith.constant 13 : index
    %271 = memref.load %arg4[%c13_62] : memref<288xf32, #tpu.memory_space<smem>>
    %272 = vector.broadcast %271 : f32 to vector<24x128xf32>
    %273 = arith.mulf %272, %107 : vector<24x128xf32>
    %274 = arith.addf %270, %273 : vector<24x128xf32>
    %c14_63 = arith.constant 14 : index
    %275 = memref.load %arg4[%c14_63] : memref<288xf32, #tpu.memory_space<smem>>
    %276 = vector.broadcast %275 : f32 to vector<24x128xf32>
    %277 = arith.mulf %276, %200 : vector<24x128xf32>
    %278 = arith.addf %274, %277 : vector<24x128xf32>
    %c15_64 = arith.constant 15 : index
    %279 = memref.load %arg4[%c15_64] : memref<288xf32, #tpu.memory_space<smem>>
    %280 = vector.broadcast %279 : f32 to vector<24x128xf32>
    %281 = arith.mulf %280, %202 : vector<24x128xf32>
    %282 = arith.addf %278, %281 : vector<24x128xf32>
    %c16_65 = arith.constant 16 : index
    %283 = memref.load %arg4[%c16_65] : memref<288xf32, #tpu.memory_space<smem>>
    %284 = vector.broadcast %283 : f32 to vector<24x128xf32>
    %285 = arith.mulf %284, %201 : vector<24x128xf32>
    %286 = arith.addf %282, %285 : vector<24x128xf32>
    %c17_66 = arith.constant 17 : index
    %287 = memref.load %arg4[%c17_66] : memref<288xf32, #tpu.memory_space<smem>>
    %288 = vector.broadcast %287 : f32 to vector<24x128xf32>
    %289 = arith.mulf %288, %203 : vector<24x128xf32>
    %290 = arith.addf %286, %289 : vector<24x128xf32>
    %c18_67 = arith.constant 18 : index
    %291 = memref.load %arg4[%c18_67] : memref<288xf32, #tpu.memory_space<smem>>
    %292 = vector.broadcast %291 : f32 to vector<24x128xf32>
    %293 = arith.mulf %292, %205 : vector<24x128xf32>
    %294 = arith.addf %290, %293 : vector<24x128xf32>
    %c19_68 = arith.constant 19 : index
    %295 = memref.load %arg4[%c19_68] : memref<288xf32, #tpu.memory_space<smem>>
    %296 = vector.broadcast %295 : f32 to vector<24x128xf32>
    %297 = arith.mulf %296, %204 : vector<24x128xf32>
    %298 = arith.addf %294, %297 : vector<24x128xf32>
    %c20_69 = arith.constant 20 : index
    %299 = memref.load %arg4[%c20_69] : memref<288xf32, #tpu.memory_space<smem>>
    %300 = vector.broadcast %299 : f32 to vector<24x128xf32>
    %301 = arith.mulf %300, %206 : vector<24x128xf32>
    %302 = arith.addf %298, %301 : vector<24x128xf32>
    %c21_70 = arith.constant 21 : index
    %303 = memref.load %arg4[%c21_70] : memref<288xf32, #tpu.memory_space<smem>>
    %304 = vector.broadcast %303 : f32 to vector<24x128xf32>
    %305 = arith.mulf %304, %207 : vector<24x128xf32>
    %306 = arith.addf %302, %305 : vector<24x128xf32>
    %c22_71 = arith.constant 22 : index
    %307 = memref.load %arg4[%c22_71] : memref<288xf32, #tpu.memory_space<smem>>
    %308 = vector.broadcast %307 : f32 to vector<24x128xf32>
    %309 = arith.mulf %308, %147 : vector<24x128xf32>
    %310 = arith.addf %306, %309 : vector<24x128xf32>
    %c23_72 = arith.constant 23 : index
    %311 = memref.load %arg4[%c23_72] : memref<288xf32, #tpu.memory_space<smem>>
    %312 = vector.broadcast %311 : f32 to vector<24x128xf32>
    %313 = arith.mulf %312, %208 : vector<24x128xf32>
    %314 = arith.addf %310, %313 : vector<24x128xf32>
    %c24_73 = arith.constant 24 : index
    %315 = memref.load %arg4[%c24_73] : memref<288xf32, #tpu.memory_space<smem>>
    %316 = vector.broadcast %315 : f32 to vector<24x128xf32>
    %317 = arith.mulf %316, %210 : vector<24x128xf32>
    %318 = arith.addf %314, %317 : vector<24x128xf32>
    %c25_74 = arith.constant 25 : index
    %319 = memref.load %arg4[%c25_74] : memref<288xf32, #tpu.memory_space<smem>>
    %320 = vector.broadcast %319 : f32 to vector<24x128xf32>
    %321 = arith.mulf %320, %209 : vector<24x128xf32>
    %322 = arith.addf %318, %321 : vector<24x128xf32>
    %c26_75 = arith.constant 26 : index
    %323 = memref.load %arg4[%c26_75] : memref<288xf32, #tpu.memory_space<smem>>
    %324 = vector.broadcast %323 : f32 to vector<24x128xf32>
    %325 = arith.mulf %324, %211 : vector<24x128xf32>
    %326 = arith.addf %322, %325 : vector<24x128xf32>
    %c27_76 = arith.constant 27 : index
    %327 = memref.load %arg4[%c27_76] : memref<288xf32, #tpu.memory_space<smem>>
    %328 = vector.broadcast %327 : f32 to vector<24x128xf32>
    %329 = arith.mulf %328, %213 : vector<24x128xf32>
    %330 = arith.addf %326, %329 : vector<24x128xf32>
    %c28_77 = arith.constant 28 : index
    %331 = memref.load %arg4[%c28_77] : memref<288xf32, #tpu.memory_space<smem>>
    %332 = vector.broadcast %331 : f32 to vector<24x128xf32>
    %333 = arith.mulf %332, %212 : vector<24x128xf32>
    %334 = arith.addf %330, %333 : vector<24x128xf32>
    %c29_78 = arith.constant 29 : index
    %335 = memref.load %arg4[%c29_78] : memref<288xf32, #tpu.memory_space<smem>>
    %336 = vector.broadcast %335 : f32 to vector<24x128xf32>
    %337 = arith.mulf %336, %214 : vector<24x128xf32>
    %338 = arith.addf %334, %337 : vector<24x128xf32>
    %c30_79 = arith.constant 30 : index
    %339 = memref.load %arg4[%c30_79] : memref<288xf32, #tpu.memory_space<smem>>
    %340 = vector.broadcast %339 : f32 to vector<24x128xf32>
    %341 = arith.mulf %340, %215 : vector<24x128xf32>
    %342 = arith.addf %338, %341 : vector<24x128xf32>
    %c31_80 = arith.constant 31 : index
    %343 = memref.load %arg4[%c31_80] : memref<288xf32, #tpu.memory_space<smem>>
    %344 = vector.broadcast %343 : f32 to vector<24x128xf32>
    %345 = arith.mulf %344, %187 : vector<24x128xf32>
    %346 = arith.addf %342, %345 : vector<24x128xf32>
    %c32_81 = arith.constant 32 : index
    %347 = memref.load %arg4[%c32_81] : memref<288xf32, #tpu.memory_space<smem>>
    %348 = vector.broadcast %347 : f32 to vector<24x128xf32>
    %349 = arith.mulf %348, %216 : vector<24x128xf32>
    %350 = arith.addf %346, %349 : vector<24x128xf32>
    %c33_82 = arith.constant 33 : index
    %351 = memref.load %arg4[%c33_82] : memref<288xf32, #tpu.memory_space<smem>>
    %352 = vector.broadcast %351 : f32 to vector<24x128xf32>
    %353 = arith.mulf %352, %218 : vector<24x128xf32>
    %354 = arith.addf %350, %353 : vector<24x128xf32>
    %c34_83 = arith.constant 34 : index
    %355 = memref.load %arg4[%c34_83] : memref<288xf32, #tpu.memory_space<smem>>
    %356 = vector.broadcast %355 : f32 to vector<24x128xf32>
    %357 = arith.mulf %356, %217 : vector<24x128xf32>
    %358 = arith.addf %354, %357 : vector<24x128xf32>
    %c35_84 = arith.constant 35 : index
    %359 = memref.load %arg4[%c35_84] : memref<288xf32, #tpu.memory_space<smem>>
    %360 = vector.broadcast %359 : f32 to vector<24x128xf32>
    %361 = arith.mulf %360, %219 : vector<24x128xf32>
    %362 = arith.addf %358, %361 : vector<24x128xf32>
    %c0_85 = arith.constant 0 : index
    %363 = memref.load %arg5[%c0_85] : memref<8xf32, #tpu.memory_space<smem>>
    %364 = vector.broadcast %363 : f32 to vector<24x128xf32>
    %365 = arith.addf %362, %364 : vector<24x128xf32>
    %366 = vector.extract_strided_slice %365 {offsets = [0, 0], sizes = [16, 128], strides = [1, 1]} : vector<24x128xf32> to vector<16x128xf32>
    %c0_86 = arith.constant 0 : index
    %c0_87 = arith.constant 0 : index
    %c0_88 = arith.constant 0 : index
    %367 = vector.load %arg6[%c0_86, %c0_87, %c0_88] : memref<8x16x128xf32, #tpu.memory_space<vmem>>, vector<1x16x128xf32>
    %368 = vector.shape_cast %367 : vector<1x16x128xf32> to vector<16x128xf32>
    %369 = vector.shape_cast %366 : vector<16x128xf32> to vector<1x16x128xf32>
    tpu.vector_store %arg6[%c0_86, %c0_87, %c0_88], %369 {strides = array<i32>} : memref<8x16x128xf32, #tpu.memory_space<vmem>>, vector<1x16x128xf32>,
    %c36 = arith.constant 36 : index
    %370 = memref.load %arg4[%c36] : memref<288xf32, #tpu.memory_space<smem>>
    %371 = vector.broadcast %370 : f32 to vector<24x128xf32>
    %372 = arith.mulf %371, %189 : vector<24x128xf32>
    %c37 = arith.constant 37 : index
    %373 = memref.load %arg4[%c37] : memref<288xf32, #tpu.memory_space<smem>>
    %374 = vector.broadcast %373 : f32 to vector<24x128xf32>
    %375 = arith.mulf %374, %188 : vector<24x128xf32>
    %376 = arith.addf %372, %375 : vector<24x128xf32>
    %c38 = arith.constant 38 : index
    %377 = memref.load %arg4[%c38] : memref<288xf32, #tpu.memory_space<smem>>
    %378 = vector.broadcast %377 : f32 to vector<24x128xf32>
    %379 = arith.mulf %378, %190 : vector<24x128xf32>
    %380 = arith.addf %376, %379 : vector<24x128xf32>
    %c39 = arith.constant 39 : index
    %381 = memref.load %arg4[%c39] : memref<288xf32, #tpu.memory_space<smem>>
    %382 = vector.broadcast %381 : f32 to vector<24x128xf32>
    %383 = arith.mulf %382, %191 : vector<24x128xf32>
    %384 = arith.addf %380, %383 : vector<24x128xf32>
    %c40 = arith.constant 40 : index
    %385 = memref.load %arg4[%c40] : memref<288xf32, #tpu.memory_space<smem>>
    %386 = vector.broadcast %385 : f32 to vector<24x128xf32>
    %387 = arith.mulf %386, %67 : vector<24x128xf32>
    %388 = arith.addf %384, %387 : vector<24x128xf32>
    %c41 = arith.constant 41 : index
    %389 = memref.load %arg4[%c41] : memref<288xf32, #tpu.memory_space<smem>>
    %390 = vector.broadcast %389 : f32 to vector<24x128xf32>
    %391 = arith.mulf %390, %192 : vector<24x128xf32>
    %392 = arith.addf %388, %391 : vector<24x128xf32>
    %c42 = arith.constant 42 : index
    %393 = memref.load %arg4[%c42] : memref<288xf32, #tpu.memory_space<smem>>
    %394 = vector.broadcast %393 : f32 to vector<24x128xf32>
    %395 = arith.mulf %394, %194 : vector<24x128xf32>
    %396 = arith.addf %392, %395 : vector<24x128xf32>
    %c43 = arith.constant 43 : index
    %397 = memref.load %arg4[%c43] : memref<288xf32, #tpu.memory_space<smem>>
    %398 = vector.broadcast %397 : f32 to vector<24x128xf32>
    %399 = arith.mulf %398, %193 : vector<24x128xf32>
    %400 = arith.addf %396, %399 : vector<24x128xf32>
    %c44 = arith.constant 44 : index
    %401 = memref.load %arg4[%c44] : memref<288xf32, #tpu.memory_space<smem>>
    %402 = vector.broadcast %401 : f32 to vector<24x128xf32>
    %403 = arith.mulf %402, %195 : vector<24x128xf32>
    %404 = arith.addf %400, %403 : vector<24x128xf32>
    %c45 = arith.constant 45 : index
    %405 = memref.load %arg4[%c45] : memref<288xf32, #tpu.memory_space<smem>>
    %406 = vector.broadcast %405 : f32 to vector<24x128xf32>
    %407 = arith.mulf %406, %197 : vector<24x128xf32>
    %408 = arith.addf %404, %407 : vector<24x128xf32>
    %c46 = arith.constant 46 : index
    %409 = memref.load %arg4[%c46] : memref<288xf32, #tpu.memory_space<smem>>
    %410 = vector.broadcast %409 : f32 to vector<24x128xf32>
    %411 = arith.mulf %410, %196 : vector<24x128xf32>
    %412 = arith.addf %408, %411 : vector<24x128xf32>
    %c47 = arith.constant 47 : index
    %413 = memref.load %arg4[%c47] : memref<288xf32, #tpu.memory_space<smem>>
    %414 = vector.broadcast %413 : f32 to vector<24x128xf32>
    %415 = arith.mulf %414, %198 : vector<24x128xf32>
    %416 = arith.addf %412, %415 : vector<24x128xf32>
    %c48 = arith.constant 48 : index
    %417 = memref.load %arg4[%c48] : memref<288xf32, #tpu.memory_space<smem>>
    %418 = vector.broadcast %417 : f32 to vector<24x128xf32>
    %419 = arith.mulf %418, %199 : vector<24x128xf32>
    %420 = arith.addf %416, %419 : vector<24x128xf32>
    %c49 = arith.constant 49 : index
    %421 = memref.load %arg4[%c49] : memref<288xf32, #tpu.memory_space<smem>>
    %422 = vector.broadcast %421 : f32 to vector<24x128xf32>
    %423 = arith.mulf %422, %107 : vector<24x128xf32>
    %424 = arith.addf %420, %423 : vector<24x128xf32>
    %c50 = arith.constant 50 : index
    %425 = memref.load %arg4[%c50] : memref<288xf32, #tpu.memory_space<smem>>
    %426 = vector.broadcast %425 : f32 to vector<24x128xf32>
    %427 = arith.mulf %426, %200 : vector<24x128xf32>
    %428 = arith.addf %424, %427 : vector<24x128xf32>
    %c51 = arith.constant 51 : index
    %429 = memref.load %arg4[%c51] : memref<288xf32, #tpu.memory_space<smem>>
    %430 = vector.broadcast %429 : f32 to vector<24x128xf32>
    %431 = arith.mulf %430, %202 : vector<24x128xf32>
    %432 = arith.addf %428, %431 : vector<24x128xf32>
    %c52 = arith.constant 52 : index
    %433 = memref.load %arg4[%c52] : memref<288xf32, #tpu.memory_space<smem>>
    %434 = vector.broadcast %433 : f32 to vector<24x128xf32>
    %435 = arith.mulf %434, %201 : vector<24x128xf32>
    %436 = arith.addf %432, %435 : vector<24x128xf32>
    %c53 = arith.constant 53 : index
    %437 = memref.load %arg4[%c53] : memref<288xf32, #tpu.memory_space<smem>>
    %438 = vector.broadcast %437 : f32 to vector<24x128xf32>
    %439 = arith.mulf %438, %203 : vector<24x128xf32>
    %440 = arith.addf %436, %439 : vector<24x128xf32>
    %c54 = arith.constant 54 : index
    %441 = memref.load %arg4[%c54] : memref<288xf32, #tpu.memory_space<smem>>
    %442 = vector.broadcast %441 : f32 to vector<24x128xf32>
    %443 = arith.mulf %442, %205 : vector<24x128xf32>
    %444 = arith.addf %440, %443 : vector<24x128xf32>
    %c55 = arith.constant 55 : index
    %445 = memref.load %arg4[%c55] : memref<288xf32, #tpu.memory_space<smem>>
    %446 = vector.broadcast %445 : f32 to vector<24x128xf32>
    %447 = arith.mulf %446, %204 : vector<24x128xf32>
    %448 = arith.addf %444, %447 : vector<24x128xf32>
    %c56 = arith.constant 56 : index
    %449 = memref.load %arg4[%c56] : memref<288xf32, #tpu.memory_space<smem>>
    %450 = vector.broadcast %449 : f32 to vector<24x128xf32>
    %451 = arith.mulf %450, %206 : vector<24x128xf32>
    %452 = arith.addf %448, %451 : vector<24x128xf32>
    %c57 = arith.constant 57 : index
    %453 = memref.load %arg4[%c57] : memref<288xf32, #tpu.memory_space<smem>>
    %454 = vector.broadcast %453 : f32 to vector<24x128xf32>
    %455 = arith.mulf %454, %207 : vector<24x128xf32>
    %456 = arith.addf %452, %455 : vector<24x128xf32>
    %c58 = arith.constant 58 : index
    %457 = memref.load %arg4[%c58] : memref<288xf32, #tpu.memory_space<smem>>
    %458 = vector.broadcast %457 : f32 to vector<24x128xf32>
    %459 = arith.mulf %458, %147 : vector<24x128xf32>
    %460 = arith.addf %456, %459 : vector<24x128xf32>
    %c59 = arith.constant 59 : index
    %461 = memref.load %arg4[%c59] : memref<288xf32, #tpu.memory_space<smem>>
    %462 = vector.broadcast %461 : f32 to vector<24x128xf32>
    %463 = arith.mulf %462, %208 : vector<24x128xf32>
    %464 = arith.addf %460, %463 : vector<24x128xf32>
    %c60 = arith.constant 60 : index
    %465 = memref.load %arg4[%c60] : memref<288xf32, #tpu.memory_space<smem>>
    %466 = vector.broadcast %465 : f32 to vector<24x128xf32>
    %467 = arith.mulf %466, %210 : vector<24x128xf32>
    %468 = arith.addf %464, %467 : vector<24x128xf32>
    %c61 = arith.constant 61 : index
    %469 = memref.load %arg4[%c61] : memref<288xf32, #tpu.memory_space<smem>>
    %470 = vector.broadcast %469 : f32 to vector<24x128xf32>
    %471 = arith.mulf %470, %209 : vector<24x128xf32>
    %472 = arith.addf %468, %471 : vector<24x128xf32>
    %c62 = arith.constant 62 : index
    %473 = memref.load %arg4[%c62] : memref<288xf32, #tpu.memory_space<smem>>
    %474 = vector.broadcast %473 : f32 to vector<24x128xf32>
    %475 = arith.mulf %474, %211 : vector<24x128xf32>
    %476 = arith.addf %472, %475 : vector<24x128xf32>
    %c63 = arith.constant 63 : index
    %477 = memref.load %arg4[%c63] : memref<288xf32, #tpu.memory_space<smem>>
    %478 = vector.broadcast %477 : f32 to vector<24x128xf32>
    %479 = arith.mulf %478, %213 : vector<24x128xf32>
    %480 = arith.addf %476, %479 : vector<24x128xf32>
    %c64 = arith.constant 64 : index
    %481 = memref.load %arg4[%c64] : memref<288xf32, #tpu.memory_space<smem>>
    %482 = vector.broadcast %481 : f32 to vector<24x128xf32>
    %483 = arith.mulf %482, %212 : vector<24x128xf32>
    %484 = arith.addf %480, %483 : vector<24x128xf32>
    %c65 = arith.constant 65 : index
    %485 = memref.load %arg4[%c65] : memref<288xf32, #tpu.memory_space<smem>>
    %486 = vector.broadcast %485 : f32 to vector<24x128xf32>
    %487 = arith.mulf %486, %214 : vector<24x128xf32>
    %488 = arith.addf %484, %487 : vector<24x128xf32>
    %c66 = arith.constant 66 : index
    %489 = memref.load %arg4[%c66] : memref<288xf32, #tpu.memory_space<smem>>
    %490 = vector.broadcast %489 : f32 to vector<24x128xf32>
    %491 = arith.mulf %490, %215 : vector<24x128xf32>
    %492 = arith.addf %488, %491 : vector<24x128xf32>
    %c67 = arith.constant 67 : index
    %493 = memref.load %arg4[%c67] : memref<288xf32, #tpu.memory_space<smem>>
    %494 = vector.broadcast %493 : f32 to vector<24x128xf32>
    %495 = arith.mulf %494, %187 : vector<24x128xf32>
    %496 = arith.addf %492, %495 : vector<24x128xf32>
    %c68 = arith.constant 68 : index
    %497 = memref.load %arg4[%c68] : memref<288xf32, #tpu.memory_space<smem>>
    %498 = vector.broadcast %497 : f32 to vector<24x128xf32>
    %499 = arith.mulf %498, %216 : vector<24x128xf32>
    %500 = arith.addf %496, %499 : vector<24x128xf32>
    %c69 = arith.constant 69 : index
    %501 = memref.load %arg4[%c69] : memref<288xf32, #tpu.memory_space<smem>>
    %502 = vector.broadcast %501 : f32 to vector<24x128xf32>
    %503 = arith.mulf %502, %218 : vector<24x128xf32>
    %504 = arith.addf %500, %503 : vector<24x128xf32>
    %c70 = arith.constant 70 : index
    %505 = memref.load %arg4[%c70] : memref<288xf32, #tpu.memory_space<smem>>
    %506 = vector.broadcast %505 : f32 to vector<24x128xf32>
    %507 = arith.mulf %506, %217 : vector<24x128xf32>
    %508 = arith.addf %504, %507 : vector<24x128xf32>
    %c71 = arith.constant 71 : index
    %509 = memref.load %arg4[%c71] : memref<288xf32, #tpu.memory_space<smem>>
    %510 = vector.broadcast %509 : f32 to vector<24x128xf32>
    %511 = arith.mulf %510, %219 : vector<24x128xf32>
    %512 = arith.addf %508, %511 : vector<24x128xf32>
    %c1_89 = arith.constant 1 : index
    %513 = memref.load %arg5[%c1_89] : memref<8xf32, #tpu.memory_space<smem>>
    %514 = vector.broadcast %513 : f32 to vector<24x128xf32>
    %515 = arith.addf %512, %514 : vector<24x128xf32>
    %516 = vector.extract_strided_slice %515 {offsets = [0, 0], sizes = [16, 128], strides = [1, 1]} : vector<24x128xf32> to vector<16x128xf32>
    %c1_90 = arith.constant 1 : index
    %c0_91 = arith.constant 0 : index
    %c0_92 = arith.constant 0 : index
    %517 = vector.load %arg6[%c1_90, %c0_91, %c0_92] : memref<8x16x128xf32, #tpu.memory_space<vmem>>, vector<1x16x128xf32>
    %518 = vector.shape_cast %517 : vector<1x16x128xf32> to vector<16x128xf32>
    %519 = vector.shape_cast %516 : vector<16x128xf32> to vector<1x16x128xf32>
    tpu.vector_store %arg6[%c1_90, %c0_91, %c0_92], %519 {strides = array<i32>} : memref<8x16x128xf32, #tpu.memory_space<vmem>>, vector<1x16x128xf32>,
    %c72 = arith.constant 72 : index
    %520 = memref.load %arg4[%c72] : memref<288xf32, #tpu.memory_space<smem>>
    %521 = vector.broadcast %520 : f32 to vector<24x128xf32>
    %522 = arith.mulf %521, %189 : vector<24x128xf32>
    %c73 = arith.constant 73 : index
    %523 = memref.load %arg4[%c73] : memref<288xf32, #tpu.memory_space<smem>>
    %524 = vector.broadcast %523 : f32 to vector<24x128xf32>
    %525 = arith.mulf %524, %188 : vector<24x128xf32>
    %526 = arith.addf %522, %525 : vector<24x128xf32>
    %c74 = arith.constant 74 : index
    %527 = memref.load %arg4[%c74] : memref<288xf32, #tpu.memory_space<smem>>
    %528 = vector.broadcast %527 : f32 to vector<24x128xf32>
    %529 = arith.mulf %528, %190 : vector<24x128xf32>
    %530 = arith.addf %526, %529 : vector<24x128xf32>
    %c75 = arith.constant 75 : index
    %531 = memref.load %arg4[%c75] : memref<288xf32, #tpu.memory_space<smem>>
    %532 = vector.broadcast %531 : f32 to vector<24x128xf32>
    %533 = arith.mulf %532, %191 : vector<24x128xf32>
    %534 = arith.addf %530, %533 : vector<24x128xf32>
    %c76 = arith.constant 76 : index
    %535 = memref.load %arg4[%c76] : memref<288xf32, #tpu.memory_space<smem>>
    %536 = vector.broadcast %535 : f32 to vector<24x128xf32>
    %537 = arith.mulf %536, %67 : vector<24x128xf32>
    %538 = arith.addf %534, %537 : vector<24x128xf32>
    %c77 = arith.constant 77 : index
    %539 = memref.load %arg4[%c77] : memref<288xf32, #tpu.memory_space<smem>>
    %540 = vector.broadcast %539 : f32 to vector<24x128xf32>
    %541 = arith.mulf %540, %192 : vector<24x128xf32>
    %542 = arith.addf %538, %541 : vector<24x128xf32>
    %c78 = arith.constant 78 : index
    %543 = memref.load %arg4[%c78] : memref<288xf32, #tpu.memory_space<smem>>
    %544 = vector.broadcast %543 : f32 to vector<24x128xf32>
    %545 = arith.mulf %544, %194 : vector<24x128xf32>
    %546 = arith.addf %542, %545 : vector<24x128xf32>
    %c79 = arith.constant 79 : index
    %547 = memref.load %arg4[%c79] : memref<288xf32, #tpu.memory_space<smem>>
    %548 = vector.broadcast %547 : f32 to vector<24x128xf32>
    %549 = arith.mulf %548, %193 : vector<24x128xf32>
    %550 = arith.addf %546, %549 : vector<24x128xf32>
    %c80 = arith.constant 80 : index
    %551 = memref.load %arg4[%c80] : memref<288xf32, #tpu.memory_space<smem>>
    %552 = vector.broadcast %551 : f32 to vector<24x128xf32>
    %553 = arith.mulf %552, %195 : vector<24x128xf32>
    %554 = arith.addf %550, %553 : vector<24x128xf32>
    %c81 = arith.constant 81 : index
    %555 = memref.load %arg4[%c81] : memref<288xf32, #tpu.memory_space<smem>>
    %556 = vector.broadcast %555 : f32 to vector<24x128xf32>
    %557 = arith.mulf %556, %197 : vector<24x128xf32>
    %558 = arith.addf %554, %557 : vector<24x128xf32>
    %c82 = arith.constant 82 : index
    %559 = memref.load %arg4[%c82] : memref<288xf32, #tpu.memory_space<smem>>
    %560 = vector.broadcast %559 : f32 to vector<24x128xf32>
    %561 = arith.mulf %560, %196 : vector<24x128xf32>
    %562 = arith.addf %558, %561 : vector<24x128xf32>
    %c83 = arith.constant 83 : index
    %563 = memref.load %arg4[%c83] : memref<288xf32, #tpu.memory_space<smem>>
    %564 = vector.broadcast %563 : f32 to vector<24x128xf32>
    %565 = arith.mulf %564, %198 : vector<24x128xf32>
    %566 = arith.addf %562, %565 : vector<24x128xf32>
    %c84 = arith.constant 84 : index
    %567 = memref.load %arg4[%c84] : memref<288xf32, #tpu.memory_space<smem>>
    %568 = vector.broadcast %567 : f32 to vector<24x128xf32>
    %569 = arith.mulf %568, %199 : vector<24x128xf32>
    %570 = arith.addf %566, %569 : vector<24x128xf32>
    %c85 = arith.constant 85 : index
    %571 = memref.load %arg4[%c85] : memref<288xf32, #tpu.memory_space<smem>>
    %572 = vector.broadcast %571 : f32 to vector<24x128xf32>
    %573 = arith.mulf %572, %107 : vector<24x128xf32>
    %574 = arith.addf %570, %573 : vector<24x128xf32>
    %c86 = arith.constant 86 : index
    %575 = memref.load %arg4[%c86] : memref<288xf32, #tpu.memory_space<smem>>
    %576 = vector.broadcast %575 : f32 to vector<24x128xf32>
    %577 = arith.mulf %576, %200 : vector<24x128xf32>
    %578 = arith.addf %574, %577 : vector<24x128xf32>
    %c87 = arith.constant 87 : index
    %579 = memref.load %arg4[%c87] : memref<288xf32, #tpu.memory_space<smem>>
    %580 = vector.broadcast %579 : f32 to vector<24x128xf32>
    %581 = arith.mulf %580, %202 : vector<24x128xf32>
    %582 = arith.addf %578, %581 : vector<24x128xf32>
    %c88 = arith.constant 88 : index
    %583 = memref.load %arg4[%c88] : memref<288xf32, #tpu.memory_space<smem>>
    %584 = vector.broadcast %583 : f32 to vector<24x128xf32>
    %585 = arith.mulf %584, %201 : vector<24x128xf32>
    %586 = arith.addf %582, %585 : vector<24x128xf32>
    %c89 = arith.constant 89 : index
    %587 = memref.load %arg4[%c89] : memref<288xf32, #tpu.memory_space<smem>>
    %588 = vector.broadcast %587 : f32 to vector<24x128xf32>
    %589 = arith.mulf %588, %203 : vector<24x128xf32>
    %590 = arith.addf %586, %589 : vector<24x128xf32>
    %c90 = arith.constant 90 : index
    %591 = memref.load %arg4[%c90] : memref<288xf32, #tpu.memory_space<smem>>
    %592 = vector.broadcast %591 : f32 to vector<24x128xf32>
    %593 = arith.mulf %592, %205 : vector<24x128xf32>
    %594 = arith.addf %590, %593 : vector<24x128xf32>
    %c91 = arith.constant 91 : index
    %595 = memref.load %arg4[%c91] : memref<288xf32, #tpu.memory_space<smem>>
    %596 = vector.broadcast %595 : f32 to vector<24x128xf32>
    %597 = arith.mulf %596, %204 : vector<24x128xf32>
    %598 = arith.addf %594, %597 : vector<24x128xf32>
    %c92 = arith.constant 92 : index
    %599 = memref.load %arg4[%c92] : memref<288xf32, #tpu.memory_space<smem>>
    %600 = vector.broadcast %599 : f32 to vector<24x128xf32>
    %601 = arith.mulf %600, %206 : vector<24x128xf32>
    %602 = arith.addf %598, %601 : vector<24x128xf32>
    %c93 = arith.constant 93 : index
    %603 = memref.load %arg4[%c93] : memref<288xf32, #tpu.memory_space<smem>>
    %604 = vector.broadcast %603 : f32 to vector<24x128xf32>
    %605 = arith.mulf %604, %207 : vector<24x128xf32>
    %606 = arith.addf %602, %605 : vector<24x128xf32>
    %c94 = arith.constant 94 : index
    %607 = memref.load %arg4[%c94] : memref<288xf32, #tpu.memory_space<smem>>
    %608 = vector.broadcast %607 : f32 to vector<24x128xf32>
    %609 = arith.mulf %608, %147 : vector<24x128xf32>
    %610 = arith.addf %606, %609 : vector<24x128xf32>
    %c95 = arith.constant 95 : index
    %611 = memref.load %arg4[%c95] : memref<288xf32, #tpu.memory_space<smem>>
    %612 = vector.broadcast %611 : f32 to vector<24x128xf32>
    %613 = arith.mulf %612, %208 : vector<24x128xf32>
    %614 = arith.addf %610, %613 : vector<24x128xf32>
    %c96 = arith.constant 96 : index
    %615 = memref.load %arg4[%c96] : memref<288xf32, #tpu.memory_space<smem>>
    %616 = vector.broadcast %615 : f32 to vector<24x128xf32>
    %617 = arith.mulf %616, %210 : vector<24x128xf32>
    %618 = arith.addf %614, %617 : vector<24x128xf32>
    %c97 = arith.constant 97 : index
    %619 = memref.load %arg4[%c97] : memref<288xf32, #tpu.memory_space<smem>>
    %620 = vector.broadcast %619 : f32 to vector<24x128xf32>
    %621 = arith.mulf %620, %209 : vector<24x128xf32>
    %622 = arith.addf %618, %621 : vector<24x128xf32>
    %c98 = arith.constant 98 : index
    %623 = memref.load %arg4[%c98] : memref<288xf32, #tpu.memory_space<smem>>
    %624 = vector.broadcast %623 : f32 to vector<24x128xf32>
    %625 = arith.mulf %624, %211 : vector<24x128xf32>
    %626 = arith.addf %622, %625 : vector<24x128xf32>
    %c99 = arith.constant 99 : index
    %627 = memref.load %arg4[%c99] : memref<288xf32, #tpu.memory_space<smem>>
    %628 = vector.broadcast %627 : f32 to vector<24x128xf32>
    %629 = arith.mulf %628, %213 : vector<24x128xf32>
    %630 = arith.addf %626, %629 : vector<24x128xf32>
    %c100 = arith.constant 100 : index
    %631 = memref.load %arg4[%c100] : memref<288xf32, #tpu.memory_space<smem>>
    %632 = vector.broadcast %631 : f32 to vector<24x128xf32>
    %633 = arith.mulf %632, %212 : vector<24x128xf32>
    %634 = arith.addf %630, %633 : vector<24x128xf32>
    %c101 = arith.constant 101 : index
    %635 = memref.load %arg4[%c101] : memref<288xf32, #tpu.memory_space<smem>>
    %636 = vector.broadcast %635 : f32 to vector<24x128xf32>
    %637 = arith.mulf %636, %214 : vector<24x128xf32>
    %638 = arith.addf %634, %637 : vector<24x128xf32>
    %c102 = arith.constant 102 : index
    %639 = memref.load %arg4[%c102] : memref<288xf32, #tpu.memory_space<smem>>
    %640 = vector.broadcast %639 : f32 to vector<24x128xf32>
    %641 = arith.mulf %640, %215 : vector<24x128xf32>
    %642 = arith.addf %638, %641 : vector<24x128xf32>
    %c103 = arith.constant 103 : index
    %643 = memref.load %arg4[%c103] : memref<288xf32, #tpu.memory_space<smem>>
    %644 = vector.broadcast %643 : f32 to vector<24x128xf32>
    %645 = arith.mulf %644, %187 : vector<24x128xf32>
    %646 = arith.addf %642, %645 : vector<24x128xf32>
    %c104 = arith.constant 104 : index
    %647 = memref.load %arg4[%c104] : memref<288xf32, #tpu.memory_space<smem>>
    %648 = vector.broadcast %647 : f32 to vector<24x128xf32>
    %649 = arith.mulf %648, %216 : vector<24x128xf32>
    %650 = arith.addf %646, %649 : vector<24x128xf32>
    %c105 = arith.constant 105 : index
    %651 = memref.load %arg4[%c105] : memref<288xf32, #tpu.memory_space<smem>>
    %652 = vector.broadcast %651 : f32 to vector<24x128xf32>
    %653 = arith.mulf %652, %218 : vector<24x128xf32>
    %654 = arith.addf %650, %653 : vector<24x128xf32>
    %c106 = arith.constant 106 : index
    %655 = memref.load %arg4[%c106] : memref<288xf32, #tpu.memory_space<smem>>
    %656 = vector.broadcast %655 : f32 to vector<24x128xf32>
    %657 = arith.mulf %656, %217 : vector<24x128xf32>
    %658 = arith.addf %654, %657 : vector<24x128xf32>
    %c107 = arith.constant 107 : index
    %659 = memref.load %arg4[%c107] : memref<288xf32, #tpu.memory_space<smem>>
    %660 = vector.broadcast %659 : f32 to vector<24x128xf32>
    %661 = arith.mulf %660, %219 : vector<24x128xf32>
    %662 = arith.addf %658, %661 : vector<24x128xf32>
    %c2_93 = arith.constant 2 : index
    %663 = memref.load %arg5[%c2_93] : memref<8xf32, #tpu.memory_space<smem>>
    %664 = vector.broadcast %663 : f32 to vector<24x128xf32>
    %665 = arith.addf %662, %664 : vector<24x128xf32>
    %666 = vector.extract_strided_slice %665 {offsets = [0, 0], sizes = [16, 128], strides = [1, 1]} : vector<24x128xf32> to vector<16x128xf32>
    %c2_94 = arith.constant 2 : index
    %c0_95 = arith.constant 0 : index
    %c0_96 = arith.constant 0 : index
    %667 = vector.load %arg6[%c2_94, %c0_95, %c0_96] : memref<8x16x128xf32, #tpu.memory_space<vmem>>, vector<1x16x128xf32>
    %668 = vector.shape_cast %667 : vector<1x16x128xf32> to vector<16x128xf32>
    %669 = vector.shape_cast %666 : vector<16x128xf32> to vector<1x16x128xf32>
    tpu.vector_store %arg6[%c2_94, %c0_95, %c0_96], %669 {strides = array<i32>} : memref<8x16x128xf32, #tpu.memory_space<vmem>>, vector<1x16x128xf32>,
    %c108 = arith.constant 108 : index
    %670 = memref.load %arg4[%c108] : memref<288xf32, #tpu.memory_space<smem>>
    %671 = vector.broadcast %670 : f32 to vector<24x128xf32>
    %672 = arith.mulf %671, %189 : vector<24x128xf32>
    %c109 = arith.constant 109 : index
    %673 = memref.load %arg4[%c109] : memref<288xf32, #tpu.memory_space<smem>>
    %674 = vector.broadcast %673 : f32 to vector<24x128xf32>
    %675 = arith.mulf %674, %188 : vector<24x128xf32>
    %676 = arith.addf %672, %675 : vector<24x128xf32>
    %c110 = arith.constant 110 : index
    %677 = memref.load %arg4[%c110] : memref<288xf32, #tpu.memory_space<smem>>
    %678 = vector.broadcast %677 : f32 to vector<24x128xf32>
    %679 = arith.mulf %678, %190 : vector<24x128xf32>
    %680 = arith.addf %676, %679 : vector<24x128xf32>
    %c111 = arith.constant 111 : index
    %681 = memref.load %arg4[%c111] : memref<288xf32, #tpu.memory_space<smem>>
    %682 = vector.broadcast %681 : f32 to vector<24x128xf32>
    %683 = arith.mulf %682, %191 : vector<24x128xf32>
    %684 = arith.addf %680, %683 : vector<24x128xf32>
    %c112 = arith.constant 112 : index
    %685 = memref.load %arg4[%c112] : memref<288xf32, #tpu.memory_space<smem>>
    %686 = vector.broadcast %685 : f32 to vector<24x128xf32>
    %687 = arith.mulf %686, %67 : vector<24x128xf32>
    %688 = arith.addf %684, %687 : vector<24x128xf32>
    %c113 = arith.constant 113 : index
    %689 = memref.load %arg4[%c113] : memref<288xf32, #tpu.memory_space<smem>>
    %690 = vector.broadcast %689 : f32 to vector<24x128xf32>
    %691 = arith.mulf %690, %192 : vector<24x128xf32>
    %692 = arith.addf %688, %691 : vector<24x128xf32>
    %c114 = arith.constant 114 : index
    %693 = memref.load %arg4[%c114] : memref<288xf32, #tpu.memory_space<smem>>
    %694 = vector.broadcast %693 : f32 to vector<24x128xf32>
    %695 = arith.mulf %694, %194 : vector<24x128xf32>
    %696 = arith.addf %692, %695 : vector<24x128xf32>
    %c115 = arith.constant 115 : index
    %697 = memref.load %arg4[%c115] : memref<288xf32, #tpu.memory_space<smem>>
    %698 = vector.broadcast %697 : f32 to vector<24x128xf32>
    %699 = arith.mulf %698, %193 : vector<24x128xf32>
    %700 = arith.addf %696, %699 : vector<24x128xf32>
    %c116 = arith.constant 116 : index
    %701 = memref.load %arg4[%c116] : memref<288xf32, #tpu.memory_space<smem>>
    %702 = vector.broadcast %701 : f32 to vector<24x128xf32>
    %703 = arith.mulf %702, %195 : vector<24x128xf32>
    %704 = arith.addf %700, %703 : vector<24x128xf32>
    %c117 = arith.constant 117 : index
    %705 = memref.load %arg4[%c117] : memref<288xf32, #tpu.memory_space<smem>>
    %706 = vector.broadcast %705 : f32 to vector<24x128xf32>
    %707 = arith.mulf %706, %197 : vector<24x128xf32>
    %708 = arith.addf %704, %707 : vector<24x128xf32>
    %c118 = arith.constant 118 : index
    %709 = memref.load %arg4[%c118] : memref<288xf32, #tpu.memory_space<smem>>
    %710 = vector.broadcast %709 : f32 to vector<24x128xf32>
    %711 = arith.mulf %710, %196 : vector<24x128xf32>
    %712 = arith.addf %708, %711 : vector<24x128xf32>
    %c119 = arith.constant 119 : index
    %713 = memref.load %arg4[%c119] : memref<288xf32, #tpu.memory_space<smem>>
    %714 = vector.broadcast %713 : f32 to vector<24x128xf32>
    %715 = arith.mulf %714, %198 : vector<24x128xf32>
    %716 = arith.addf %712, %715 : vector<24x128xf32>
    %c120 = arith.constant 120 : index
    %717 = memref.load %arg4[%c120] : memref<288xf32, #tpu.memory_space<smem>>
    %718 = vector.broadcast %717 : f32 to vector<24x128xf32>
    %719 = arith.mulf %718, %199 : vector<24x128xf32>
    %720 = arith.addf %716, %719 : vector<24x128xf32>
    %c121 = arith.constant 121 : index
    %721 = memref.load %arg4[%c121] : memref<288xf32, #tpu.memory_space<smem>>
    %722 = vector.broadcast %721 : f32 to vector<24x128xf32>
    %723 = arith.mulf %722, %107 : vector<24x128xf32>
    %724 = arith.addf %720, %723 : vector<24x128xf32>
    %c122 = arith.constant 122 : index
    %725 = memref.load %arg4[%c122] : memref<288xf32, #tpu.memory_space<smem>>
    %726 = vector.broadcast %725 : f32 to vector<24x128xf32>
    %727 = arith.mulf %726, %200 : vector<24x128xf32>
    %728 = arith.addf %724, %727 : vector<24x128xf32>
    %c123 = arith.constant 123 : index
    %729 = memref.load %arg4[%c123] : memref<288xf32, #tpu.memory_space<smem>>
    %730 = vector.broadcast %729 : f32 to vector<24x128xf32>
    %731 = arith.mulf %730, %202 : vector<24x128xf32>
    %732 = arith.addf %728, %731 : vector<24x128xf32>
    %c124 = arith.constant 124 : index
    %733 = memref.load %arg4[%c124] : memref<288xf32, #tpu.memory_space<smem>>
    %734 = vector.broadcast %733 : f32 to vector<24x128xf32>
    %735 = arith.mulf %734, %201 : vector<24x128xf32>
    %736 = arith.addf %732, %735 : vector<24x128xf32>
    %c125 = arith.constant 125 : index
    %737 = memref.load %arg4[%c125] : memref<288xf32, #tpu.memory_space<smem>>
    %738 = vector.broadcast %737 : f32 to vector<24x128xf32>
    %739 = arith.mulf %738, %203 : vector<24x128xf32>
    %740 = arith.addf %736, %739 : vector<24x128xf32>
    %c126 = arith.constant 126 : index
    %741 = memref.load %arg4[%c126] : memref<288xf32, #tpu.memory_space<smem>>
    %742 = vector.broadcast %741 : f32 to vector<24x128xf32>
    %743 = arith.mulf %742, %205 : vector<24x128xf32>
    %744 = arith.addf %740, %743 : vector<24x128xf32>
    %c127 = arith.constant 127 : index
    %745 = memref.load %arg4[%c127] : memref<288xf32, #tpu.memory_space<smem>>
    %746 = vector.broadcast %745 : f32 to vector<24x128xf32>
    %747 = arith.mulf %746, %204 : vector<24x128xf32>
    %748 = arith.addf %744, %747 : vector<24x128xf32>
    %c128 = arith.constant 128 : index
    %749 = memref.load %arg4[%c128] : memref<288xf32, #tpu.memory_space<smem>>
    %750 = vector.broadcast %749 : f32 to vector<24x128xf32>
    %751 = arith.mulf %750, %206 : vector<24x128xf32>
    %752 = arith.addf %748, %751 : vector<24x128xf32>
    %c129 = arith.constant 129 : index
    %753 = memref.load %arg4[%c129] : memref<288xf32, #tpu.memory_space<smem>>
    %754 = vector.broadcast %753 : f32 to vector<24x128xf32>
    %755 = arith.mulf %754, %207 : vector<24x128xf32>
    %756 = arith.addf %752, %755 : vector<24x128xf32>
    %c130 = arith.constant 130 : index
    %757 = memref.load %arg4[%c130] : memref<288xf32, #tpu.memory_space<smem>>
    %758 = vector.broadcast %757 : f32 to vector<24x128xf32>
    %759 = arith.mulf %758, %147 : vector<24x128xf32>
    %760 = arith.addf %756, %759 : vector<24x128xf32>
    %c131 = arith.constant 131 : index
    %761 = memref.load %arg4[%c131] : memref<288xf32, #tpu.memory_space<smem>>
    %762 = vector.broadcast %761 : f32 to vector<24x128xf32>
    %763 = arith.mulf %762, %208 : vector<24x128xf32>
    %764 = arith.addf %760, %763 : vector<24x128xf32>
    %c132 = arith.constant 132 : index
    %765 = memref.load %arg4[%c132] : memref<288xf32, #tpu.memory_space<smem>>
    %766 = vector.broadcast %765 : f32 to vector<24x128xf32>
    %767 = arith.mulf %766, %210 : vector<24x128xf32>
    %768 = arith.addf %764, %767 : vector<24x128xf32>
    %c133 = arith.constant 133 : index
    %769 = memref.load %arg4[%c133] : memref<288xf32, #tpu.memory_space<smem>>
    %770 = vector.broadcast %769 : f32 to vector<24x128xf32>
    %771 = arith.mulf %770, %209 : vector<24x128xf32>
    %772 = arith.addf %768, %771 : vector<24x128xf32>
    %c134 = arith.constant 134 : index
    %773 = memref.load %arg4[%c134] : memref<288xf32, #tpu.memory_space<smem>>
    %774 = vector.broadcast %773 : f32 to vector<24x128xf32>
    %775 = arith.mulf %774, %211 : vector<24x128xf32>
    %776 = arith.addf %772, %775 : vector<24x128xf32>
    %c135 = arith.constant 135 : index
    %777 = memref.load %arg4[%c135] : memref<288xf32, #tpu.memory_space<smem>>
    %778 = vector.broadcast %777 : f32 to vector<24x128xf32>
    %779 = arith.mulf %778, %213 : vector<24x128xf32>
    %780 = arith.addf %776, %779 : vector<24x128xf32>
    %c136 = arith.constant 136 : index
    %781 = memref.load %arg4[%c136] : memref<288xf32, #tpu.memory_space<smem>>
    %782 = vector.broadcast %781 : f32 to vector<24x128xf32>
    %783 = arith.mulf %782, %212 : vector<24x128xf32>
    %784 = arith.addf %780, %783 : vector<24x128xf32>
    %c137 = arith.constant 137 : index
    %785 = memref.load %arg4[%c137] : memref<288xf32, #tpu.memory_space<smem>>
    %786 = vector.broadcast %785 : f32 to vector<24x128xf32>
    %787 = arith.mulf %786, %214 : vector<24x128xf32>
    %788 = arith.addf %784, %787 : vector<24x128xf32>
    %c138 = arith.constant 138 : index
    %789 = memref.load %arg4[%c138] : memref<288xf32, #tpu.memory_space<smem>>
    %790 = vector.broadcast %789 : f32 to vector<24x128xf32>
    %791 = arith.mulf %790, %215 : vector<24x128xf32>
    %792 = arith.addf %788, %791 : vector<24x128xf32>
    %c139 = arith.constant 139 : index
    %793 = memref.load %arg4[%c139] : memref<288xf32, #tpu.memory_space<smem>>
    %794 = vector.broadcast %793 : f32 to vector<24x128xf32>
    %795 = arith.mulf %794, %187 : vector<24x128xf32>
    %796 = arith.addf %792, %795 : vector<24x128xf32>
    %c140 = arith.constant 140 : index
    %797 = memref.load %arg4[%c140] : memref<288xf32, #tpu.memory_space<smem>>
    %798 = vector.broadcast %797 : f32 to vector<24x128xf32>
    %799 = arith.mulf %798, %216 : vector<24x128xf32>
    %800 = arith.addf %796, %799 : vector<24x128xf32>
    %c141 = arith.constant 141 : index
    %801 = memref.load %arg4[%c141] : memref<288xf32, #tpu.memory_space<smem>>
    %802 = vector.broadcast %801 : f32 to vector<24x128xf32>
    %803 = arith.mulf %802, %218 : vector<24x128xf32>
    %804 = arith.addf %800, %803 : vector<24x128xf32>
    %c142 = arith.constant 142 : index
    %805 = memref.load %arg4[%c142] : memref<288xf32, #tpu.memory_space<smem>>
    %806 = vector.broadcast %805 : f32 to vector<24x128xf32>
    %807 = arith.mulf %806, %217 : vector<24x128xf32>
    %808 = arith.addf %804, %807 : vector<24x128xf32>
    %c143 = arith.constant 143 : index
    %809 = memref.load %arg4[%c143] : memref<288xf32, #tpu.memory_space<smem>>
    %810 = vector.broadcast %809 : f32 to vector<24x128xf32>
    %811 = arith.mulf %810, %219 : vector<24x128xf32>
    %812 = arith.addf %808, %811 : vector<24x128xf32>
    %c3_97 = arith.constant 3 : index
    %813 = memref.load %arg5[%c3_97] : memref<8xf32, #tpu.memory_space<smem>>
    %814 = vector.broadcast %813 : f32 to vector<24x128xf32>
    %815 = arith.addf %812, %814 : vector<24x128xf32>
    %816 = vector.extract_strided_slice %815 {offsets = [0, 0], sizes = [16, 128], strides = [1, 1]} : vector<24x128xf32> to vector<16x128xf32>
    %c3_98 = arith.constant 3 : index
    %c0_99 = arith.constant 0 : index
    %c0_100 = arith.constant 0 : index
    %817 = vector.load %arg6[%c3_98, %c0_99, %c0_100] : memref<8x16x128xf32, #tpu.memory_space<vmem>>, vector<1x16x128xf32>
    %818 = vector.shape_cast %817 : vector<1x16x128xf32> to vector<16x128xf32>
    %819 = vector.shape_cast %816 : vector<16x128xf32> to vector<1x16x128xf32>
    tpu.vector_store %arg6[%c3_98, %c0_99, %c0_100], %819 {strides = array<i32>} : memref<8x16x128xf32, #tpu.memory_space<vmem>>, vector<1x16x128xf32>,
    %c144 = arith.constant 144 : index
    %820 = memref.load %arg4[%c144] : memref<288xf32, #tpu.memory_space<smem>>
    %821 = vector.broadcast %820 : f32 to vector<24x128xf32>
    %822 = arith.mulf %821, %189 : vector<24x128xf32>
    %c145 = arith.constant 145 : index
    %823 = memref.load %arg4[%c145] : memref<288xf32, #tpu.memory_space<smem>>
    %824 = vector.broadcast %823 : f32 to vector<24x128xf32>
    %825 = arith.mulf %824, %188 : vector<24x128xf32>
    %826 = arith.addf %822, %825 : vector<24x128xf32>
    %c146 = arith.constant 146 : index
    %827 = memref.load %arg4[%c146] : memref<288xf32, #tpu.memory_space<smem>>
    %828 = vector.broadcast %827 : f32 to vector<24x128xf32>
    %829 = arith.mulf %828, %190 : vector<24x128xf32>
    %830 = arith.addf %826, %829 : vector<24x128xf32>
    %c147 = arith.constant 147 : index
    %831 = memref.load %arg4[%c147] : memref<288xf32, #tpu.memory_space<smem>>
    %832 = vector.broadcast %831 : f32 to vector<24x128xf32>
    %833 = arith.mulf %832, %191 : vector<24x128xf32>
    %834 = arith.addf %830, %833 : vector<24x128xf32>
    %c148 = arith.constant 148 : index
    %835 = memref.load %arg4[%c148] : memref<288xf32, #tpu.memory_space<smem>>
    %836 = vector.broadcast %835 : f32 to vector<24x128xf32>
    %837 = arith.mulf %836, %67 : vector<24x128xf32>
    %838 = arith.addf %834, %837 : vector<24x128xf32>
    %c149 = arith.constant 149 : index
    %839 = memref.load %arg4[%c149] : memref<288xf32, #tpu.memory_space<smem>>
    %840 = vector.broadcast %839 : f32 to vector<24x128xf32>
    %841 = arith.mulf %840, %192 : vector<24x128xf32>
    %842 = arith.addf %838, %841 : vector<24x128xf32>
    %c150 = arith.constant 150 : index
    %843 = memref.load %arg4[%c150] : memref<288xf32, #tpu.memory_space<smem>>
    %844 = vector.broadcast %843 : f32 to vector<24x128xf32>
    %845 = arith.mulf %844, %194 : vector<24x128xf32>
    %846 = arith.addf %842, %845 : vector<24x128xf32>
    %c151 = arith.constant 151 : index
    %847 = memref.load %arg4[%c151] : memref<288xf32, #tpu.memory_space<smem>>
    %848 = vector.broadcast %847 : f32 to vector<24x128xf32>
    %849 = arith.mulf %848, %193 : vector<24x128xf32>
    %850 = arith.addf %846, %849 : vector<24x128xf32>
    %c152 = arith.constant 152 : index
    %851 = memref.load %arg4[%c152] : memref<288xf32, #tpu.memory_space<smem>>
    %852 = vector.broadcast %851 : f32 to vector<24x128xf32>
    %853 = arith.mulf %852, %195 : vector<24x128xf32>
    %854 = arith.addf %850, %853 : vector<24x128xf32>
    %c153 = arith.constant 153 : index
    %855 = memref.load %arg4[%c153] : memref<288xf32, #tpu.memory_space<smem>>
    %856 = vector.broadcast %855 : f32 to vector<24x128xf32>
    %857 = arith.mulf %856, %197 : vector<24x128xf32>
    %858 = arith.addf %854, %857 : vector<24x128xf32>
    %c154 = arith.constant 154 : index
    %859 = memref.load %arg4[%c154] : memref<288xf32, #tpu.memory_space<smem>>
    %860 = vector.broadcast %859 : f32 to vector<24x128xf32>
    %861 = arith.mulf %860, %196 : vector<24x128xf32>
    %862 = arith.addf %858, %861 : vector<24x128xf32>
    %c155 = arith.constant 155 : index
    %863 = memref.load %arg4[%c155] : memref<288xf32, #tpu.memory_space<smem>>
    %864 = vector.broadcast %863 : f32 to vector<24x128xf32>
    %865 = arith.mulf %864, %198 : vector<24x128xf32>
    %866 = arith.addf %862, %865 : vector<24x128xf32>
    %c156 = arith.constant 156 : index
    %867 = memref.load %arg4[%c156] : memref<288xf32, #tpu.memory_space<smem>>
    %868 = vector.broadcast %867 : f32 to vector<24x128xf32>
    %869 = arith.mulf %868, %199 : vector<24x128xf32>
    %870 = arith.addf %866, %869 : vector<24x128xf32>
    %c157 = arith.constant 157 : index
    %871 = memref.load %arg4[%c157] : memref<288xf32, #tpu.memory_space<smem>>
    %872 = vector.broadcast %871 : f32 to vector<24x128xf32>
    %873 = arith.mulf %872, %107 : vector<24x128xf32>
    %874 = arith.addf %870, %873 : vector<24x128xf32>
    %c158 = arith.constant 158 : index
    %875 = memref.load %arg4[%c158] : memref<288xf32, #tpu.memory_space<smem>>
    %876 = vector.broadcast %875 : f32 to vector<24x128xf32>
    %877 = arith.mulf %876, %200 : vector<24x128xf32>
    %878 = arith.addf %874, %877 : vector<24x128xf32>
    %c159 = arith.constant 159 : index
    %879 = memref.load %arg4[%c159] : memref<288xf32, #tpu.memory_space<smem>>
    %880 = vector.broadcast %879 : f32 to vector<24x128xf32>
    %881 = arith.mulf %880, %202 : vector<24x128xf32>
    %882 = arith.addf %878, %881 : vector<24x128xf32>
    %c160 = arith.constant 160 : index
    %883 = memref.load %arg4[%c160] : memref<288xf32, #tpu.memory_space<smem>>
    %884 = vector.broadcast %883 : f32 to vector<24x128xf32>
    %885 = arith.mulf %884, %201 : vector<24x128xf32>
    %886 = arith.addf %882, %885 : vector<24x128xf32>
    %c161 = arith.constant 161 : index
    %887 = memref.load %arg4[%c161] : memref<288xf32, #tpu.memory_space<smem>>
    %888 = vector.broadcast %887 : f32 to vector<24x128xf32>
    %889 = arith.mulf %888, %203 : vector<24x128xf32>
    %890 = arith.addf %886, %889 : vector<24x128xf32>
    %c162 = arith.constant 162 : index
    %891 = memref.load %arg4[%c162] : memref<288xf32, #tpu.memory_space<smem>>
    %892 = vector.broadcast %891 : f32 to vector<24x128xf32>
    %893 = arith.mulf %892, %205 : vector<24x128xf32>
    %894 = arith.addf %890, %893 : vector<24x128xf32>
    %c163 = arith.constant 163 : index
    %895 = memref.load %arg4[%c163] : memref<288xf32, #tpu.memory_space<smem>>
    %896 = vector.broadcast %895 : f32 to vector<24x128xf32>
    %897 = arith.mulf %896, %204 : vector<24x128xf32>
    %898 = arith.addf %894, %897 : vector<24x128xf32>
    %c164 = arith.constant 164 : index
    %899 = memref.load %arg4[%c164] : memref<288xf32, #tpu.memory_space<smem>>
    %900 = vector.broadcast %899 : f32 to vector<24x128xf32>
    %901 = arith.mulf %900, %206 : vector<24x128xf32>
    %902 = arith.addf %898, %901 : vector<24x128xf32>
    %c165 = arith.constant 165 : index
    %903 = memref.load %arg4[%c165] : memref<288xf32, #tpu.memory_space<smem>>
    %904 = vector.broadcast %903 : f32 to vector<24x128xf32>
    %905 = arith.mulf %904, %207 : vector<24x128xf32>
    %906 = arith.addf %902, %905 : vector<24x128xf32>
    %c166 = arith.constant 166 : index
    %907 = memref.load %arg4[%c166] : memref<288xf32, #tpu.memory_space<smem>>
    %908 = vector.broadcast %907 : f32 to vector<24x128xf32>
    %909 = arith.mulf %908, %147 : vector<24x128xf32>
    %910 = arith.addf %906, %909 : vector<24x128xf32>
    %c167 = arith.constant 167 : index
    %911 = memref.load %arg4[%c167] : memref<288xf32, #tpu.memory_space<smem>>
    %912 = vector.broadcast %911 : f32 to vector<24x128xf32>
    %913 = arith.mulf %912, %208 : vector<24x128xf32>
    %914 = arith.addf %910, %913 : vector<24x128xf32>
    %c168 = arith.constant 168 : index
    %915 = memref.load %arg4[%c168] : memref<288xf32, #tpu.memory_space<smem>>
    %916 = vector.broadcast %915 : f32 to vector<24x128xf32>
    %917 = arith.mulf %916, %210 : vector<24x128xf32>
    %918 = arith.addf %914, %917 : vector<24x128xf32>
    %c169 = arith.constant 169 : index
    %919 = memref.load %arg4[%c169] : memref<288xf32, #tpu.memory_space<smem>>
    %920 = vector.broadcast %919 : f32 to vector<24x128xf32>
    %921 = arith.mulf %920, %209 : vector<24x128xf32>
    %922 = arith.addf %918, %921 : vector<24x128xf32>
    %c170 = arith.constant 170 : index
    %923 = memref.load %arg4[%c170] : memref<288xf32, #tpu.memory_space<smem>>
    %924 = vector.broadcast %923 : f32 to vector<24x128xf32>
    %925 = arith.mulf %924, %211 : vector<24x128xf32>
    %926 = arith.addf %922, %925 : vector<24x128xf32>
    %c171 = arith.constant 171 : index
    %927 = memref.load %arg4[%c171] : memref<288xf32, #tpu.memory_space<smem>>
    %928 = vector.broadcast %927 : f32 to vector<24x128xf32>
    %929 = arith.mulf %928, %213 : vector<24x128xf32>
    %930 = arith.addf %926, %929 : vector<24x128xf32>
    %c172 = arith.constant 172 : index
    %931 = memref.load %arg4[%c172] : memref<288xf32, #tpu.memory_space<smem>>
    %932 = vector.broadcast %931 : f32 to vector<24x128xf32>
    %933 = arith.mulf %932, %212 : vector<24x128xf32>
    %934 = arith.addf %930, %933 : vector<24x128xf32>
    %c173 = arith.constant 173 : index
    %935 = memref.load %arg4[%c173] : memref<288xf32, #tpu.memory_space<smem>>
    %936 = vector.broadcast %935 : f32 to vector<24x128xf32>
    %937 = arith.mulf %936, %214 : vector<24x128xf32>
    %938 = arith.addf %934, %937 : vector<24x128xf32>
    %c174 = arith.constant 174 : index
    %939 = memref.load %arg4[%c174] : memref<288xf32, #tpu.memory_space<smem>>
    %940 = vector.broadcast %939 : f32 to vector<24x128xf32>
    %941 = arith.mulf %940, %215 : vector<24x128xf32>
    %942 = arith.addf %938, %941 : vector<24x128xf32>
    %c175 = arith.constant 175 : index
    %943 = memref.load %arg4[%c175] : memref<288xf32, #tpu.memory_space<smem>>
    %944 = vector.broadcast %943 : f32 to vector<24x128xf32>
    %945 = arith.mulf %944, %187 : vector<24x128xf32>
    %946 = arith.addf %942, %945 : vector<24x128xf32>
    %c176 = arith.constant 176 : index
    %947 = memref.load %arg4[%c176] : memref<288xf32, #tpu.memory_space<smem>>
    %948 = vector.broadcast %947 : f32 to vector<24x128xf32>
    %949 = arith.mulf %948, %216 : vector<24x128xf32>
    %950 = arith.addf %946, %949 : vector<24x128xf32>
    %c177 = arith.constant 177 : index
    %951 = memref.load %arg4[%c177] : memref<288xf32, #tpu.memory_space<smem>>
    %952 = vector.broadcast %951 : f32 to vector<24x128xf32>
    %953 = arith.mulf %952, %218 : vector<24x128xf32>
    %954 = arith.addf %950, %953 : vector<24x128xf32>
    %c178 = arith.constant 178 : index
    %955 = memref.load %arg4[%c178] : memref<288xf32, #tpu.memory_space<smem>>
    %956 = vector.broadcast %955 : f32 to vector<24x128xf32>
    %957 = arith.mulf %956, %217 : vector<24x128xf32>
    %958 = arith.addf %954, %957 : vector<24x128xf32>
    %c179 = arith.constant 179 : index
    %959 = memref.load %arg4[%c179] : memref<288xf32, #tpu.memory_space<smem>>
    %960 = vector.broadcast %959 : f32 to vector<24x128xf32>
    %961 = arith.mulf %960, %219 : vector<24x128xf32>
    %962 = arith.addf %958, %961 : vector<24x128xf32>
    %c4_101 = arith.constant 4 : index
    %963 = memref.load %arg5[%c4_101] : memref<8xf32, #tpu.memory_space<smem>>
    %964 = vector.broadcast %963 : f32 to vector<24x128xf32>
    %965 = arith.addf %962, %964 : vector<24x128xf32>
    %966 = vector.extract_strided_slice %965 {offsets = [0, 0], sizes = [16, 128], strides = [1, 1]} : vector<24x128xf32> to vector<16x128xf32>
    %c4_102 = arith.constant 4 : index
    %c0_103 = arith.constant 0 : index
    %c0_104 = arith.constant 0 : index
    %967 = vector.load %arg6[%c4_102, %c0_103, %c0_104] : memref<8x16x128xf32, #tpu.memory_space<vmem>>, vector<1x16x128xf32>
    %968 = vector.shape_cast %967 : vector<1x16x128xf32> to vector<16x128xf32>
    %969 = vector.shape_cast %966 : vector<16x128xf32> to vector<1x16x128xf32>
    tpu.vector_store %arg6[%c4_102, %c0_103, %c0_104], %969 {strides = array<i32>} : memref<8x16x128xf32, #tpu.memory_space<vmem>>, vector<1x16x128xf32>,
    %c180 = arith.constant 180 : index
    %970 = memref.load %arg4[%c180] : memref<288xf32, #tpu.memory_space<smem>>
    %971 = vector.broadcast %970 : f32 to vector<24x128xf32>
    %972 = arith.mulf %971, %189 : vector<24x128xf32>
    %c181 = arith.constant 181 : index
    %973 = memref.load %arg4[%c181] : memref<288xf32, #tpu.memory_space<smem>>
    %974 = vector.broadcast %973 : f32 to vector<24x128xf32>
    %975 = arith.mulf %974, %188 : vector<24x128xf32>
    %976 = arith.addf %972, %975 : vector<24x128xf32>
    %c182 = arith.constant 182 : index
    %977 = memref.load %arg4[%c182] : memref<288xf32, #tpu.memory_space<smem>>
    %978 = vector.broadcast %977 : f32 to vector<24x128xf32>
    %979 = arith.mulf %978, %190 : vector<24x128xf32>
    %980 = arith.addf %976, %979 : vector<24x128xf32>
    %c183 = arith.constant 183 : index
    %981 = memref.load %arg4[%c183] : memref<288xf32, #tpu.memory_space<smem>>
    %982 = vector.broadcast %981 : f32 to vector<24x128xf32>
    %983 = arith.mulf %982, %191 : vector<24x128xf32>
    %984 = arith.addf %980, %983 : vector<24x128xf32>
    %c184 = arith.constant 184 : index
    %985 = memref.load %arg4[%c184] : memref<288xf32, #tpu.memory_space<smem>>
    %986 = vector.broadcast %985 : f32 to vector<24x128xf32>
    %987 = arith.mulf %986, %67 : vector<24x128xf32>
    %988 = arith.addf %984, %987 : vector<24x128xf32>
    %c185 = arith.constant 185 : index
    %989 = memref.load %arg4[%c185] : memref<288xf32, #tpu.memory_space<smem>>
    %990 = vector.broadcast %989 : f32 to vector<24x128xf32>
    %991 = arith.mulf %990, %192 : vector<24x128xf32>
    %992 = arith.addf %988, %991 : vector<24x128xf32>
    %c186 = arith.constant 186 : index
    %993 = memref.load %arg4[%c186] : memref<288xf32, #tpu.memory_space<smem>>
    %994 = vector.broadcast %993 : f32 to vector<24x128xf32>
    %995 = arith.mulf %994, %194 : vector<24x128xf32>
    %996 = arith.addf %992, %995 : vector<24x128xf32>
    %c187 = arith.constant 187 : index
    %997 = memref.load %arg4[%c187] : memref<288xf32, #tpu.memory_space<smem>>
    %998 = vector.broadcast %997 : f32 to vector<24x128xf32>
    %999 = arith.mulf %998, %193 : vector<24x128xf32>
    %1000 = arith.addf %996, %999 : vector<24x128xf32>
    %c188 = arith.constant 188 : index
    %1001 = memref.load %arg4[%c188] : memref<288xf32, #tpu.memory_space<smem>>
    %1002 = vector.broadcast %1001 : f32 to vector<24x128xf32>
    %1003 = arith.mulf %1002, %195 : vector<24x128xf32>
    %1004 = arith.addf %1000, %1003 : vector<24x128xf32>
    %c189 = arith.constant 189 : index
    %1005 = memref.load %arg4[%c189] : memref<288xf32, #tpu.memory_space<smem>>
    %1006 = vector.broadcast %1005 : f32 to vector<24x128xf32>
    %1007 = arith.mulf %1006, %197 : vector<24x128xf32>
    %1008 = arith.addf %1004, %1007 : vector<24x128xf32>
    %c190 = arith.constant 190 : index
    %1009 = memref.load %arg4[%c190] : memref<288xf32, #tpu.memory_space<smem>>
    %1010 = vector.broadcast %1009 : f32 to vector<24x128xf32>
    %1011 = arith.mulf %1010, %196 : vector<24x128xf32>
    %1012 = arith.addf %1008, %1011 : vector<24x128xf32>
    %c191 = arith.constant 191 : index
    %1013 = memref.load %arg4[%c191] : memref<288xf32, #tpu.memory_space<smem>>
    %1014 = vector.broadcast %1013 : f32 to vector<24x128xf32>
    %1015 = arith.mulf %1014, %198 : vector<24x128xf32>
    %1016 = arith.addf %1012, %1015 : vector<24x128xf32>
    %c192 = arith.constant 192 : index
    %1017 = memref.load %arg4[%c192] : memref<288xf32, #tpu.memory_space<smem>>
    %1018 = vector.broadcast %1017 : f32 to vector<24x128xf32>
    %1019 = arith.mulf %1018, %199 : vector<24x128xf32>
    %1020 = arith.addf %1016, %1019 : vector<24x128xf32>
    %c193 = arith.constant 193 : index
    %1021 = memref.load %arg4[%c193] : memref<288xf32, #tpu.memory_space<smem>>
    %1022 = vector.broadcast %1021 : f32 to vector<24x128xf32>
    %1023 = arith.mulf %1022, %107 : vector<24x128xf32>
    %1024 = arith.addf %1020, %1023 : vector<24x128xf32>
    %c194 = arith.constant 194 : index
    %1025 = memref.load %arg4[%c194] : memref<288xf32, #tpu.memory_space<smem>>
    %1026 = vector.broadcast %1025 : f32 to vector<24x128xf32>
    %1027 = arith.mulf %1026, %200 : vector<24x128xf32>
    %1028 = arith.addf %1024, %1027 : vector<24x128xf32>
    %c195 = arith.constant 195 : index
    %1029 = memref.load %arg4[%c195] : memref<288xf32, #tpu.memory_space<smem>>
    %1030 = vector.broadcast %1029 : f32 to vector<24x128xf32>
    %1031 = arith.mulf %1030, %202 : vector<24x128xf32>
    %1032 = arith.addf %1028, %1031 : vector<24x128xf32>
    %c196 = arith.constant 196 : index
    %1033 = memref.load %arg4[%c196] : memref<288xf32, #tpu.memory_space<smem>>
    %1034 = vector.broadcast %1033 : f32 to vector<24x128xf32>
    %1035 = arith.mulf %1034, %201 : vector<24x128xf32>
    %1036 = arith.addf %1032, %1035 : vector<24x128xf32>
    %c197 = arith.constant 197 : index
    %1037 = memref.load %arg4[%c197] : memref<288xf32, #tpu.memory_space<smem>>
    %1038 = vector.broadcast %1037 : f32 to vector<24x128xf32>
    %1039 = arith.mulf %1038, %203 : vector<24x128xf32>
    %1040 = arith.addf %1036, %1039 : vector<24x128xf32>
    %c198 = arith.constant 198 : index
    %1041 = memref.load %arg4[%c198] : memref<288xf32, #tpu.memory_space<smem>>
    %1042 = vector.broadcast %1041 : f32 to vector<24x128xf32>
    %1043 = arith.mulf %1042, %205 : vector<24x128xf32>
    %1044 = arith.addf %1040, %1043 : vector<24x128xf32>
    %c199 = arith.constant 199 : index
    %1045 = memref.load %arg4[%c199] : memref<288xf32, #tpu.memory_space<smem>>
    %1046 = vector.broadcast %1045 : f32 to vector<24x128xf32>
    %1047 = arith.mulf %1046, %204 : vector<24x128xf32>
    %1048 = arith.addf %1044, %1047 : vector<24x128xf32>
    %c200 = arith.constant 200 : index
    %1049 = memref.load %arg4[%c200] : memref<288xf32, #tpu.memory_space<smem>>
    %1050 = vector.broadcast %1049 : f32 to vector<24x128xf32>
    %1051 = arith.mulf %1050, %206 : vector<24x128xf32>
    %1052 = arith.addf %1048, %1051 : vector<24x128xf32>
    %c201 = arith.constant 201 : index
    %1053 = memref.load %arg4[%c201] : memref<288xf32, #tpu.memory_space<smem>>
    %1054 = vector.broadcast %1053 : f32 to vector<24x128xf32>
    %1055 = arith.mulf %1054, %207 : vector<24x128xf32>
    %1056 = arith.addf %1052, %1055 : vector<24x128xf32>
    %c202 = arith.constant 202 : index
    %1057 = memref.load %arg4[%c202] : memref<288xf32, #tpu.memory_space<smem>>
    %1058 = vector.broadcast %1057 : f32 to vector<24x128xf32>
    %1059 = arith.mulf %1058, %147 : vector<24x128xf32>
    %1060 = arith.addf %1056, %1059 : vector<24x128xf32>
    %c203 = arith.constant 203 : index
    %1061 = memref.load %arg4[%c203] : memref<288xf32, #tpu.memory_space<smem>>
    %1062 = vector.broadcast %1061 : f32 to vector<24x128xf32>
    %1063 = arith.mulf %1062, %208 : vector<24x128xf32>
    %1064 = arith.addf %1060, %1063 : vector<24x128xf32>
    %c204 = arith.constant 204 : index
    %1065 = memref.load %arg4[%c204] : memref<288xf32, #tpu.memory_space<smem>>
    %1066 = vector.broadcast %1065 : f32 to vector<24x128xf32>
    %1067 = arith.mulf %1066, %210 : vector<24x128xf32>
    %1068 = arith.addf %1064, %1067 : vector<24x128xf32>
    %c205 = arith.constant 205 : index
    %1069 = memref.load %arg4[%c205] : memref<288xf32, #tpu.memory_space<smem>>
    %1070 = vector.broadcast %1069 : f32 to vector<24x128xf32>
    %1071 = arith.mulf %1070, %209 : vector<24x128xf32>
    %1072 = arith.addf %1068, %1071 : vector<24x128xf32>
    %c206 = arith.constant 206 : index
    %1073 = memref.load %arg4[%c206] : memref<288xf32, #tpu.memory_space<smem>>
    %1074 = vector.broadcast %1073 : f32 to vector<24x128xf32>
    %1075 = arith.mulf %1074, %211 : vector<24x128xf32>
    %1076 = arith.addf %1072, %1075 : vector<24x128xf32>
    %c207 = arith.constant 207 : index
    %1077 = memref.load %arg4[%c207] : memref<288xf32, #tpu.memory_space<smem>>
    %1078 = vector.broadcast %1077 : f32 to vector<24x128xf32>
    %1079 = arith.mulf %1078, %213 : vector<24x128xf32>
    %1080 = arith.addf %1076, %1079 : vector<24x128xf32>
    %c208 = arith.constant 208 : index
    %1081 = memref.load %arg4[%c208] : memref<288xf32, #tpu.memory_space<smem>>
    %1082 = vector.broadcast %1081 : f32 to vector<24x128xf32>
    %1083 = arith.mulf %1082, %212 : vector<24x128xf32>
    %1084 = arith.addf %1080, %1083 : vector<24x128xf32>
    %c209 = arith.constant 209 : index
    %1085 = memref.load %arg4[%c209] : memref<288xf32, #tpu.memory_space<smem>>
    %1086 = vector.broadcast %1085 : f32 to vector<24x128xf32>
    %1087 = arith.mulf %1086, %214 : vector<24x128xf32>
    %1088 = arith.addf %1084, %1087 : vector<24x128xf32>
    %c210 = arith.constant 210 : index
    %1089 = memref.load %arg4[%c210] : memref<288xf32, #tpu.memory_space<smem>>
    %1090 = vector.broadcast %1089 : f32 to vector<24x128xf32>
    %1091 = arith.mulf %1090, %215 : vector<24x128xf32>
    %1092 = arith.addf %1088, %1091 : vector<24x128xf32>
    %c211 = arith.constant 211 : index
    %1093 = memref.load %arg4[%c211] : memref<288xf32, #tpu.memory_space<smem>>
    %1094 = vector.broadcast %1093 : f32 to vector<24x128xf32>
    %1095 = arith.mulf %1094, %187 : vector<24x128xf32>
    %1096 = arith.addf %1092, %1095 : vector<24x128xf32>
    %c212 = arith.constant 212 : index
    %1097 = memref.load %arg4[%c212] : memref<288xf32, #tpu.memory_space<smem>>
    %1098 = vector.broadcast %1097 : f32 to vector<24x128xf32>
    %1099 = arith.mulf %1098, %216 : vector<24x128xf32>
    %1100 = arith.addf %1096, %1099 : vector<24x128xf32>
    %c213 = arith.constant 213 : index
    %1101 = memref.load %arg4[%c213] : memref<288xf32, #tpu.memory_space<smem>>
    %1102 = vector.broadcast %1101 : f32 to vector<24x128xf32>
    %1103 = arith.mulf %1102, %218 : vector<24x128xf32>
    %1104 = arith.addf %1100, %1103 : vector<24x128xf32>
    %c214 = arith.constant 214 : index
    %1105 = memref.load %arg4[%c214] : memref<288xf32, #tpu.memory_space<smem>>
    %1106 = vector.broadcast %1105 : f32 to vector<24x128xf32>
    %1107 = arith.mulf %1106, %217 : vector<24x128xf32>
    %1108 = arith.addf %1104, %1107 : vector<24x128xf32>
    %c215 = arith.constant 215 : index
    %1109 = memref.load %arg4[%c215] : memref<288xf32, #tpu.memory_space<smem>>
    %1110 = vector.broadcast %1109 : f32 to vector<24x128xf32>
    %1111 = arith.mulf %1110, %219 : vector<24x128xf32>
    %1112 = arith.addf %1108, %1111 : vector<24x128xf32>
    %c5_105 = arith.constant 5 : index
    %1113 = memref.load %arg5[%c5_105] : memref<8xf32, #tpu.memory_space<smem>>
    %1114 = vector.broadcast %1113 : f32 to vector<24x128xf32>
    %1115 = arith.addf %1112, %1114 : vector<24x128xf32>
    %1116 = vector.extract_strided_slice %1115 {offsets = [0, 0], sizes = [16, 128], strides = [1, 1]} : vector<24x128xf32> to vector<16x128xf32>
    %c5_106 = arith.constant 5 : index
    %c0_107 = arith.constant 0 : index
    %c0_108 = arith.constant 0 : index
    %1117 = vector.load %arg6[%c5_106, %c0_107, %c0_108] : memref<8x16x128xf32, #tpu.memory_space<vmem>>, vector<1x16x128xf32>
    %1118 = vector.shape_cast %1117 : vector<1x16x128xf32> to vector<16x128xf32>
    %1119 = vector.shape_cast %1116 : vector<16x128xf32> to vector<1x16x128xf32>
    tpu.vector_store %arg6[%c5_106, %c0_107, %c0_108], %1119 {strides = array<i32>} : memref<8x16x128xf32, #tpu.memory_space<vmem>>, vector<1x16x128xf32>,
    %c216 = arith.constant 216 : index
    %1120 = memref.load %arg4[%c216] : memref<288xf32, #tpu.memory_space<smem>>
    %1121 = vector.broadcast %1120 : f32 to vector<24x128xf32>
    %1122 = arith.mulf %1121, %189 : vector<24x128xf32>
    %c217 = arith.constant 217 : index
    %1123 = memref.load %arg4[%c217] : memref<288xf32, #tpu.memory_space<smem>>
    %1124 = vector.broadcast %1123 : f32 to vector<24x128xf32>
    %1125 = arith.mulf %1124, %188 : vector<24x128xf32>
    %1126 = arith.addf %1122, %1125 : vector<24x128xf32>
    %c218 = arith.constant 218 : index
    %1127 = memref.load %arg4[%c218] : memref<288xf32, #tpu.memory_space<smem>>
    %1128 = vector.broadcast %1127 : f32 to vector<24x128xf32>
    %1129 = arith.mulf %1128, %190 : vector<24x128xf32>
    %1130 = arith.addf %1126, %1129 : vector<24x128xf32>
    %c219 = arith.constant 219 : index
    %1131 = memref.load %arg4[%c219] : memref<288xf32, #tpu.memory_space<smem>>
    %1132 = vector.broadcast %1131 : f32 to vector<24x128xf32>
    %1133 = arith.mulf %1132, %191 : vector<24x128xf32>
    %1134 = arith.addf %1130, %1133 : vector<24x128xf32>
    %c220 = arith.constant 220 : index
    %1135 = memref.load %arg4[%c220] : memref<288xf32, #tpu.memory_space<smem>>
    %1136 = vector.broadcast %1135 : f32 to vector<24x128xf32>
    %1137 = arith.mulf %1136, %67 : vector<24x128xf32>
    %1138 = arith.addf %1134, %1137 : vector<24x128xf32>
    %c221 = arith.constant 221 : index
    %1139 = memref.load %arg4[%c221] : memref<288xf32, #tpu.memory_space<smem>>
    %1140 = vector.broadcast %1139 : f32 to vector<24x128xf32>
    %1141 = arith.mulf %1140, %192 : vector<24x128xf32>
    %1142 = arith.addf %1138, %1141 : vector<24x128xf32>
    %c222 = arith.constant 222 : index
    %1143 = memref.load %arg4[%c222] : memref<288xf32, #tpu.memory_space<smem>>
    %1144 = vector.broadcast %1143 : f32 to vector<24x128xf32>
    %1145 = arith.mulf %1144, %194 : vector<24x128xf32>
    %1146 = arith.addf %1142, %1145 : vector<24x128xf32>
    %c223 = arith.constant 223 : index
    %1147 = memref.load %arg4[%c223] : memref<288xf32, #tpu.memory_space<smem>>
    %1148 = vector.broadcast %1147 : f32 to vector<24x128xf32>
    %1149 = arith.mulf %1148, %193 : vector<24x128xf32>
    %1150 = arith.addf %1146, %1149 : vector<24x128xf32>
    %c224 = arith.constant 224 : index
    %1151 = memref.load %arg4[%c224] : memref<288xf32, #tpu.memory_space<smem>>
    %1152 = vector.broadcast %1151 : f32 to vector<24x128xf32>
    %1153 = arith.mulf %1152, %195 : vector<24x128xf32>
    %1154 = arith.addf %1150, %1153 : vector<24x128xf32>
    %c225 = arith.constant 225 : index
    %1155 = memref.load %arg4[%c225] : memref<288xf32, #tpu.memory_space<smem>>
    %1156 = vector.broadcast %1155 : f32 to vector<24x128xf32>
    %1157 = arith.mulf %1156, %197 : vector<24x128xf32>
    %1158 = arith.addf %1154, %1157 : vector<24x128xf32>
    %c226 = arith.constant 226 : index
    %1159 = memref.load %arg4[%c226] : memref<288xf32, #tpu.memory_space<smem>>
    %1160 = vector.broadcast %1159 : f32 to vector<24x128xf32>
    %1161 = arith.mulf %1160, %196 : vector<24x128xf32>
    %1162 = arith.addf %1158, %1161 : vector<24x128xf32>
    %c227 = arith.constant 227 : index
    %1163 = memref.load %arg4[%c227] : memref<288xf32, #tpu.memory_space<smem>>
    %1164 = vector.broadcast %1163 : f32 to vector<24x128xf32>
    %1165 = arith.mulf %1164, %198 : vector<24x128xf32>
    %1166 = arith.addf %1162, %1165 : vector<24x128xf32>
    %c228 = arith.constant 228 : index
    %1167 = memref.load %arg4[%c228] : memref<288xf32, #tpu.memory_space<smem>>
    %1168 = vector.broadcast %1167 : f32 to vector<24x128xf32>
    %1169 = arith.mulf %1168, %199 : vector<24x128xf32>
    %1170 = arith.addf %1166, %1169 : vector<24x128xf32>
    %c229 = arith.constant 229 : index
    %1171 = memref.load %arg4[%c229] : memref<288xf32, #tpu.memory_space<smem>>
    %1172 = vector.broadcast %1171 : f32 to vector<24x128xf32>
    %1173 = arith.mulf %1172, %107 : vector<24x128xf32>
    %1174 = arith.addf %1170, %1173 : vector<24x128xf32>
    %c230 = arith.constant 230 : index
    %1175 = memref.load %arg4[%c230] : memref<288xf32, #tpu.memory_space<smem>>
    %1176 = vector.broadcast %1175 : f32 to vector<24x128xf32>
    %1177 = arith.mulf %1176, %200 : vector<24x128xf32>
    %1178 = arith.addf %1174, %1177 : vector<24x128xf32>
    %c231 = arith.constant 231 : index
    %1179 = memref.load %arg4[%c231] : memref<288xf32, #tpu.memory_space<smem>>
    %1180 = vector.broadcast %1179 : f32 to vector<24x128xf32>
    %1181 = arith.mulf %1180, %202 : vector<24x128xf32>
    %1182 = arith.addf %1178, %1181 : vector<24x128xf32>
    %c232 = arith.constant 232 : index
    %1183 = memref.load %arg4[%c232] : memref<288xf32, #tpu.memory_space<smem>>
    %1184 = vector.broadcast %1183 : f32 to vector<24x128xf32>
    %1185 = arith.mulf %1184, %201 : vector<24x128xf32>
    %1186 = arith.addf %1182, %1185 : vector<24x128xf32>
    %c233 = arith.constant 233 : index
    %1187 = memref.load %arg4[%c233] : memref<288xf32, #tpu.memory_space<smem>>
    %1188 = vector.broadcast %1187 : f32 to vector<24x128xf32>
    %1189 = arith.mulf %1188, %203 : vector<24x128xf32>
    %1190 = arith.addf %1186, %1189 : vector<24x128xf32>
    %c234 = arith.constant 234 : index
    %1191 = memref.load %arg4[%c234] : memref<288xf32, #tpu.memory_space<smem>>
    %1192 = vector.broadcast %1191 : f32 to vector<24x128xf32>
    %1193 = arith.mulf %1192, %205 : vector<24x128xf32>
    %1194 = arith.addf %1190, %1193 : vector<24x128xf32>
    %c235 = arith.constant 235 : index
    %1195 = memref.load %arg4[%c235] : memref<288xf32, #tpu.memory_space<smem>>
    %1196 = vector.broadcast %1195 : f32 to vector<24x128xf32>
    %1197 = arith.mulf %1196, %204 : vector<24x128xf32>
    %1198 = arith.addf %1194, %1197 : vector<24x128xf32>
    %c236 = arith.constant 236 : index
    %1199 = memref.load %arg4[%c236] : memref<288xf32, #tpu.memory_space<smem>>
    %1200 = vector.broadcast %1199 : f32 to vector<24x128xf32>
    %1201 = arith.mulf %1200, %206 : vector<24x128xf32>
    %1202 = arith.addf %1198, %1201 : vector<24x128xf32>
    %c237 = arith.constant 237 : index
    %1203 = memref.load %arg4[%c237] : memref<288xf32, #tpu.memory_space<smem>>
    %1204 = vector.broadcast %1203 : f32 to vector<24x128xf32>
    %1205 = arith.mulf %1204, %207 : vector<24x128xf32>
    %1206 = arith.addf %1202, %1205 : vector<24x128xf32>
    %c238 = arith.constant 238 : index
    %1207 = memref.load %arg4[%c238] : memref<288xf32, #tpu.memory_space<smem>>
    %1208 = vector.broadcast %1207 : f32 to vector<24x128xf32>
    %1209 = arith.mulf %1208, %147 : vector<24x128xf32>
    %1210 = arith.addf %1206, %1209 : vector<24x128xf32>
    %c239 = arith.constant 239 : index
    %1211 = memref.load %arg4[%c239] : memref<288xf32, #tpu.memory_space<smem>>
    %1212 = vector.broadcast %1211 : f32 to vector<24x128xf32>
    %1213 = arith.mulf %1212, %208 : vector<24x128xf32>
    %1214 = arith.addf %1210, %1213 : vector<24x128xf32>
    %c240 = arith.constant 240 : index
    %1215 = memref.load %arg4[%c240] : memref<288xf32, #tpu.memory_space<smem>>
    %1216 = vector.broadcast %1215 : f32 to vector<24x128xf32>
    %1217 = arith.mulf %1216, %210 : vector<24x128xf32>
    %1218 = arith.addf %1214, %1217 : vector<24x128xf32>
    %c241 = arith.constant 241 : index
    %1219 = memref.load %arg4[%c241] : memref<288xf32, #tpu.memory_space<smem>>
    %1220 = vector.broadcast %1219 : f32 to vector<24x128xf32>
    %1221 = arith.mulf %1220, %209 : vector<24x128xf32>
    %1222 = arith.addf %1218, %1221 : vector<24x128xf32>
    %c242 = arith.constant 242 : index
    %1223 = memref.load %arg4[%c242] : memref<288xf32, #tpu.memory_space<smem>>
    %1224 = vector.broadcast %1223 : f32 to vector<24x128xf32>
    %1225 = arith.mulf %1224, %211 : vector<24x128xf32>
    %1226 = arith.addf %1222, %1225 : vector<24x128xf32>
    %c243 = arith.constant 243 : index
    %1227 = memref.load %arg4[%c243] : memref<288xf32, #tpu.memory_space<smem>>
    %1228 = vector.broadcast %1227 : f32 to vector<24x128xf32>
    %1229 = arith.mulf %1228, %213 : vector<24x128xf32>
    %1230 = arith.addf %1226, %1229 : vector<24x128xf32>
    %c244 = arith.constant 244 : index
    %1231 = memref.load %arg4[%c244] : memref<288xf32, #tpu.memory_space<smem>>
    %1232 = vector.broadcast %1231 : f32 to vector<24x128xf32>
    %1233 = arith.mulf %1232, %212 : vector<24x128xf32>
    %1234 = arith.addf %1230, %1233 : vector<24x128xf32>
    %c245 = arith.constant 245 : index
    %1235 = memref.load %arg4[%c245] : memref<288xf32, #tpu.memory_space<smem>>
    %1236 = vector.broadcast %1235 : f32 to vector<24x128xf32>
    %1237 = arith.mulf %1236, %214 : vector<24x128xf32>
    %1238 = arith.addf %1234, %1237 : vector<24x128xf32>
    %c246 = arith.constant 246 : index
    %1239 = memref.load %arg4[%c246] : memref<288xf32, #tpu.memory_space<smem>>
    %1240 = vector.broadcast %1239 : f32 to vector<24x128xf32>
    %1241 = arith.mulf %1240, %215 : vector<24x128xf32>
    %1242 = arith.addf %1238, %1241 : vector<24x128xf32>
    %c247 = arith.constant 247 : index
    %1243 = memref.load %arg4[%c247] : memref<288xf32, #tpu.memory_space<smem>>
    %1244 = vector.broadcast %1243 : f32 to vector<24x128xf32>
    %1245 = arith.mulf %1244, %187 : vector<24x128xf32>
    %1246 = arith.addf %1242, %1245 : vector<24x128xf32>
    %c248 = arith.constant 248 : index
    %1247 = memref.load %arg4[%c248] : memref<288xf32, #tpu.memory_space<smem>>
    %1248 = vector.broadcast %1247 : f32 to vector<24x128xf32>
    %1249 = arith.mulf %1248, %216 : vector<24x128xf32>
    %1250 = arith.addf %1246, %1249 : vector<24x128xf32>
    %c249 = arith.constant 249 : index
    %1251 = memref.load %arg4[%c249] : memref<288xf32, #tpu.memory_space<smem>>
    %1252 = vector.broadcast %1251 : f32 to vector<24x128xf32>
    %1253 = arith.mulf %1252, %218 : vector<24x128xf32>
    %1254 = arith.addf %1250, %1253 : vector<24x128xf32>
    %c250 = arith.constant 250 : index
    %1255 = memref.load %arg4[%c250] : memref<288xf32, #tpu.memory_space<smem>>
    %1256 = vector.broadcast %1255 : f32 to vector<24x128xf32>
    %1257 = arith.mulf %1256, %217 : vector<24x128xf32>
    %1258 = arith.addf %1254, %1257 : vector<24x128xf32>
    %c251 = arith.constant 251 : index
    %1259 = memref.load %arg4[%c251] : memref<288xf32, #tpu.memory_space<smem>>
    %1260 = vector.broadcast %1259 : f32 to vector<24x128xf32>
    %1261 = arith.mulf %1260, %219 : vector<24x128xf32>
    %1262 = arith.addf %1258, %1261 : vector<24x128xf32>
    %c6_109 = arith.constant 6 : index
    %1263 = memref.load %arg5[%c6_109] : memref<8xf32, #tpu.memory_space<smem>>
    %1264 = vector.broadcast %1263 : f32 to vector<24x128xf32>
    %1265 = arith.addf %1262, %1264 : vector<24x128xf32>
    %1266 = vector.extract_strided_slice %1265 {offsets = [0, 0], sizes = [16, 128], strides = [1, 1]} : vector<24x128xf32> to vector<16x128xf32>
    %c6_110 = arith.constant 6 : index
    %c0_111 = arith.constant 0 : index
    %c0_112 = arith.constant 0 : index
    %1267 = vector.load %arg6[%c6_110, %c0_111, %c0_112] : memref<8x16x128xf32, #tpu.memory_space<vmem>>, vector<1x16x128xf32>
    %1268 = vector.shape_cast %1267 : vector<1x16x128xf32> to vector<16x128xf32>
    %1269 = vector.shape_cast %1266 : vector<16x128xf32> to vector<1x16x128xf32>
    tpu.vector_store %arg6[%c6_110, %c0_111, %c0_112], %1269 {strides = array<i32>} : memref<8x16x128xf32, #tpu.memory_space<vmem>>, vector<1x16x128xf32>,
    %c252 = arith.constant 252 : index
    %1270 = memref.load %arg4[%c252] : memref<288xf32, #tpu.memory_space<smem>>
    %1271 = vector.broadcast %1270 : f32 to vector<24x128xf32>
    %1272 = arith.mulf %1271, %189 : vector<24x128xf32>
    %c253 = arith.constant 253 : index
    %1273 = memref.load %arg4[%c253] : memref<288xf32, #tpu.memory_space<smem>>
    %1274 = vector.broadcast %1273 : f32 to vector<24x128xf32>
    %1275 = arith.mulf %1274, %188 : vector<24x128xf32>
    %1276 = arith.addf %1272, %1275 : vector<24x128xf32>
    %c254 = arith.constant 254 : index
    %1277 = memref.load %arg4[%c254] : memref<288xf32, #tpu.memory_space<smem>>
    %1278 = vector.broadcast %1277 : f32 to vector<24x128xf32>
    %1279 = arith.mulf %1278, %190 : vector<24x128xf32>
    %1280 = arith.addf %1276, %1279 : vector<24x128xf32>
    %c255 = arith.constant 255 : index
    %1281 = memref.load %arg4[%c255] : memref<288xf32, #tpu.memory_space<smem>>
    %1282 = vector.broadcast %1281 : f32 to vector<24x128xf32>
    %1283 = arith.mulf %1282, %191 : vector<24x128xf32>
    %1284 = arith.addf %1280, %1283 : vector<24x128xf32>
    %c256 = arith.constant 256 : index
    %1285 = memref.load %arg4[%c256] : memref<288xf32, #tpu.memory_space<smem>>
    %1286 = vector.broadcast %1285 : f32 to vector<24x128xf32>
    %1287 = arith.mulf %1286, %67 : vector<24x128xf32>
    %1288 = arith.addf %1284, %1287 : vector<24x128xf32>
    %c257 = arith.constant 257 : index
    %1289 = memref.load %arg4[%c257] : memref<288xf32, #tpu.memory_space<smem>>
    %1290 = vector.broadcast %1289 : f32 to vector<24x128xf32>
    %1291 = arith.mulf %1290, %192 : vector<24x128xf32>
    %1292 = arith.addf %1288, %1291 : vector<24x128xf32>
    %c258 = arith.constant 258 : index
    %1293 = memref.load %arg4[%c258] : memref<288xf32, #tpu.memory_space<smem>>
    %1294 = vector.broadcast %1293 : f32 to vector<24x128xf32>
    %1295 = arith.mulf %1294, %194 : vector<24x128xf32>
    %1296 = arith.addf %1292, %1295 : vector<24x128xf32>
    %c259 = arith.constant 259 : index
    %1297 = memref.load %arg4[%c259] : memref<288xf32, #tpu.memory_space<smem>>
    %1298 = vector.broadcast %1297 : f32 to vector<24x128xf32>
    %1299 = arith.mulf %1298, %193 : vector<24x128xf32>
    %1300 = arith.addf %1296, %1299 : vector<24x128xf32>
    %c260 = arith.constant 260 : index
    %1301 = memref.load %arg4[%c260] : memref<288xf32, #tpu.memory_space<smem>>
    %1302 = vector.broadcast %1301 : f32 to vector<24x128xf32>
    %1303 = arith.mulf %1302, %195 : vector<24x128xf32>
    %1304 = arith.addf %1300, %1303 : vector<24x128xf32>
    %c261 = arith.constant 261 : index
    %1305 = memref.load %arg4[%c261] : memref<288xf32, #tpu.memory_space<smem>>
    %1306 = vector.broadcast %1305 : f32 to vector<24x128xf32>
    %1307 = arith.mulf %1306, %197 : vector<24x128xf32>
    %1308 = arith.addf %1304, %1307 : vector<24x128xf32>
    %c262 = arith.constant 262 : index
    %1309 = memref.load %arg4[%c262] : memref<288xf32, #tpu.memory_space<smem>>
    %1310 = vector.broadcast %1309 : f32 to vector<24x128xf32>
    %1311 = arith.mulf %1310, %196 : vector<24x128xf32>
    %1312 = arith.addf %1308, %1311 : vector<24x128xf32>
    %c263 = arith.constant 263 : index
    %1313 = memref.load %arg4[%c263] : memref<288xf32, #tpu.memory_space<smem>>
    %1314 = vector.broadcast %1313 : f32 to vector<24x128xf32>
    %1315 = arith.mulf %1314, %198 : vector<24x128xf32>
    %1316 = arith.addf %1312, %1315 : vector<24x128xf32>
    %c264 = arith.constant 264 : index
    %1317 = memref.load %arg4[%c264] : memref<288xf32, #tpu.memory_space<smem>>
    %1318 = vector.broadcast %1317 : f32 to vector<24x128xf32>
    %1319 = arith.mulf %1318, %199 : vector<24x128xf32>
    %1320 = arith.addf %1316, %1319 : vector<24x128xf32>
    %c265 = arith.constant 265 : index
    %1321 = memref.load %arg4[%c265] : memref<288xf32, #tpu.memory_space<smem>>
    %1322 = vector.broadcast %1321 : f32 to vector<24x128xf32>
    %1323 = arith.mulf %1322, %107 : vector<24x128xf32>
    %1324 = arith.addf %1320, %1323 : vector<24x128xf32>
    %c266 = arith.constant 266 : index
    %1325 = memref.load %arg4[%c266] : memref<288xf32, #tpu.memory_space<smem>>
    %1326 = vector.broadcast %1325 : f32 to vector<24x128xf32>
    %1327 = arith.mulf %1326, %200 : vector<24x128xf32>
    %1328 = arith.addf %1324, %1327 : vector<24x128xf32>
    %c267 = arith.constant 267 : index
    %1329 = memref.load %arg4[%c267] : memref<288xf32, #tpu.memory_space<smem>>
    %1330 = vector.broadcast %1329 : f32 to vector<24x128xf32>
    %1331 = arith.mulf %1330, %202 : vector<24x128xf32>
    %1332 = arith.addf %1328, %1331 : vector<24x128xf32>
    %c268 = arith.constant 268 : index
    %1333 = memref.load %arg4[%c268] : memref<288xf32, #tpu.memory_space<smem>>
    %1334 = vector.broadcast %1333 : f32 to vector<24x128xf32>
    %1335 = arith.mulf %1334, %201 : vector<24x128xf32>
    %1336 = arith.addf %1332, %1335 : vector<24x128xf32>
    %c269 = arith.constant 269 : index
    %1337 = memref.load %arg4[%c269] : memref<288xf32, #tpu.memory_space<smem>>
    %1338 = vector.broadcast %1337 : f32 to vector<24x128xf32>
    %1339 = arith.mulf %1338, %203 : vector<24x128xf32>
    %1340 = arith.addf %1336, %1339 : vector<24x128xf32>
    %c270 = arith.constant 270 : index
    %1341 = memref.load %arg4[%c270] : memref<288xf32, #tpu.memory_space<smem>>
    %1342 = vector.broadcast %1341 : f32 to vector<24x128xf32>
    %1343 = arith.mulf %1342, %205 : vector<24x128xf32>
    %1344 = arith.addf %1340, %1343 : vector<24x128xf32>
    %c271 = arith.constant 271 : index
    %1345 = memref.load %arg4[%c271] : memref<288xf32, #tpu.memory_space<smem>>
    %1346 = vector.broadcast %1345 : f32 to vector<24x128xf32>
    %1347 = arith.mulf %1346, %204 : vector<24x128xf32>
    %1348 = arith.addf %1344, %1347 : vector<24x128xf32>
    %c272 = arith.constant 272 : index
    %1349 = memref.load %arg4[%c272] : memref<288xf32, #tpu.memory_space<smem>>
    %1350 = vector.broadcast %1349 : f32 to vector<24x128xf32>
    %1351 = arith.mulf %1350, %206 : vector<24x128xf32>
    %1352 = arith.addf %1348, %1351 : vector<24x128xf32>
    %c273 = arith.constant 273 : index
    %1353 = memref.load %arg4[%c273] : memref<288xf32, #tpu.memory_space<smem>>
    %1354 = vector.broadcast %1353 : f32 to vector<24x128xf32>
    %1355 = arith.mulf %1354, %207 : vector<24x128xf32>
    %1356 = arith.addf %1352, %1355 : vector<24x128xf32>
    %c274 = arith.constant 274 : index
    %1357 = memref.load %arg4[%c274] : memref<288xf32, #tpu.memory_space<smem>>
    %1358 = vector.broadcast %1357 : f32 to vector<24x128xf32>
    %1359 = arith.mulf %1358, %147 : vector<24x128xf32>
    %1360 = arith.addf %1356, %1359 : vector<24x128xf32>
    %c275 = arith.constant 275 : index
    %1361 = memref.load %arg4[%c275] : memref<288xf32, #tpu.memory_space<smem>>
    %1362 = vector.broadcast %1361 : f32 to vector<24x128xf32>
    %1363 = arith.mulf %1362, %208 : vector<24x128xf32>
    %1364 = arith.addf %1360, %1363 : vector<24x128xf32>
    %c276 = arith.constant 276 : index
    %1365 = memref.load %arg4[%c276] : memref<288xf32, #tpu.memory_space<smem>>
    %1366 = vector.broadcast %1365 : f32 to vector<24x128xf32>
    %1367 = arith.mulf %1366, %210 : vector<24x128xf32>
    %1368 = arith.addf %1364, %1367 : vector<24x128xf32>
    %c277 = arith.constant 277 : index
    %1369 = memref.load %arg4[%c277] : memref<288xf32, #tpu.memory_space<smem>>
    %1370 = vector.broadcast %1369 : f32 to vector<24x128xf32>
    %1371 = arith.mulf %1370, %209 : vector<24x128xf32>
    %1372 = arith.addf %1368, %1371 : vector<24x128xf32>
    %c278 = arith.constant 278 : index
    %1373 = memref.load %arg4[%c278] : memref<288xf32, #tpu.memory_space<smem>>
    %1374 = vector.broadcast %1373 : f32 to vector<24x128xf32>
    %1375 = arith.mulf %1374, %211 : vector<24x128xf32>
    %1376 = arith.addf %1372, %1375 : vector<24x128xf32>
    %c279 = arith.constant 279 : index
    %1377 = memref.load %arg4[%c279] : memref<288xf32, #tpu.memory_space<smem>>
    %1378 = vector.broadcast %1377 : f32 to vector<24x128xf32>
    %1379 = arith.mulf %1378, %213 : vector<24x128xf32>
    %1380 = arith.addf %1376, %1379 : vector<24x128xf32>
    %c280 = arith.constant 280 : index
    %1381 = memref.load %arg4[%c280] : memref<288xf32, #tpu.memory_space<smem>>
    %1382 = vector.broadcast %1381 : f32 to vector<24x128xf32>
    %1383 = arith.mulf %1382, %212 : vector<24x128xf32>
    %1384 = arith.addf %1380, %1383 : vector<24x128xf32>
    %c281 = arith.constant 281 : index
    %1385 = memref.load %arg4[%c281] : memref<288xf32, #tpu.memory_space<smem>>
    %1386 = vector.broadcast %1385 : f32 to vector<24x128xf32>
    %1387 = arith.mulf %1386, %214 : vector<24x128xf32>
    %1388 = arith.addf %1384, %1387 : vector<24x128xf32>
    %c282 = arith.constant 282 : index
    %1389 = memref.load %arg4[%c282] : memref<288xf32, #tpu.memory_space<smem>>
    %1390 = vector.broadcast %1389 : f32 to vector<24x128xf32>
    %1391 = arith.mulf %1390, %215 : vector<24x128xf32>
    %1392 = arith.addf %1388, %1391 : vector<24x128xf32>
    %c283 = arith.constant 283 : index
    %1393 = memref.load %arg4[%c283] : memref<288xf32, #tpu.memory_space<smem>>
    %1394 = vector.broadcast %1393 : f32 to vector<24x128xf32>
    %1395 = arith.mulf %1394, %187 : vector<24x128xf32>
    %1396 = arith.addf %1392, %1395 : vector<24x128xf32>
    %c284 = arith.constant 284 : index
    %1397 = memref.load %arg4[%c284] : memref<288xf32, #tpu.memory_space<smem>>
    %1398 = vector.broadcast %1397 : f32 to vector<24x128xf32>
    %1399 = arith.mulf %1398, %216 : vector<24x128xf32>
    %1400 = arith.addf %1396, %1399 : vector<24x128xf32>
    %c285 = arith.constant 285 : index
    %1401 = memref.load %arg4[%c285] : memref<288xf32, #tpu.memory_space<smem>>
    %1402 = vector.broadcast %1401 : f32 to vector<24x128xf32>
    %1403 = arith.mulf %1402, %218 : vector<24x128xf32>
    %1404 = arith.addf %1400, %1403 : vector<24x128xf32>
    %c286 = arith.constant 286 : index
    %1405 = memref.load %arg4[%c286] : memref<288xf32, #tpu.memory_space<smem>>
    %1406 = vector.broadcast %1405 : f32 to vector<24x128xf32>
    %1407 = arith.mulf %1406, %217 : vector<24x128xf32>
    %1408 = arith.addf %1404, %1407 : vector<24x128xf32>
    %c287 = arith.constant 287 : index
    %1409 = memref.load %arg4[%c287] : memref<288xf32, #tpu.memory_space<smem>>
    %1410 = vector.broadcast %1409 : f32 to vector<24x128xf32>
    %1411 = arith.mulf %1410, %219 : vector<24x128xf32>
    %1412 = arith.addf %1408, %1411 : vector<24x128xf32>
    %c7_113 = arith.constant 7 : index
    %1413 = memref.load %arg5[%c7_113] : memref<8xf32, #tpu.memory_space<smem>>
    %1414 = vector.broadcast %1413 : f32 to vector<24x128xf32>
    %1415 = arith.addf %1412, %1414 : vector<24x128xf32>
    %1416 = vector.extract_strided_slice %1415 {offsets = [0, 0], sizes = [16, 128], strides = [1, 1]} : vector<24x128xf32> to vector<16x128xf32>
    %c7_114 = arith.constant 7 : index
    %c0_115 = arith.constant 0 : index
    %c0_116 = arith.constant 0 : index
    %1417 = vector.load %arg6[%c7_114, %c0_115, %c0_116] : memref<8x16x128xf32, #tpu.memory_space<vmem>>, vector<1x16x128xf32>
    %1418 = vector.shape_cast %1417 : vector<1x16x128xf32> to vector<16x128xf32>
    %1419 = vector.shape_cast %1416 : vector<16x128xf32> to vector<1x16x128xf32>
    tpu.vector_store %arg6[%c7_114, %c0_115, %c0_116], %1419 {strides = array<i32>} : memref<8x16x128xf32, #tpu.memory_space<vmem>>, vector<1x16x128xf32>,
    return
  }
  func.func @transform_0(%arg0: i32) -> (i32, i32, i32) {
    %c0_i32 = arith.constant 0 : i32
    %c0_i32_0 = arith.constant 0 : i32
    %c0_i32_1 = arith.constant 0 : i32
    return %arg0, %c0_i32, %c0_i32_0 : i32, i32, i32
  }
  func.func @transform_1(%arg0: i32) -> i32 {
    %c0_i32 = arith.constant 0 : i32
    %c0_i32_0 = arith.constant 0 : i32
    return %c0_i32 : i32
  }
  func.func @transform_2(%arg0: i32) -> i32 {
    %c0_i32 = arith.constant 0 : i32
    %c0_i32_0 = arith.constant 0 : i32
    return %c0_i32 : i32
  }
  func.func @transform_3(%arg0: i32) -> i32 {
    %c0_i32 = arith.constant 0 : i32
    %c0_i32_0 = arith.constant 0 : i32
    return %c0_i32 : i32
  }
  func.func @transform_4(%arg0: i32) -> i32 {
    %c0_i32 = arith.constant 0 : i32
    %c0_i32_0 = arith.constant 0 : i32
    return %c0_i32 : i32
  }
  func.func @transform_5(%arg0: i32) -> (i32, i32, i32) {
    %c0_i32 = arith.constant 0 : i32
    %c0_i32_0 = arith.constant 0 : i32
    %c0_i32_1 = arith.constant 0 : i32
    return %c0_i32, %arg0, %c0_i32_0 : i32, i32, i32
  }
}

</mosaic_0001>

<llo_original>
// kernel: tpu_custom_call.1
$region0: #{tpu_custom_call.1}
  #allocation0 [shape = 'u32[]', space=smem, size = 0x4, offset = 0x4, fixed_abs, tag = 'smem constant byte address 0x4 - core index']
  #allocation1 [shape = 'u32[144,128]{1,0:T(1,128)}', space=vmem, size = 0x12000, scoped, tag = 'internal scratch']
  %s0 = inlined_call_operand.hbm [shape: f32[1,24,128], index: 0, kind: input, shape index: {}]
  %s1 = inlined_call_operand.vmem [shape: f32[36], index: 1, kind: input, shape index: {}]
  %s2 = inlined_call_operand.vmem [shape: f32[4], index: 2, kind: input, shape index: {}]
  %s3 = inlined_call_operand.vmem [shape: f32[288], index: 3, kind: input, shape index: {}]
  %s4 = inlined_call_operand.vmem [shape: f32[8], index: 4, kind: input, shape index: {}]
  %s5 = inlined_call_operand.hbm [shape: f32[8,16,128], index: 5, kind: output, shape index: {}]
  %s6 = sld [smem:[#allocation0]]
  $region50: #{tpu_custom_call.1} parent=0
    _
  %s8 = ssub.s32 1, %s6
  %s9 = scalar_select 0, %s8, %s6
  $region1: #{tpu_custom_call.1} parent=0
    #allocation2 [shape = 'u8[12288]{0}', space=vmem, size = 0x3000, scoped, tag = 'input window, operand 0, single buffered']
    #allocation3 [shape = 's32[1]{0}', space=sflag, size = 0x4, scoped, tag = 'scoped memory for tpu_custom_call.1']
    #allocation4 [shape = 's32[1]{0}', space=sflag, size = 0x4, scoped, tag = 'scoped memory for tpu_custom_call.1']
    #allocation5 [shape = 's32[1]{0}', space=sflag, size = 0x4, scoped, tag = 'scoped memory for tpu_custom_call.1']
    #allocation6 [shape = 'u8[512]{0}', space=smem, size = 0x200, scoped, tag = 'input window, operand 1, single buffered']
    #allocation7 [shape = 'u8[512]{0}', space=smem, size = 0x200, scoped, tag = 'input window, operand 2, single buffered']
    #allocation8 [shape = 's32[1]{0}', space=sflag, size = 0x4, scoped, tag = 'scoped memory for tpu_custom_call.1']
    #allocation9 [shape = 'u8[1536]{0}', space=smem, size = 0x600, scoped, tag = 'input window, operand 3, single buffered']
    #allocation10 [shape = 'u8[512]{0}', space=smem, size = 0x200, scoped, tag = 'input window, operand 4, single buffered']
    #allocation11 [shape = 's32[1]{0}', space=sflag, size = 0x4, scoped, tag = 'scoped memory for tpu_custom_call.1']
    #allocation12 [shape = 'u8[65536]{0}', space=vmem, size = 0x10000, scoped, tag = 'output window, operand 0, single buffered']
    %10 = vsyncpa [#allocation3], 0
    %11 = vsyncpa [#allocation5], 0
    %12 = vsyncpa [#allocation8], 0
    %13 = vsyncpa [#allocation11], 0
    %14 = vsyncpa [#allocation4], 0
    // Predicated region
    $region2: #{tpu_custom_call.1} parent=1 // pred_check
      _
    $region3: #{tpu_custom_call.1} parent=1 // pred_check_branch
      %16 = sbr.rel (0) target = $region5
    $region4: #{tpu_custom_call.1} parent=1 // pred_region
      %s18 = ssub.s32 384, 384
      %19 = vsyncadd [#allocation3], %s18
      %s20 = sshll.u32 [#allocation2], 4
      %s21 = int_to_ptr.vmem [resolvable:$true] %s20
      %26 = dma.hbm_to_vmem [thread:$0]  %s0, 384, %s21, [#allocation3], 128, 128, 8
    $region5: #{tpu_custom_call.1} parent=1 // pred_fallthru
      _
    // Predicated region
    $region6: #{tpu_custom_call.1} parent=1 // pred_check
      _
    $region7: #{tpu_custom_call.1} parent=1 // pred_check_branch
      %28 = sbr.rel (0) target = $region9
    $region8: #{tpu_custom_call.1} parent=1 // pred_region
      %s30 = ssub.s32 16, 16
      %31 = vsyncadd [#allocation5], %s30
      %s33 = sshll.u32 %s1, 4
      %s34 = int_to_ptr.vmem [resolvable:$true] %s33
      %36 = dma.vmem_to_smem %s34, 16, [#allocation6], [#allocation5]
    $region9: #{tpu_custom_call.1} parent=1 // pred_fallthru
      _
    // Predicated region
    $region10: #{tpu_custom_call.1} parent=1 // pred_check
      _
    $region11: #{tpu_custom_call.1} parent=1 // pred_check_branch
      %38 = sbr.rel (0) target = $region13
    $region12: #{tpu_custom_call.1} parent=1 // pred_region
      %s40 = ssub.s32 16, 16
      %41 = vsyncadd [#allocation8], %s40
      %s43 = sshll.u32 %s2, 4
      %s44 = int_to_ptr.vmem [resolvable:$true] %s43
      %46 = dma.vmem_to_smem %s44, 16, [#allocation7], [#allocation8]
    $region13: #{tpu_custom_call.1} parent=1 // pred_fallthru
      _
    // Predicated region
    $region14: #{tpu_custom_call.1} parent=1 // pred_check
      _
    $region15: #{tpu_custom_call.1} parent=1 // pred_check_branch
      %48 = sbr.rel (0) target = $region17
    $region16: #{tpu_custom_call.1} parent=1 // pred_region
      %s50 = ssub.s32 48, 48
      %51 = vsyncadd [#allocation8], %s50
      %s53 = sshll.u32 %s3, 4
      %s54 = int_to_ptr.vmem [resolvable:$true] %s53
      %56 = dma.vmem_to_smem %s54, 48, [#allocation9], [#allocation8]
    $region17: #{tpu_custom_call.1} parent=1 // pred_fallthru
      _
    // Predicated region
    $region18: #{tpu_custom_call.1} parent=1 // pred_check
      _
    $region19: #{tpu_custom_call.1} parent=1 // pred_check_branch
      %58 = sbr.rel (0) target = $region21
    $region20: #{tpu_custom_call.1} parent=1 // pred_region
      %s60 = ssub.s32 16, 16
      %61 = vsyncadd [#allocation11], %s60
      %s63 = sshll.u32 %s4, 4
      %s64 = int_to_ptr.vmem [resolvable:$true] %s63
      %66 = dma.vmem_to_smem %s64, 16, [#allocation10], [#allocation11]
    $region21: #{tpu_custom_call.1} parent=1 // pred_fallthru
      _
    // Predicated region
    $region22: #{tpu_custom_call.1} parent=1 // pred_check
      _
    $region23: #{tpu_custom_call.1} parent=1 // pred_check_branch
      %68 = sbr.rel (0) target = $region25
    $region24: #{tpu_custom_call.1} parent=1 // pred_region
      %69 = dma.done [#allocation3], 384
    $region25: #{tpu_custom_call.1} parent=1 // pred_fallthru
      _
    // Predicated region
    $region26: #{tpu_custom_call.1} parent=1 // pred_check
      _
    $region27: #{tpu_custom_call.1} parent=1 // pred_check_branch
      %71 = sbr.rel (0) target = $region29
    $region28: #{tpu_custom_call.1} parent=1 // pred_region
      %72 = dma.done [#allocation5], 16
    $region29: #{tpu_custom_call.1} parent=1 // pred_fallthru
      _
    // Predicated region
    $region30: #{tpu_custom_call.1} parent=1 // pred_check
      _
    $region31: #{tpu_custom_call.1} parent=1 // pred_check_branch
      %74 = sbr.rel (0) target = $region33
    $region32: #{tpu_custom_call.1} parent=1 // pred_region
      %75 = dma.done [#allocation8], 16
    $region33: #{tpu_custom_call.1} parent=1 // pred_fallthru
      _
    // Predicated region
    $region34: #{tpu_custom_call.1} parent=1 // pred_check
      _
    $region35: #{tpu_custom_call.1} parent=1 // pred_check_branch
      %77 = sbr.rel (0) target = $region37
    $region36: #{tpu_custom_call.1} parent=1 // pred_region
      %78 = dma.done [#allocation8], 48
    $region37: #{tpu_custom_call.1} parent=1 // pred_fallthru
      _
    // Predicated region
    $region38: #{tpu_custom_call.1} parent=1 // pred_check
      _
    $region39: #{tpu_custom_call.1} parent=1 // pred_check_branch
      %80 = sbr.rel (0) target = $region41
    $region40: #{tpu_custom_call.1} parent=1 // pred_region
      %81 = dma.done [#allocation11], 16
    $region41: #{tpu_custom_call.1} parent=1 // pred_fallthru
      _
    %82 = sfence
    %v83 = vlaneseq
    %v84 = vshrl.u32 %v83, 7
    %v85 = vadd.s32 %v84, 8
    %v86 = vadd.s32 %v84, 16
    %v87 = vlaneseq
    %v88 = vand.u32 %v87, 127
    %s89 = smul.u32 0, 16
    %vm90 = vcmp.ge.s32.totalorder %v84, 22
    %vm91 = vcmp.ge.s32.totalorder %v85, 22
    %vm92 = vcmp.ge.s32.totalorder %v86, 22
    %v93 = vsub.s32 %v84, 24
    %v94 = vsub.s32 %v85, 24
    %v95 = vsub.s32 %v86, 24
    %v96 = vsel %vm90, %v93, %v84
    %v97 = vsel %vm91, %v94, %v85
    %v98 = vsel %vm92, %v95, %v86
    %v99 = vstv %s89
    %v100 = vadd.s32 %v99, %v96
    %v101 = vadd.s32 %v99, %v97
    %v102 = vadd.s32 %v99, %v98
    %vm103 = vcmp.ge.s32.totalorder %v100, 0
    %vm104 = vcmp.ge.s32.totalorder %v101, 0
    %vm105 = vcmp.ge.s32.totalorder %v102, 0
    %vm106 = vcmp.lt.s32.totalorder %v100, 16
    %vm107 = vcmp.lt.s32.totalorder %v101, 16
    %vm108 = vcmp.lt.s32.totalorder %v102, 16
    %vm109 = vmand %vm103, %vm106
    %vm110 = vmand %vm104, %vm107
    %vm111 = vmand %vm105, %vm108
    %vm112 = vcmp.lt.s32.totalorder %v88, 16
    %vm113 = vmand %vm109, %vm112
    %vm114 = vmand %vm110, %vm112
    %vm115 = vmand %vm111, %vm112
    %v116 = vld [vmem:[#allocation2] sm:$0xff]
    %v117 = vld [vmem:[#allocation2 + $0x8] sm:$0xff]
    %v118 = vld [vmem:[#allocation2 + $0x10] sm:$0xff]
    %v119 = vrot.slane %v116, 7
    %v120 = vrot.slane %v117, 7
    %v121 = vrot.slane %v118, 7
    %vm122 = vcmp.lt.s32.totalorder %v84, 1
    %v123 = vsel %vm122, %v120, %v121
    %v124 = vsel %vm122, %v119, %v120
    %v125 = vsel %vm122, %v121, %v119
    %126 = vrot.lane.b32.xlu0 %v125, 1
    %v127 = vpop.permute.xlu0 %126
    %128 = vrot.lane.b32.xlu0 %v124, 1
    %v129 = vpop.permute.xlu0 %128
    %130 = vrot.lane.b32.xlu0 %v123, 1
    %v131 = vpop.permute.xlu0 %130
    %132 = vrot.lane.b32.xlu0 %v125, 127
    %v133 = vpop.permute.xlu0 %132
    %134 = vrot.lane.b32.xlu0 %v124, 127
    %v135 = vpop.permute.xlu0 %134
    %136 = vrot.lane.b32.xlu0 %v123, 127
    %v137 = vpop.permute.xlu0 %136
    %138 = vrot.lane.b32.xlu0 %v116, 1
    %v139 = vpop.permute.xlu0 %138
    %140 = vrot.lane.b32.xlu0 %v117, 1
    %v141 = vpop.permute.xlu0 %140
    %142 = vrot.lane.b32.xlu0 %v118, 1
    %v143 = vpop.permute.xlu0 %142
    %144 = vrot.lane.b32.xlu0 %v116, 127
    %v145 = vpop.permute.xlu0 %144
    %146 = vrot.lane.b32.xlu0 %v117, 127
    %v147 = vpop.permute.xlu0 %146
    %148 = vrot.lane.b32.xlu0 %v118, 127
    %v149 = vpop.permute.xlu0 %148
    %v150 = vrot.slane %v116, 1
    %v151 = vrot.slane %v117, 1
    %v152 = vrot.slane %v118, 1
    %vm153 = vcmp.lt.s32.totalorder %v84, 7
    %v154 = vsel %vm153, %v151, %v152
    %v155 = vsel %vm153, %v150, %v151
    %v156 = vsel %vm153, %v152, %v150
    %157 = vrot.lane.b32.xlu0 %v155, 1
    %v158 = vpop.permute.xlu0 %157
    %159 = vrot.lane.b32.xlu0 %v154, 1
    %v160 = vpop.permute.xlu0 %159
    %161 = vrot.lane.b32.xlu0 %v156, 1
    %v162 = vpop.permute.xlu0 %161
    %163 = vrot.lane.b32.xlu0 %v155, 127
    %v164 = vpop.permute.xlu0 %163
    %165 = vrot.lane.b32.xlu0 %v154, 127
    %v166 = vpop.permute.xlu0 %165
    %167 = vrot.lane.b32.xlu0 %v156, 127
    %v168 = vpop.permute.xlu0 %167
    %s169 = sld [smem:[#allocation6]]
    %v170 = vstv %s169
    %v171 = vmul.f32 %v170, %v127
    %v172 = vmul.f32 %v170, %v129
    %v173 = vmul.f32 %v170, %v131
    %s174 = sld [smem:[#allocation6 + $0x1]]
    %v175 = vstv %s174
    %v176 = vmul.f32 %v175, %v125
    %v177 = vmul.f32 %v175, %v124
    %v178 = vmul.f32 %v175, %v123
    %v179 = vadd.f32 %v171, %v176
    %v180 = vadd.f32 %v172, %v177
    %v181 = vadd.f32 %v173, %v178
    %s182 = sld [smem:[#allocation6 + $0x2]]
    %v183 = vstv %s182
    %v184 = vmul.f32 %v183, %v133
    %v185 = vmul.f32 %v183, %v135
    %v186 = vmul.f32 %v183, %v137
    %v187 = vadd.f32 %v179, %v184
    %v188 = vadd.f32 %v180, %v185
    %v189 = vadd.f32 %v181, %v186
    %s190 = sld [smem:[#allocation6 + $0x3]]
    %v191 = vstv %s190
    %v192 = vmul.f32 %v191, %v139
    %v193 = vmul.f32 %v191, %v141
    %v194 = vmul.f32 %v191, %v143
    %v195 = vadd.f32 %v187, %v192
    %v196 = vadd.f32 %v188, %v193
    %v197 = vadd.f32 %v189, %v194
    %s198 = sld [smem:[#allocation6 + $0x4]]
    %v199 = vstv %s198
    %v200 = vmul.f32 %v199, %v116
    %v201 = vmul.f32 %v199, %v117
    %v202 = vmul.f32 %v199, %v118
    %v203 = vadd.f32 %v195, %v200
    %v204 = vadd.f32 %v196, %v201
    %v205 = vadd.f32 %v197, %v202
    %s206 = sld [smem:[#allocation6 + $0x5]]
    %v207 = vstv %s206
    %v208 = vmul.f32 %v207, %v145
    %v209 = vmul.f32 %v207, %v147
    %v210 = vmul.f32 %v207, %v149
    %v211 = vadd.f32 %v203, %v208
    %v212 = vadd.f32 %v204, %v209
    %v213 = vadd.f32 %v205, %v210
    %s214 = sld [smem:[#allocation6 + $0x6]]
    %v215 = vstv %s214
    %v216 = vmul.f32 %v215, %v158
    %v217 = vmul.f32 %v215, %v160
    %v218 = vmul.f32 %v215, %v162
    %v219 = vadd.f32 %v211, %v216
    %v220 = vadd.f32 %v212, %v217
    %v221 = vadd.f32 %v213, %v218
    %s222 = sld [smem:[#allocation6 + $0x7]]
    %v223 = vstv %s222
    %v224 = vmul.f32 %v223, %v155
    %v225 = vmul.f32 %v223, %v154
    %v226 = vmul.f32 %v223, %v156
    %v227 = vadd.f32 %v219, %v224
    %v228 = vadd.f32 %v220, %v225
    %v229 = vadd.f32 %v221, %v226
    %s230 = sld [smem:[#allocation6 + $0x8]]
    %v231 = vstv %s230
    %v232 = vmul.f32 %v231, %v164
    %v233 = vmul.f32 %v231, %v166
    %v234 = vmul.f32 %v231, %v168
    %v235 = vadd.f32 %v227, %v232
    %v236 = vadd.f32 %v228, %v233
    %v237 = vadd.f32 %v229, %v234
    %s238 = sld [smem:[#allocation7]]
    %v239 = vstv %s238
    %v240 = vadd.f32 %v235, %v239
    %v241 = vadd.f32 %v236, %v239
    %v242 = vadd.f32 %v237, %v239
    %v243 = vsel %vm113, %v240, 0.0
    %v244 = vsel %vm114, %v241, 0.0
    %v245 = vsel %vm115, %v242, 0.0
    %s246 = sld [smem:[#allocation6 + $0x9]]
    %v247 = vstv %s246
    %v248 = vmul.f32 %v247, %v127
    %v249 = vmul.f32 %v247, %v129
    %v250 = vmul.f32 %v247, %v131
    %s251 = sld [smem:[#allocation6 + $0xa]]
    %v252 = vstv %s251
    %v253 = vmul.f32 %v252, %v125
    %v254 = vmul.f32 %v252, %v124
    %v255 = vmul.f32 %v252, %v123
    %v256 = vadd.f32 %v248, %v253
    %v257 = vadd.f32 %v249, %v254
    %v258 = vadd.f32 %v250, %v255
    %s259 = sld [smem:[#allocation6 + $0xb]]
    %v260 = vstv %s259
    %v261 = vmul.f32 %v260, %v133
    %v262 = vmul.f32 %v260, %v135
    %v263 = vmul.f32 %v260, %v137
    %v264 = vadd.f32 %v256, %v261
    %v265 = vadd.f32 %v257, %v262
    %v266 = vadd.f32 %v258, %v263
    %s267 = sld [smem:[#allocation6 + $0xc]]
    %v268 = vstv %s267
    %v269 = vmul.f32 %v268, %v139
    %v270 = vmul.f32 %v268, %v141
    %v271 = vmul.f32 %v268, %v143
    %v272 = vadd.f32 %v264, %v269
    %v273 = vadd.f32 %v265, %v270
    %v274 = vadd.f32 %v266, %v271
    %s275 = sld [smem:[#allocation6 + $0xd]]
    %v276 = vstv %s275
    %v277 = vmul.f32 %v276, %v116
    %v278 = vmul.f32 %v276, %v117
    %v279 = vmul.f32 %v276, %v118
    %v280 = vadd.f32 %v272, %v277
    %v281 = vadd.f32 %v273, %v278
    %v282 = vadd.f32 %v274, %v279
    %s283 = sld [smem:[#allocation6 + $0xe]]
    %v284 = vstv %s283
    %v285 = vmul.f32 %v284, %v145
    %v286 = vmul.f32 %v284, %v147
    %v287 = vmul.f32 %v284, %v149
    %v288 = vadd.f32 %v280, %v285
    %v289 = vadd.f32 %v281, %v286
    %v290 = vadd.f32 %v282, %v287
    %s291 = sld [smem:[#allocation6 + $0xf]]
    %v292 = vstv %s291
    %v293 = vmul.f32 %v292, %v158
    %v294 = vmul.f32 %v292, %v160
    %v295 = vmul.f32 %v292, %v162
    %v296 = vadd.f32 %v288, %v293
    %v297 = vadd.f32 %v289, %v294
    %v298 = vadd.f32 %v290, %v295
    %s299 = sld [smem:[#allocation6 + $0x10]]
    %v300 = vstv %s299
    %v301 = vmul.f32 %v300, %v155
    %v302 = vmul.f32 %v300, %v154
    %v303 = vmul.f32 %v300, %v156
    %v304 = vadd.f32 %v296, %v301
    %v305 = vadd.f32 %v297, %v302
    %v306 = vadd.f32 %v298, %v303
    %s307 = sld [smem:[#allocation6 + $0x11]]
    %v308 = vstv %s307
    %v309 = vmul.f32 %v308, %v164
    %v310 = vmul.f32 %v308, %v166
    %v311 = vmul.f32 %v308, %v168
    %v312 = vadd.f32 %v304, %v309
    %v313 = vadd.f32 %v305, %v310
    %v314 = vadd.f32 %v306, %v311
    %s315 = sld [smem:[#allocation7 + $0x1]]
    %v316 = vstv %s315
    %v317 = vadd.f32 %v312, %v316
    %v318 = vadd.f32 %v313, %v316
    %v319 = vadd.f32 %v314, %v316
    %v320 = vsel %vm113, %v317, 0.0
    %v321 = vsel %vm114, %v318, 0.0
    %v322 = vsel %vm115, %v319, 0.0
    %s323 = sld [smem:[#allocation6 + $0x12]]
    %v324 = vstv %s323
    %v325 = vmul.f32 %v324, %v127
    %v326 = vmul.f32 %v324, %v129
    %v327 = vmul.f32 %v324, %v131
    %s328 = sld [smem:[#allocation6 + $0x13]]
    %v329 = vstv %s328
    %v330 = vmul.f32 %v329, %v125
    %v331 = vmul.f32 %v329, %v124
    %v332 = vmul.f32 %v329, %v123
    %v333 = vadd.f32 %v325, %v330
    %v334 = vadd.f32 %v326, %v331
    %v335 = vadd.f32 %v327, %v332
    %s336 = sld [smem:[#allocation6 + $0x14]]
    %v337 = vstv %s336
    %v338 = vmul.f32 %v337, %v133
    %v339 = vmul.f32 %v337, %v135
    %v340 = vmul.f32 %v337, %v137
    %v341 = vadd.f32 %v333, %v338
    %v342 = vadd.f32 %v334, %v339
    %v343 = vadd.f32 %v335, %v340
    %s344 = sld [smem:[#allocation6 + $0x15]]
    %v345 = vstv %s344
    %v346 = vmul.f32 %v345, %v139
    %v347 = vmul.f32 %v345, %v141
    %v348 = vmul.f32 %v345, %v143
    %v349 = vadd.f32 %v341, %v346
    %v350 = vadd.f32 %v342, %v347
    %v351 = vadd.f32 %v343, %v348
    %s352 = sld [smem:[#allocation6 + $0x16]]
    %v353 = vstv %s352
    %v354 = vmul.f32 %v353, %v116
    %v355 = vmul.f32 %v353, %v117
    %v356 = vmul.f32 %v353, %v118
    %v357 = vadd.f32 %v349, %v354
    %v358 = vadd.f32 %v350, %v355
    %v359 = vadd.f32 %v351, %v356
    %s360 = sld [smem:[#allocation6 + $0x17]]
    %v361 = vstv %s360
    %v362 = vmul.f32 %v361, %v145
    %v363 = vmul.f32 %v361, %v147
    %v364 = vmul.f32 %v361, %v149
    %v365 = vadd.f32 %v357, %v362
    %v366 = vadd.f32 %v358, %v363
    %v367 = vadd.f32 %v359, %v364
    %s368 = sld [smem:[#allocation6 + $0x18]]
    %v369 = vstv %s368
    %v370 = vmul.f32 %v369, %v158
    %v371 = vmul.f32 %v369, %v160
    %v372 = vmul.f32 %v369, %v162
    %v373 = vadd.f32 %v365, %v370
    %v374 = vadd.f32 %v366, %v371
    %v375 = vadd.f32 %v367, %v372
    %s376 = sld [smem:[#allocation6 + $0x19]]
    %v377 = vstv %s376
    %v378 = vmul.f32 %v377, %v155
    %v379 = vmul.f32 %v377, %v154
    %v380 = vmul.f32 %v377, %v156
    %v381 = vadd.f32 %v373, %v378
    %v382 = vadd.f32 %v374, %v379
    %v383 = vadd.f32 %v375, %v380
    %s384 = sld [smem:[#allocation6 + $0x1a]]
    %v385 = vstv %s384
    %v386 = vmul.f32 %v385, %v164
    %v387 = vmul.f32 %v385, %v166
    %v388 = vmul.f32 %v385, %v168
    %v389 = vadd.f32 %v381, %v386
    %v390 = vadd.f32 %v382, %v387
    %v391 = vadd.f32 %v383, %v388
    %s392 = sld [smem:[#allocation7 + $0x2]]
    %v393 = vstv %s392
    %v394 = vadd.f32 %v389, %v393
    %v395 = vadd.f32 %v390, %v393
    %v396 = vadd.f32 %v391, %v393
    %v397 = vsel %vm113, %v394, 0.0
    %v398 = vsel %vm114, %v395, 0.0
    %v399 = vsel %vm115, %v396, 0.0
    %s400 = sld [smem:[#allocation6 + $0x1b]]
    %v401 = vstv %s400
    %v402 = vmul.f32 %v401, %v127
    %v403 = vmul.f32 %v401, %v129
    %v404 = vmul.f32 %v401, %v131
    %s405 = sld [smem:[#allocation6 + $0x1c]]
    %v406 = vstv %s405
    %v407 = vmul.f32 %v406, %v125
    %v408 = vmul.f32 %v406, %v124
    %v409 = vmul.f32 %v406, %v123
    %v410 = vadd.f32 %v402, %v407
    %v411 = vadd.f32 %v403, %v408
    %v412 = vadd.f32 %v404, %v409
    %s413 = sld [smem:[#allocation6 + $0x1d]]
    %v414 = vstv %s413
    %v415 = vmul.f32 %v414, %v133
    %v416 = vmul.f32 %v414, %v135
    %v417 = vmul.f32 %v414, %v137
    %v418 = vadd.f32 %v410, %v415
    %v419 = vadd.f32 %v411, %v416
    %v420 = vadd.f32 %v412, %v417
    %s421 = sld [smem:[#allocation6 + $0x1e]]
    %v422 = vstv %s421
    %v423 = vmul.f32 %v422, %v139
    %v424 = vmul.f32 %v422, %v141
    %v425 = vmul.f32 %v422, %v143
    %v426 = vadd.f32 %v418, %v423
    %v427 = vadd.f32 %v419, %v424
    %v428 = vadd.f32 %v420, %v425
    %s429 = sld [smem:[#allocation6 + $0x1f]]
    %v430 = vstv %s429
    %v431 = vmul.f32 %v430, %v116
    %v432 = vmul.f32 %v430, %v117
    %v433 = vmul.f32 %v430, %v118
    %v434 = vadd.f32 %v426, %v431
    %v435 = vadd.f32 %v427, %v432
    %v436 = vadd.f32 %v428, %v433
    %s437 = sld [smem:[#allocation6 + $0x20]]
    %v438 = vstv %s437
    %v439 = vmul.f32 %v438, %v145
    %v440 = vmul.f32 %v438, %v147
    %v441 = vmul.f32 %v438, %v149
    %v442 = vadd.f32 %v434, %v439
    %v443 = vadd.f32 %v435, %v440
    %v444 = vadd.f32 %v436, %v441
    %s445 = sld [smem:[#allocation6 + $0x21]]
    %v446 = vstv %s445
    %v447 = vmul.f32 %v446, %v158
    %v448 = vmul.f32 %v446, %v160
    %v449 = vmul.f32 %v446, %v162
    %v450 = vadd.f32 %v442, %v447
    %v451 = vadd.f32 %v443, %v448
    %v452 = vadd.f32 %v444, %v449
    %s453 = sld [smem:[#allocation6 + $0x22]]
    %v454 = vstv %s453
    %v455 = vmul.f32 %v454, %v155
    %v456 = vmul.f32 %v454, %v154
    %v457 = vmul.f32 %v454, %v156
    %v458 = vadd.f32 %v450, %v455
    %v459 = vadd.f32 %v451, %v456
    %v460 = vadd.f32 %v452, %v457
    %s461 = sld [smem:[#allocation6 + $0x23]]
    %v462 = vstv %s461
    %v463 = vmul.f32 %v462, %v164
    %v464 = vmul.f32 %v462, %v166
    %v465 = vmul.f32 %v462, %v168
    %v466 = vadd.f32 %v458, %v463
    %v467 = vadd.f32 %v459, %v464
    %v468 = vadd.f32 %v460, %v465
    %s469 = sld [smem:[#allocation7 + $0x3]]
    %v470 = vstv %s469
    %v471 = vadd.f32 %v466, %v470
    %v472 = vadd.f32 %v467, %v470
    %v473 = vadd.f32 %v468, %v470
    %v474 = vsel %vm113, %v471, 0.0
    %v475 = vsel %vm114, %v472, 0.0
    %v476 = vsel %vm115, %v473, 0.0
    %v477 = vrot.slane %v243, 7
    %v478 = vrot.slane %v244, 7
    %v479 = vrot.slane %v245, 7
    %v480 = vsel %vm122, %v477, %v478
    %v481 = vsel %vm122, %v479, %v477
    %482 = vrot.lane.b32.xlu0 %v481, 1
    %v483 = vpop.permute.xlu0 %482
    %484 = vrot.lane.b32.xlu0 %v480, 1
    %v485 = vpop.permute.xlu0 %484
    %486 = vrot.lane.b32.xlu0 %v481, 127
    %v487 = vpop.permute.xlu0 %486
    %488 = vrot.lane.b32.xlu0 %v480, 127
    %v489 = vpop.permute.xlu0 %488
    %490 = vrot.lane.b32.xlu0 %v243, 1
    %v491 = vpop.permute.xlu0 %490
    %492 = vrot.lane.b32.xlu0 %v244, 1
    %v493 = vpop.permute.xlu0 %492
    %494 = vrot.lane.b32.xlu0 %v243, 127
    %v495 = vpop.permute.xlu0 %494
    %496 = vrot.lane.b32.xlu0 %v244, 127
    %v497 = vpop.permute.xlu0 %496
    %v498 = vrot.slane %v243, 1
    %v499 = vrot.slane %v244, 1
    %v500 = vrot.slane %v245, 1
    %v501 = vsel %vm153, %v499, %v500
    %v502 = vsel %vm153, %v498, %v499
    %503 = vrot.lane.b32.xlu0 %v502, 1
    %v504 = vpop.permute.xlu0 %503
    %505 = vrot.lane.b32.xlu0 %v501, 1
    %v506 = vpop.permute.xlu0 %505
    %507 = vrot.lane.b32.xlu0 %v502, 127
    %v508 = vpop.permute.xlu0 %507
    %509 = vrot.lane.b32.xlu0 %v501, 127
    %v510 = vpop.permute.xlu0 %509
    %v511 = vrot.slane %v320, 7
    %v512 = vrot.slane %v321, 7
    %v513 = vrot.slane %v322, 7
    %v514 = vsel %vm122, %v511, %v512
    %v515 = vsel %vm122, %v513, %v511
    %516 = vrot.lane.b32.xlu0 %v515, 1
    %v517 = vpop.permute.xlu0 %516
    %518 = vrot.lane.b32.xlu0 %v514, 1
    %v519 = vpop.permute.xlu0 %518
    %520 = vrot.lane.b32.xlu0 %v515, 127
    %v521 = vpop.permute.xlu0 %520
    %522 = vrot.lane.b32.xlu0 %v514, 127
    %v523 = vpop.permute.xlu0 %522
    %524 = vrot.lane.b32.xlu0 %v320, 1
    %v525 = vpop.permute.xlu0 %524
    %526 = vrot.lane.b32.xlu0 %v321, 1
    %v527 = vpop.permute.xlu0 %526
    %528 = vrot.lane.b32.xlu0 %v320, 127
    %v529 = vpop.permute.xlu0 %528
    %530 = vrot.lane.b32.xlu0 %v321, 127
    %v531 = vpop.permute.xlu0 %530
    %v532 = vrot.slane %v320, 1
    %v533 = vrot.slane %v321, 1
    %v534 = vrot.slane %v322, 1
    %v535 = vsel %vm153, %v533, %v534
    %v536 = vsel %vm153, %v532, %v533
    %537 = vrot.lane.b32.xlu0 %v536, 1
    %v538 = vpop.permute.xlu0 %537
    %539 = vrot.lane.b32.xlu0 %v535, 1
    %v540 = vpop.permute.xlu0 %539
    %541 = vrot.lane.b32.xlu0 %v536, 127
    %v542 = vpop.permute.xlu0 %541
    %543 = vrot.lane.b32.xlu0 %v535, 127
    %v544 = vpop.permute.xlu0 %543
    %v545 = vrot.slane %v397, 7
    %v546 = vrot.slane %v398, 7
    %v547 = vrot.slane %v399, 7
    %v548 = vsel %vm122, %v545, %v546
    %v549 = vsel %vm122, %v547, %v545
    %550 = vrot.lane.b32.xlu0 %v549, 1
    %v551 = vpop.permute.xlu0 %550
    %552 = vrot.lane.b32.xlu0 %v548, 1
    %v553 = vpop.permute.xlu0 %552
    %554 = vrot.lane.b32.xlu0 %v549, 127
    %v555 = vpop.permute.xlu0 %554
    %556 = vrot.lane.b32.xlu0 %v548, 127
    %v557 = vpop.permute.xlu0 %556
    %558 = vrot.lane.b32.xlu0 %v397, 1
    %v559 = vpop.permute.xlu0 %558
    %560 = vrot.lane.b32.xlu0 %v398, 1
    %v561 = vpop.permute.xlu0 %560
    %562 = vrot.lane.b32.xlu0 %v397, 127
    %v563 = vpop.permute.xlu0 %562
    %564 = vrot.lane.b32.xlu0 %v398, 127
    %v565 = vpop.permute.xlu0 %564
    %v566 = vrot.slane %v397, 1
    %v567 = vrot.slane %v398, 1
    %v568 = vrot.slane %v399, 1
    %v569 = vsel %vm153, %v567, %v568
    %v570 = vsel %vm153, %v566, %v567
    %571 = vrot.lane.b32.xlu0 %v570, 1
    %v572 = vpop.permute.xlu0 %571
    %573 = vrot.lane.b32.xlu0 %v569, 1
    %v574 = vpop.permute.xlu0 %573
    %575 = vrot.lane.b32.xlu0 %v570, 127
    %v576 = vpop.permute.xlu0 %575
    %577 = vrot.lane.b32.xlu0 %v569, 127
    %v578 = vpop.permute.xlu0 %577
    %v579 = vrot.slane %v474, 7
    %v580 = vrot.slane %v475, 7
    %v581 = vrot.slane %v476, 7
    %v582 = vsel %vm122, %v579, %v580
    %v583 = vsel %vm122, %v581, %v579
    %584 = vrot.lane.b32.xlu0 %v583, 1
    %v585 = vpop.permute.xlu0 %584
    %586 = vrot.lane.b32.xlu0 %v582, 1
    %v587 = vpop.permute.xlu0 %586
    %588 = vrot.lane.b32.xlu0 %v583, 127
    %v589 = vpop.permute.xlu0 %588
    %590 = vrot.lane.b32.xlu0 %v582, 127
    %v591 = vpop.permute.xlu0 %590
    %592 = vrot.lane.b32.xlu0 %v474, 1
    %v593 = vpop.permute.xlu0 %592
    %594 = vrot.lane.b32.xlu0 %v475, 1
    %v595 = vpop.permute.xlu0 %594
    %596 = vrot.lane.b32.xlu0 %v474, 127
    %v597 = vpop.permute.xlu0 %596
    %598 = vrot.lane.b32.xlu0 %v475, 127
    %v599 = vpop.permute.xlu0 %598
    %v600 = vrot.slane %v474, 1
    %v601 = vrot.slane %v475, 1
    %v602 = vrot.slane %v476, 1
    %v603 = vsel %vm153, %v601, %v602
    %v604 = vsel %vm153, %v600, %v601
    %605 = vrot.lane.b32.xlu0 %v604, 1
    %v606 = vpop.permute.xlu0 %605
    %607 = vrot.lane.b32.xlu0 %v603, 1
    %v608 = vpop.permute.xlu0 %607
    %609 = vrot.lane.b32.xlu0 %v604, 127
    %v610 = vpop.permute.xlu0 %609
    %611 = vrot.lane.b32.xlu0 %v603, 127
    %v612 = vpop.permute.xlu0 %611
    %s613 = sld [smem:[#allocation9]]
    %v614 = vstv %s613
    %v615 = vmul.f32 %v614, %v483
    %v616 = vmul.f32 %v614, %v485
    %s617 = sld [smem:[#allocation9 + $0x1]]
    %v618 = vstv %s617
    %v619 = vmul.f32 %v618, %v481
    %v620 = vmul.f32 %v618, %v480
    %v621 = vadd.f32 %v615, %v619
    %v622 = vadd.f32 %v616, %v620
    %s623 = sld [smem:[#allocation9 + $0x2]]
    %v624 = vstv %s623
    %v625 = vmul.f32 %v624, %v487
    %v626 = vmul.f32 %v624, %v489
    %v627 = vadd.f32 %v621, %v625
    %v628 = vadd.f32 %v622, %v626
    %s629 = sld [smem:[#allocation9 + $0x3]]
    %v630 = vstv %s629
    %v631 = vmul.f32 %v630, %v491
    %v632 = vmul.f32 %v630, %v493
    %v633 = vadd.f32 %v627, %v631
    %v634 = vadd.f32 %v628, %v632
    %s635 = sld [smem:[#allocation9 + $0x4]]
    %v636 = vstv %s635
    %v637 = vmul.f32 %v636, %v243
    %v638 = vmul.f32 %v636, %v244
    %v639 = vadd.f32 %v633, %v637
    %v640 = vadd.f32 %v634, %v638
    %s641 = sld [smem:[#allocation9 + $0x5]]
    %v642 = vstv %s641
    %v643 = vmul.f32 %v642, %v495
    %v644 = vmul.f32 %v642, %v497
    %v645 = vadd.f32 %v639, %v643
    %v646 = vadd.f32 %v640, %v644
    %s647 = sld [smem:[#allocation9 + $0x6]]
    %v648 = vstv %s647
    %v649 = vmul.f32 %v648, %v504
    %v650 = vmul.f32 %v648, %v506
    %v651 = vadd.f32 %v645, %v649
    %v652 = vadd.f32 %v646, %v650
    %s653 = sld [smem:[#allocation9 + $0x7]]
    %v654 = vstv %s653
    %v655 = vmul.f32 %v654, %v502
    %v656 = vmul.f32 %v654, %v501
    %v657 = vadd.f32 %v651, %v655
    %v658 = vadd.f32 %v652, %v656
    %s659 = sld [smem:[#allocation9 + $0x8]]
    %v660 = vstv %s659
    %v661 = vmul.f32 %v660, %v508
    %v662 = vmul.f32 %v660, %v510
    %v663 = vadd.f32 %v657, %v661
    %v664 = vadd.f32 %v658, %v662
    %s665 = sld [smem:[#allocation9 + $0x9]]
    %v666 = vstv %s665
    %v667 = vmul.f32 %v666, %v517
    %v668 = vmul.f32 %v666, %v519
    %v669 = vadd.f32 %v663, %v667
    %v670 = vadd.f32 %v664, %v668
    %s671 = sld [smem:[#allocation9 + $0xa]]
    %v672 = vstv %s671
    %v673 = vmul.f32 %v672, %v515
    %v674 = vmul.f32 %v672, %v514
    %v675 = vadd.f32 %v669, %v673
    %v676 = vadd.f32 %v670, %v674
    %s677 = sld [smem:[#allocation9 + $0xb]]
    %v678 = vstv %s677
    %v679 = vmul.f32 %v678, %v521
    %v680 = vmul.f32 %v678, %v523
    %v681 = vadd.f32 %v675, %v679
    %v682 = vadd.f32 %v676, %v680
    %s683 = sld [smem:[#allocation9 + $0xc]]
    %v684 = vstv %s683
    %v685 = vmul.f32 %v684, %v525
    %v686 = vmul.f32 %v684, %v527
    %v687 = vadd.f32 %v681, %v685
    %v688 = vadd.f32 %v682, %v686
    %s689 = sld [smem:[#allocation9 + $0xd]]
    %v690 = vstv %s689
    %v691 = vmul.f32 %v690, %v320
    %v692 = vmul.f32 %v690, %v321
    %v693 = vadd.f32 %v687, %v691
    %v694 = vadd.f32 %v688, %v692
    %s695 = sld [smem:[#allocation9 + $0xe]]
    %v696 = vstv %s695
    %v697 = vmul.f32 %v696, %v529
    %v698 = vmul.f32 %v696, %v531
    %v699 = vadd.f32 %v693, %v697
    %v700 = vadd.f32 %v694, %v698
    %s701 = sld [smem:[#allocation9 + $0xf]]
    %v702 = vstv %s701
    %v703 = vmul.f32 %v702, %v538
    %v704 = vmul.f32 %v702, %v540
    %v705 = vadd.f32 %v699, %v703
    %v706 = vadd.f32 %v700, %v704
    %s707 = sld [smem:[#allocation9 + $0x10]]
    %v708 = vstv %s707
    %v709 = vmul.f32 %v708, %v536
    %v710 = vmul.f32 %v708, %v535
    %v711 = vadd.f32 %v705, %v709
    %v712 = vadd.f32 %v706, %v710
    %s713 = sld [smem:[#allocation9 + $0x11]]
    %v714 = vstv %s713
    %v715 = vmul.f32 %v714, %v542
    %v716 = vmul.f32 %v714, %v544
    %v717 = vadd.f32 %v711, %v715
    %v718 = vadd.f32 %v712, %v716
    %s719 = sld [smem:[#allocation9 + $0x12]]
    %v720 = vstv %s719
    %v721 = vmul.f32 %v720, %v551
    %v722 = vmul.f32 %v720, %v553
    %v723 = vadd.f32 %v717, %v721
    %v724 = vadd.f32 %v718, %v722
    %s725 = sld [smem:[#allocation9 + $0x13]]
    %v726 = vstv %s725
    %v727 = vmul.f32 %v726, %v549
    %v728 = vmul.f32 %v726, %v548
    %v729 = vadd.f32 %v723, %v727
    %v730 = vadd.f32 %v724, %v728
    %s731 = sld [smem:[#allocation9 + $0x14]]
    %v732 = vstv %s731
    %v733 = vmul.f32 %v732, %v555
    %v734 = vmul.f32 %v732, %v557
    %v735 = vadd.f32 %v729, %v733
    %v736 = vadd.f32 %v730, %v734
    %s737 = sld [smem:[#allocation9 + $0x15]]
    %v738 = vstv %s737
    %v739 = vmul.f32 %v738, %v559
    %v740 = vmul.f32 %v738, %v561
    %v741 = vadd.f32 %v735, %v739
    %v742 = vadd.f32 %v736, %v740
    %s743 = sld [smem:[#allocation9 + $0x16]]
    %v744 = vstv %s743
    %v745 = vmul.f32 %v744, %v397
    %v746 = vmul.f32 %v744, %v398
    %v747 = vadd.f32 %v741, %v745
    %v748 = vadd.f32 %v742, %v746
    %s749 = sld [smem:[#allocation9 + $0x17]]
    %v750 = vstv %s749
    %v751 = vmul.f32 %v750, %v563
    %v752 = vmul.f32 %v750, %v565
    %v753 = vadd.f32 %v747, %v751
    %v754 = vadd.f32 %v748, %v752
    %s755 = sld [smem:[#allocation9 + $0x18]]
    %v756 = vstv %s755
    %v757 = vmul.f32 %v756, %v572
    %v758 = vmul.f32 %v756, %v574
    %v759 = vadd.f32 %v753, %v757
    %v760 = vadd.f32 %v754, %v758
    %s761 = sld [smem:[#allocation9 + $0x19]]
    %v762 = vstv %s761
    %v763 = vmul.f32 %v762, %v570
    %v764 = vmul.f32 %v762, %v569
    %v765 = vadd.f32 %v759, %v763
    %v766 = vadd.f32 %v760, %v764
    %s767 = sld [smem:[#allocation9 + $0x1a]]
    %v768 = vstv %s767
    %v769 = vmul.f32 %v768, %v576
    %v770 = vmul.f32 %v768, %v578
    %v771 = vadd.f32 %v765, %v769
    %v772 = vadd.f32 %v766, %v770
    %s773 = sld [smem:[#allocation9 + $0x1b]]
    %v774 = vstv %s773
    %v775 = vmul.f32 %v774, %v585
    %v776 = vmul.f32 %v774, %v587
    %v777 = vadd.f32 %v771, %v775
    %v778 = vadd.f32 %v772, %v776
    %s779 = sld [smem:[#allocation9 + $0x1c]]
    %v780 = vstv %s779
    %v781 = vmul.f32 %v780, %v583
    %v782 = vmul.f32 %v780, %v582
    %v783 = vadd.f32 %v777, %v781
    %v784 = vadd.f32 %v778, %v782
    %s785 = sld [smem:[#allocation9 + $0x1d]]
    %v786 = vstv %s785
    %v787 = vmul.f32 %v786, %v589
    %v788 = vmul.f32 %v786, %v591
    %v789 = vadd.f32 %v783, %v787
    %v790 = vadd.f32 %v784, %v788
    %s791 = sld [smem:[#allocation9 + $0x1e]]
    %v792 = vstv %s791
    %v793 = vmul.f32 %v792, %v593
    %v794 = vmul.f32 %v792, %v595
    %v795 = vadd.f32 %v789, %v793
    %v796 = vadd.f32 %v790, %v794
    %s797 = sld [smem:[#allocation9 + $0x1f]]
    %v798 = vstv %s797
    %v799 = vmul.f32 %v798, %v474
    %v800 = vmul.f32 %v798, %v475
    %v801 = vadd.f32 %v795, %v799
    %v802 = vadd.f32 %v796, %v800
    %s803 = sld [smem:[#allocation9 + $0x20]]
    %v804 = vstv %s803
    %v805 = vmul.f32 %v804, %v597
    %v806 = vmul.f32 %v804, %v599
    %v807 = vadd.f32 %v801, %v805
    %v808 = vadd.f32 %v802, %v806
    %s809 = sld [smem:[#allocation9 + $0x21]]
    %v810 = vstv %s809
    %v811 = vmul.f32 %v810, %v606
    %v812 = vmul.f32 %v810, %v608
    %v813 = vadd.f32 %v807, %v811
    %v814 = vadd.f32 %v808, %v812
    %s815 = sld [smem:[#allocation9 + $0x22]]
    %v816 = vstv %s815
    %v817 = vmul.f32 %v816, %v604
    %v818 = vmul.f32 %v816, %v603
    %v819 = vadd.f32 %v813, %v817
    %v820 = vadd.f32 %v814, %v818
    %s821 = sld [smem:[#allocation9 + $0x23]]
    %v822 = vstv %s821
    %v823 = vmul.f32 %v822, %v610
    %v824 = vmul.f32 %v822, %v612
    %v825 = vadd.f32 %v819, %v823
    %v826 = vadd.f32 %v820, %v824
    %s827 = sld [smem:[#allocation10]]
    %v828 = vstv %s827
    %v829 = vadd.f32 %v825, %v828
    %v830 = vadd.f32 %v826, %v828
    %831 = vst [vmem:[#allocation12] sm:$0xff] %v829
    %832 = vst [vmem:[#allocation12 + $0x8] sm:$0xff] %v830
    %s833 = sld [smem:[#allocation9 + $0x24]]
    %v834 = vstv %s833
    %v835 = vmul.f32 %v834, %v483
    %v836 = vmul.f32 %v834, %v485
    %s837 = sld [smem:[#allocation9 + $0x25]]
    %v838 = vstv %s837
    %v839 = vmul.f32 %v838, %v481
    %v840 = vmul.f32 %v838, %v480
    %v841 = vadd.f32 %v835, %v839
    %v842 = vadd.f32 %v836, %v840
    %s843 = sld [smem:[#allocation9 + $0x26]]
    %v844 = vstv %s843
    %v845 = vmul.f32 %v844, %v487
    %v846 = vmul.f32 %v844, %v489
    %v847 = vadd.f32 %v841, %v845
    %v848 = vadd.f32 %v842, %v846
    %s849 = sld [smem:[#allocation9 + $0x27]]
    %v850 = vstv %s849
    %v851 = vmul.f32 %v850, %v491
    %v852 = vmul.f32 %v850, %v493
    %v853 = vadd.f32 %v847, %v851
    %v854 = vadd.f32 %v848, %v852
    %s855 = sld [smem:[#allocation9 + $0x28]]
    %v856 = vstv %s855
    %v857 = vmul.f32 %v856, %v243
    %v858 = vmul.f32 %v856, %v244
    %v859 = vadd.f32 %v853, %v857
    %v860 = vadd.f32 %v854, %v858
    %s861 = sld [smem:[#allocation9 + $0x29]]
    %v862 = vstv %s861
    %v863 = vmul.f32 %v862, %v495
    %v864 = vmul.f32 %v862, %v497
    %v865 = vadd.f32 %v859, %v863
    %v866 = vadd.f32 %v860, %v864
    %s867 = sld [smem:[#allocation9 + $0x2a]]
    %v868 = vstv %s867
    %v869 = vmul.f32 %v868, %v504
    %v870 = vmul.f32 %v868, %v506
    %v871 = vadd.f32 %v865, %v869
    %v872 = vadd.f32 %v866, %v870
    %s873 = sld [smem:[#allocation9 + $0x2b]]
    %v874 = vstv %s873
    %v875 = vmul.f32 %v874, %v502
    %v876 = vmul.f32 %v874, %v501
    %v877 = vadd.f32 %v871, %v875
    %v878 = vadd.f32 %v872, %v876
    %s879 = sld [smem:[#allocation9 + $0x2c]]
    %v880 = vstv %s879
    %v881 = vmul.f32 %v880, %v508
    %v882 = vmul.f32 %v880, %v510
    %v883 = vadd.f32 %v877, %v881
    %v884 = vadd.f32 %v878, %v882
    %s885 = sld [smem:[#allocation9 + $0x2d]]
    %v886 = vstv %s885
    %v887 = vmul.f32 %v886, %v517
    %v888 = vmul.f32 %v886, %v519
    %v889 = vadd.f32 %v883, %v887
    %v890 = vadd.f32 %v884, %v888
    %s891 = sld [smem:[#allocation9 + $0x2e]]
    %v892 = vstv %s891
    %v893 = vmul.f32 %v892, %v515
    %v894 = vmul.f32 %v892, %v514
    %v895 = vadd.f32 %v889, %v893
    %v896 = vadd.f32 %v890, %v894
    %s897 = sld [smem:[#allocation9 + $0x2f]]
    %v898 = vstv %s897
    %v899 = vmul.f32 %v898, %v521
    %v900 = vmul.f32 %v898, %v523
    %v901 = vadd.f32 %v895, %v899
    %v902 = vadd.f32 %v896, %v900
    %s903 = sld [smem:[#allocation9 + $0x30]]
    %v904 = vstv %s903
    %v905 = vmul.f32 %v904, %v525
    %v906 = vmul.f32 %v904, %v527
    %v907 = vadd.f32 %v901, %v905
    %v908 = vadd.f32 %v902, %v906
    %s909 = sld [smem:[#allocation9 + $0x31]]
    %v910 = vstv %s909
    %v911 = vmul.f32 %v910, %v320
    %v912 = vmul.f32 %v910, %v321
    %v913 = vadd.f32 %v907, %v911
    %v914 = vadd.f32 %v908, %v912
    %s915 = sld [smem:[#allocation9 + $0x32]]
    %v916 = vstv %s915
    %v917 = vmul.f32 %v916, %v529
    %v918 = vmul.f32 %v916, %v531
    %v919 = vadd.f32 %v913, %v917
    %v920 = vadd.f32 %v914, %v918
    %s921 = sld [smem:[#allocation9 + $0x33]]
    %v922 = vstv %s921
    %v923 = vmul.f32 %v922, %v538
    %v924 = vmul.f32 %v922, %v540
    %v925 = vadd.f32 %v919, %v923
    %v926 = vadd.f32 %v920, %v924
    %s927 = sld [smem:[#allocation9 + $0x34]]
    %v928 = vstv %s927
    %v929 = vmul.f32 %v928, %v536
    %v930 = vmul.f32 %v928, %v535
    %v931 = vadd.f32 %v925, %v929
    %v932 = vadd.f32 %v926, %v930
    %s933 = sld [smem:[#allocation9 + $0x35]]
    %v934 = vstv %s933
    %v935 = vmul.f32 %v934, %v542
    %v936 = vmul.f32 %v934, %v544
    %v937 = vadd.f32 %v931, %v935
    %v938 = vadd.f32 %v932, %v936
    %s939 = sld [smem:[#allocation9 + $0x36]]
    %v940 = vstv %s939
    %v941 = vmul.f32 %v940, %v551
    %v942 = vmul.f32 %v940, %v553
    %v943 = vadd.f32 %v937, %v941
    %v944 = vadd.f32 %v938, %v942
    %s945 = sld [smem:[#allocation9 + $0x37]]
    %v946 = vstv %s945
    %v947 = vmul.f32 %v946, %v549
    %v948 = vmul.f32 %v946, %v548
    %v949 = vadd.f32 %v943, %v947
    %v950 = vadd.f32 %v944, %v948
    %s951 = sld [smem:[#allocation9 + $0x38]]
    %v952 = vstv %s951
    %v953 = vmul.f32 %v952, %v555
    %v954 = vmul.f32 %v952, %v557
    %v955 = vadd.f32 %v949, %v953
    %v956 = vadd.f32 %v950, %v954
    %s957 = sld [smem:[#allocation9 + $0x39]]
    %v958 = vstv %s957
    %v959 = vmul.f32 %v958, %v559
    %v960 = vmul.f32 %v958, %v561
    %v961 = vadd.f32 %v955, %v959
    %v962 = vadd.f32 %v956, %v960
    %s963 = sld [smem:[#allocation9 + $0x3a]]
    %v964 = vstv %s963
    %v965 = vmul.f32 %v964, %v397
    %v966 = vmul.f32 %v964, %v398
    %v967 = vadd.f32 %v961, %v965
    %v968 = vadd.f32 %v962, %v966
    %s969 = sld [smem:[#allocation9 + $0x3b]]
    %v970 = vstv %s969
    %v971 = vmul.f32 %v970, %v563
    %v972 = vmul.f32 %v970, %v565
    %v973 = vadd.f32 %v967, %v971
    %v974 = vadd.f32 %v968, %v972
    %s975 = sld [smem:[#allocation9 + $0x3c]]
    %v976 = vstv %s975
    %v977 = vmul.f32 %v976, %v572
    %v978 = vmul.f32 %v976, %v574
    %v979 = vadd.f32 %v973, %v977
    %v980 = vadd.f32 %v974, %v978
    %s981 = sld [smem:[#allocation9 + $0x3d]]
    %v982 = vstv %s981
    %v983 = vmul.f32 %v982, %v570
    %v984 = vmul.f32 %v982, %v569
    %v985 = vadd.f32 %v979, %v983
    %v986 = vadd.f32 %v980, %v984
    %s987 = sld [smem:[#allocation9 + $0x3e]]
    %v988 = vstv %s987
    %v989 = vmul.f32 %v988, %v576
    %v990 = vmul.f32 %v988, %v578
    %v991 = vadd.f32 %v985, %v989
    %v992 = vadd.f32 %v986, %v990
    %s993 = sld [smem:[#allocation9 + $0x3f]]
    %v994 = vstv %s993
    %v995 = vmul.f32 %v994, %v585
    %v996 = vmul.f32 %v994, %v587
    %v997 = vadd.f32 %v991, %v995
    %v998 = vadd.f32 %v992, %v996
    %s999 = sld [smem:[#allocation9 + $0x40]]
    %v1000 = vstv %s999
    %v1001 = vmul.f32 %v1000, %v583
    %v1002 = vmul.f32 %v1000, %v582
    %v1003 = vadd.f32 %v997, %v1001
    %v1004 = vadd.f32 %v998, %v1002
    %s1005 = sld [smem:[#allocation9 + $0x41]]
    %v1006 = vstv %s1005
    %v1007 = vmul.f32 %v1006, %v589
    %v1008 = vmul.f32 %v1006, %v591
    %v1009 = vadd.f32 %v1003, %v1007
    %v1010 = vadd.f32 %v1004, %v1008
    %s1011 = sld [smem:[#allocation9 + $0x42]]
    %v1012 = vstv %s1011
    %v1013 = vmul.f32 %v1012, %v593
    %v1014 = vmul.f32 %v1012, %v595
    %v1015 = vadd.f32 %v1009, %v1013
    %v1016 = vadd.f32 %v1010, %v1014
    %s1017 = sld [smem:[#allocation9 + $0x43]]
    %v1018 = vstv %s1017
    %v1019 = vmul.f32 %v1018, %v474
    %v1020 = vmul.f32 %v1018, %v475
    %v1021 = vadd.f32 %v1015, %v1019
    %v1022 = vadd.f32 %v1016, %v1020
    %s1023 = sld [smem:[#allocation9 + $0x44]]
    %v1024 = vstv %s1023
    %v1025 = vmul.f32 %v1024, %v597
    %v1026 = vmul.f32 %v1024, %v599
    %v1027 = vadd.f32 %v1021, %v1025
    %v1028 = vadd.f32 %v1022, %v1026
    %s1029 = sld [smem:[#allocation9 + $0x45]]
    %v1030 = vstv %s1029
    %v1031 = vmul.f32 %v1030, %v606
    %v1032 = vmul.f32 %v1030, %v608
    %v1033 = vadd.f32 %v1027, %v1031
    %v1034 = vadd.f32 %v1028, %v1032
    %s1035 = sld [smem:[#allocation9 + $0x46]]
    %v1036 = vstv %s1035
    %v1037 = vmul.f32 %v1036, %v604
    %v1038 = vmul.f32 %v1036, %v603
    %v1039 = vadd.f32 %v1033, %v1037
    %v1040 = vadd.f32 %v1034, %v1038
    %s1041 = sld [smem:[#allocation9 + $0x47]]
    %v1042 = vstv %s1041
    %v1043 = vmul.f32 %v1042, %v610
    %v1044 = vmul.f32 %v1042, %v612
    %v1045 = vadd.f32 %v1039, %v1043
    %v1046 = vadd.f32 %v1040, %v1044
    %s1047 = sld [smem:[#allocation10 + $0x1]]
    %v1048 = vstv %s1047
    %v1049 = vadd.f32 %v1045, %v1048
    %v1050 = vadd.f32 %v1046, %v1048
    %s1051 = scalar_lea.vmem [#allocation12], 16
    %1052 = vst [vmem:[%s1051] sm:$0xff] %v1049
    %1053 = vst [vmem:[%s1051 + $0x8] sm:$0xff] %v1050
    %s1054 = sld [smem:[#allocation9 + $0x48]]
    %v1055 = vstv %s1054
    %v1056 = vmul.f32 %v1055, %v483
    %v1057 = vmul.f32 %v1055, %v485
    %s1058 = sld [smem:[#allocation9 + $0x49]]
    %v1059 = vstv %s1058
    %v1060 = vmul.f32 %v1059, %v481
    %v1061 = vmul.f32 %v1059, %v480
    %v1062 = vadd.f32 %v1056, %v1060
    %v1063 = vadd.f32 %v1057, %v1061
    %s1064 = sld [smem:[#allocation9 + $0x4a]]
    %v1065 = vstv %s1064
    %v1066 = vmul.f32 %v1065, %v487
    %v1067 = vmul.f32 %v1065, %v489
    %v1068 = vadd.f32 %v1062, %v1066
    %v1069 = vadd.f32 %v1063, %v1067
    %s1070 = sld [smem:[#allocation9 + $0x4b]]
    %v1071 = vstv %s1070
    %v1072 = vmul.f32 %v1071, %v491
    %v1073 = vmul.f32 %v1071, %v493
    %v1074 = vadd.f32 %v1068, %v1072
    %v1075 = vadd.f32 %v1069, %v1073
    %s1076 = sld [smem:[#allocation9 + $0x4c]]
    %v1077 = vstv %s1076
    %v1078 = vmul.f32 %v1077, %v243
    %v1079 = vmul.f32 %v1077, %v244
    %v1080 = vadd.f32 %v1074, %v1078
    %v1081 = vadd.f32 %v1075, %v1079
    %s1082 = sld [smem:[#allocation9 + $0x4d]]
    %v1083 = vstv %s1082
    %v1084 = vmul.f32 %v1083, %v495
    %v1085 = vmul.f32 %v1083, %v497
    %v1086 = vadd.f32 %v1080, %v1084
    %v1087 = vadd.f32 %v1081, %v1085
    %s1088 = sld [smem:[#allocation9 + $0x4e]]
    %v1089 = vstv %s1088
    %v1090 = vmul.f32 %v1089, %v504
    %v1091 = vmul.f32 %v1089, %v506
    %v1092 = vadd.f32 %v1086, %v1090
    %v1093 = vadd.f32 %v1087, %v1091
    %s1094 = sld [smem:[#allocation9 + $0x4f]]
    %v1095 = vstv %s1094
    %v1096 = vmul.f32 %v1095, %v502
    %v1097 = vmul.f32 %v1095, %v501
    %v1098 = vadd.f32 %v1092, %v1096
    %v1099 = vadd.f32 %v1093, %v1097
    %s1100 = sld [smem:[#allocation9 + $0x50]]
    %v1101 = vstv %s1100
    %v1102 = vmul.f32 %v1101, %v508
    %v1103 = vmul.f32 %v1101, %v510
    %v1104 = vadd.f32 %v1098, %v1102
    %v1105 = vadd.f32 %v1099, %v1103
    %s1106 = sld [smem:[#allocation9 + $0x51]]
    %v1107 = vstv %s1106
    %v1108 = vmul.f32 %v1107, %v517
    %v1109 = vmul.f32 %v1107, %v519
    %v1110 = vadd.f32 %v1104, %v1108
    %v1111 = vadd.f32 %v1105, %v1109
    %s1112 = sld [smem:[#allocation9 + $0x52]]
    %v1113 = vstv %s1112
    %v1114 = vmul.f32 %v1113, %v515
    %v1115 = vmul.f32 %v1113, %v514
    %v1116 = vadd.f32 %v1110, %v1114
    %v1117 = vadd.f32 %v1111, %v1115
    %s1118 = sld [smem:[#allocation9 + $0x53]]
    %v1119 = vstv %s1118
    %v1120 = vmul.f32 %v1119, %v521
    %v1121 = vmul.f32 %v1119, %v523
    %v1122 = vadd.f32 %v1116, %v1120
    %v1123 = vadd.f32 %v1117, %v1121
    %s1124 = sld [smem:[#allocation9 + $0x54]]
    %v1125 = vstv %s1124
    %v1126 = vmul.f32 %v1125, %v525
    %v1127 = vmul.f32 %v1125, %v527
    %v1128 = vadd.f32 %v1122, %v1126
    %v1129 = vadd.f32 %v1123, %v1127
    %s1130 = sld [smem:[#allocation9 + $0x55]]
    %v1131 = vstv %s1130
    %v1132 = vmul.f32 %v1131, %v320
    %v1133 = vmul.f32 %v1131, %v321
    %v1134 = vadd.f32 %v1128, %v1132
    %v1135 = vadd.f32 %v1129, %v1133
    %s1136 = sld [smem:[#allocation9 + $0x56]]
    %v1137 = vstv %s1136
    %v1138 = vmul.f32 %v1137, %v529
    %v1139 = vmul.f32 %v1137, %v531
    %v1140 = vadd.f32 %v1134, %v1138
    %v1141 = vadd.f32 %v1135, %v1139
    %s1142 = sld [smem:[#allocation9 + $0x57]]
    %v1143 = vstv %s1142
    %v1144 = vmul.f32 %v1143, %v538
    %v1145 = vmul.f32 %v1143, %v540
    %v1146 = vadd.f32 %v1140, %v1144
    %v1147 = vadd.f32 %v1141, %v1145
    %s1148 = sld [smem:[#allocation9 + $0x58]]
    %v1149 = vstv %s1148
    %v1150 = vmul.f32 %v1149, %v536
    %v1151 = vmul.f32 %v1149, %v535
    %v1152 = vadd.f32 %v1146, %v1150
    %v1153 = vadd.f32 %v1147, %v1151
    %s1154 = sld [smem:[#allocation9 + $0x59]]
    %v1155 = vstv %s1154
    %v1156 = vmul.f32 %v1155, %v542
    %v1157 = vmul.f32 %v1155, %v544
    %v1158 = vadd.f32 %v1152, %v1156
    %v1159 = vadd.f32 %v1153, %v1157
    %s1160 = sld [smem:[#allocation9 + $0x5a]]
    %v1161 = vstv %s1160
    %v1162 = vmul.f32 %v1161, %v551
    %v1163 = vmul.f32 %v1161, %v553
    %v1164 = vadd.f32 %v1158, %v1162
    %v1165 = vadd.f32 %v1159, %v1163
    %s1166 = sld [smem:[#allocation9 + $0x5b]]
    %v1167 = vstv %s1166
    %v1168 = vmul.f32 %v1167, %v549
    %v1169 = vmul.f32 %v1167, %v548
    %v1170 = vadd.f32 %v1164, %v1168
    %v1171 = vadd.f32 %v1165, %v1169
    %s1172 = sld [smem:[#allocation9 + $0x5c]]
    %v1173 = vstv %s1172
    %v1174 = vmul.f32 %v1173, %v555
    %v1175 = vmul.f32 %v1173, %v557
    %v1176 = vadd.f32 %v1170, %v1174
    %v1177 = vadd.f32 %v1171, %v1175
    %s1178 = sld [smem:[#allocation9 + $0x5d]]
    %v1179 = vstv %s1178
    %v1180 = vmul.f32 %v1179, %v559
    %v1181 = vmul.f32 %v1179, %v561
    %v1182 = vadd.f32 %v1176, %v1180
    %v1183 = vadd.f32 %v1177, %v1181
    %s1184 = sld [smem:[#allocation9 + $0x5e]]
    %v1185 = vstv %s1184
    %v1186 = vmul.f32 %v1185, %v397
    %v1187 = vmul.f32 %v1185, %v398
    %v1188 = vadd.f32 %v1182, %v1186
    %v1189 = vadd.f32 %v1183, %v1187
    %s1190 = sld [smem:[#allocation9 + $0x5f]]
    %v1191 = vstv %s1190
    %v1192 = vmul.f32 %v1191, %v563
    %v1193 = vmul.f32 %v1191, %v565
    %v1194 = vadd.f32 %v1188, %v1192
    %v1195 = vadd.f32 %v1189, %v1193
    %s1196 = sld [smem:[#allocation9 + $0x60]]
    %v1197 = vstv %s1196
    %v1198 = vmul.f32 %v1197, %v572
    %v1199 = vmul.f32 %v1197, %v574
    %v1200 = vadd.f32 %v1194, %v1198
    %v1201 = vadd.f32 %v1195, %v1199
    %s1202 = sld [smem:[#allocation9 + $0x61]]
    %v1203 = vstv %s1202
    %v1204 = vmul.f32 %v1203, %v570
    %v1205 = vmul.f32 %v1203, %v569
    %v1206 = vadd.f32 %v1200, %v1204
    %v1207 = vadd.f32 %v1201, %v1205
    %s1208 = sld [smem:[#allocation9 + $0x62]]
    %v1209 = vstv %s1208
    %v1210 = vmul.f32 %v1209, %v576
    %v1211 = vmul.f32 %v1209, %v578
    %v1212 = vadd.f32 %v1206, %v1210
    %v1213 = vadd.f32 %v1207, %v1211
    %s1214 = sld [smem:[#allocation9 + $0x63]]
    %v1215 = vstv %s1214
    %v1216 = vmul.f32 %v1215, %v585
    %v1217 = vmul.f32 %v1215, %v587
    %v1218 = vadd.f32 %v1212, %v1216
    %v1219 = vadd.f32 %v1213, %v1217
    %s1220 = sld [smem:[#allocation9 + $0x64]]
    %v1221 = vstv %s1220
    %v1222 = vmul.f32 %v1221, %v583
    %v1223 = vmul.f32 %v1221, %v582
    %v1224 = vadd.f32 %v1218, %v1222
    %v1225 = vadd.f32 %v1219, %v1223
    %s1226 = sld [smem:[#allocation9 + $0x65]]
    %v1227 = vstv %s1226
    %v1228 = vmul.f32 %v1227, %v589
    %v1229 = vmul.f32 %v1227, %v591
    %v1230 = vadd.f32 %v1224, %v1228
    %v1231 = vadd.f32 %v1225, %v1229
    %s1232 = sld [smem:[#allocation9 + $0x66]]
    %v1233 = vstv %s1232
    %v1234 = vmul.f32 %v1233, %v593
    %v1235 = vmul.f32 %v1233, %v595
    %v1236 = vadd.f32 %v1230, %v1234
    %v1237 = vadd.f32 %v1231, %v1235
    %s1238 = sld [smem:[#allocation9 + $0x67]]
    %v1239 = vstv %s1238
    %v1240 = vmul.f32 %v1239, %v474
    %v1241 = vmul.f32 %v1239, %v475
    %v1242 = vadd.f32 %v1236, %v1240
    %v1243 = vadd.f32 %v1237, %v1241
    %s1244 = sld [smem:[#allocation9 + $0x68]]
    %v1245 = vstv %s1244
    %v1246 = vmul.f32 %v1245, %v597
    %v1247 = vmul.f32 %v1245, %v599
    %v1248 = vadd.f32 %v1242, %v1246
    %v1249 = vadd.f32 %v1243, %v1247
    %s1250 = sld [smem:[#allocation9 + $0x69]]
    %v1251 = vstv %s1250
    %v1252 = vmul.f32 %v1251, %v606
    %v1253 = vmul.f32 %v1251, %v608
    %v1254 = vadd.f32 %v1248, %v1252
    %v1255 = vadd.f32 %v1249, %v1253
    %s1256 = sld [smem:[#allocation9 + $0x6a]]
    %v1257 = vstv %s1256
    %v1258 = vmul.f32 %v1257, %v604
    %v1259 = vmul.f32 %v1257, %v603
    %v1260 = vadd.f32 %v1254, %v1258
    %v1261 = vadd.f32 %v1255, %v1259
    %s1262 = sld [smem:[#allocation9 + $0x6b]]
    %v1263 = vstv %s1262
    %v1264 = vmul.f32 %v1263, %v610
    %v1265 = vmul.f32 %v1263, %v612
    %v1266 = vadd.f32 %v1260, %v1264
    %v1267 = vadd.f32 %v1261, %v1265
    %s1268 = sld [smem:[#allocation10 + $0x2]]
    %v1269 = vstv %s1268
    %v1270 = vadd.f32 %v1266, %v1269
    %v1271 = vadd.f32 %v1267, %v1269
    %s1272 = scalar_lea.vmem [#allocation12], 32
    %1273 = vst [vmem:[%s1272] sm:$0xff] %v1270
    %1274 = vst [vmem:[%s1272 + $0x8] sm:$0xff] %v1271
    %s1275 = sld [smem:[#allocation9 + $0x6c]]
    %v1276 = vstv %s1275
    %v1277 = vmul.f32 %v1276, %v483
    %v1278 = vmul.f32 %v1276, %v485
    %s1279 = sld [smem:[#allocation9 + $0x6d]]
    %v1280 = vstv %s1279
    %v1281 = vmul.f32 %v1280, %v481
    %v1282 = vmul.f32 %v1280, %v480
    %v1283 = vadd.f32 %v1277, %v1281
    %v1284 = vadd.f32 %v1278, %v1282
    %s1285 = sld [smem:[#allocation9 + $0x6e]]
    %v1286 = vstv %s1285
    %v1287 = vmul.f32 %v1286, %v487
    %v1288 = vmul.f32 %v1286, %v489
    %v1289 = vadd.f32 %v1283, %v1287
    %v1290 = vadd.f32 %v1284, %v1288
    %s1291 = sld [smem:[#allocation9 + $0x6f]]
    %v1292 = vstv %s1291
    %v1293 = vmul.f32 %v1292, %v491
    %v1294 = vmul.f32 %v1292, %v493
    %v1295 = vadd.f32 %v1289, %v1293
    %v1296 = vadd.f32 %v1290, %v1294
    %s1297 = sld [smem:[#allocation9 + $0x70]]
    %v1298 = vstv %s1297
    %v1299 = vmul.f32 %v1298, %v243
    %v1300 = vmul.f32 %v1298, %v244
    %v1301 = vadd.f32 %v1295, %v1299
    %v1302 = vadd.f32 %v1296, %v1300
    %s1303 = sld [smem:[#allocation9 + $0x71]]
    %v1304 = vstv %s1303
    %v1305 = vmul.f32 %v1304, %v495
    %v1306 = vmul.f32 %v1304, %v497
    %v1307 = vadd.f32 %v1301, %v1305
    %v1308 = vadd.f32 %v1302, %v1306
    %s1309 = sld [smem:[#allocation9 + $0x72]]
    %v1310 = vstv %s1309
    %v1311 = vmul.f32 %v1310, %v504
    %v1312 = vmul.f32 %v1310, %v506
    %v1313 = vadd.f32 %v1307, %v1311
    %v1314 = vadd.f32 %v1308, %v1312
    %s1315 = sld [smem:[#allocation9 + $0x73]]
    %v1316 = vstv %s1315
    %v1317 = vmul.f32 %v1316, %v502
    %v1318 = vmul.f32 %v1316, %v501
    %v1319 = vadd.f32 %v1313, %v1317
    %v1320 = vadd.f32 %v1314, %v1318
    %s1321 = sld [smem:[#allocation9 + $0x74]]
    %v1322 = vstv %s1321
    %v1323 = vmul.f32 %v1322, %v508
    %v1324 = vmul.f32 %v1322, %v510
    %v1325 = vadd.f32 %v1319, %v1323
    %v1326 = vadd.f32 %v1320, %v1324
    %s1327 = sld [smem:[#allocation9 + $0x75]]
    %v1328 = vstv %s1327
    %v1329 = vmul.f32 %v1328, %v517
    %v1330 = vmul.f32 %v1328, %v519
    %v1331 = vadd.f32 %v1325, %v1329
    %v1332 = vadd.f32 %v1326, %v1330
    %s1333 = sld [smem:[#allocation9 + $0x76]]
    %v1334 = vstv %s1333
    %v1335 = vmul.f32 %v1334, %v515
    %v1336 = vmul.f32 %v1334, %v514
    %v1337 = vadd.f32 %v1331, %v1335
    %v1338 = vadd.f32 %v1332, %v1336
    %s1339 = sld [smem:[#allocation9 + $0x77]]
    %v1340 = vstv %s1339
    %v1341 = vmul.f32 %v1340, %v521
    %v1342 = vmul.f32 %v1340, %v523
    %v1343 = vadd.f32 %v1337, %v1341
    %v1344 = vadd.f32 %v1338, %v1342
    %s1345 = sld [smem:[#allocation9 + $0x78]]
    %v1346 = vstv %s1345
    %v1347 = vmul.f32 %v1346, %v525
    %v1348 = vmul.f32 %v1346, %v527
    %v1349 = vadd.f32 %v1343, %v1347
    %v1350 = vadd.f32 %v1344, %v1348
    %s1351 = sld [smem:[#allocation9 + $0x79]]
    %v1352 = vstv %s1351
    %v1353 = vmul.f32 %v1352, %v320
    %v1354 = vmul.f32 %v1352, %v321
    %v1355 = vadd.f32 %v1349, %v1353
    %v1356 = vadd.f32 %v1350, %v1354
    %s1357 = sld [smem:[#allocation9 + $0x7a]]
    %v1358 = vstv %s1357
    %v1359 = vmul.f32 %v1358, %v529
    %v1360 = vmul.f32 %v1358, %v531
    %v1361 = vadd.f32 %v1355, %v1359
    %v1362 = vadd.f32 %v1356, %v1360
    %s1363 = sld [smem:[#allocation9 + $0x7b]]
    %v1364 = vstv %s1363
    %v1365 = vmul.f32 %v1364, %v538
    %v1366 = vmul.f32 %v1364, %v540
    %v1367 = vadd.f32 %v1361, %v1365
    %v1368 = vadd.f32 %v1362, %v1366
    %s1369 = sld [smem:[#allocation9 + $0x7c]]
    %v1370 = vstv %s1369
    %v1371 = vmul.f32 %v1370, %v536
    %v1372 = vmul.f32 %v1370, %v535
    %v1373 = vadd.f32 %v1367, %v1371
    %v1374 = vadd.f32 %v1368, %v1372
    %s1375 = sld [smem:[#allocation9 + $0x7d]]
    %v1376 = vstv %s1375
    %v1377 = vmul.f32 %v1376, %v542
    %v1378 = vmul.f32 %v1376, %v544
    %v1379 = vadd.f32 %v1373, %v1377
    %v1380 = vadd.f32 %v1374, %v1378
    %s1381 = sld [smem:[#allocation9 + $0x7e]]
    %v1382 = vstv %s1381
    %v1383 = vmul.f32 %v1382, %v551
    %v1384 = vmul.f32 %v1382, %v553
    %v1385 = vadd.f32 %v1379, %v1383
    %v1386 = vadd.f32 %v1380, %v1384
    %s1387 = sld [smem:[#allocation9 + $0x7f]]
    %v1388 = vstv %s1387
    %v1389 = vmul.f32 %v1388, %v549
    %v1390 = vmul.f32 %v1388, %v548
    %v1391 = vadd.f32 %v1385, %v1389
    %v1392 = vadd.f32 %v1386, %v1390
    %s1393 = sld [smem:[#allocation9 + $0x80]]
    %v1394 = vstv %s1393
    %v1395 = vmul.f32 %v1394, %v555
    %v1396 = vmul.f32 %v1394, %v557
    %v1397 = vadd.f32 %v1391, %v1395
    %v1398 = vadd.f32 %v1392, %v1396
    %s1399 = sld [smem:[#allocation9 + $0x81]]
    %v1400 = vstv %s1399
    %v1401 = vmul.f32 %v1400, %v559
    %v1402 = vmul.f32 %v1400, %v561
    %v1403 = vadd.f32 %v1397, %v1401
    %v1404 = vadd.f32 %v1398, %v1402
    %s1405 = sld [smem:[#allocation9 + $0x82]]
    %v1406 = vstv %s1405
    %v1407 = vmul.f32 %v1406, %v397
    %v1408 = vmul.f32 %v1406, %v398
    %v1409 = vadd.f32 %v1403, %v1407
    %v1410 = vadd.f32 %v1404, %v1408
    %s1411 = sld [smem:[#allocation9 + $0x83]]
    %v1412 = vstv %s1411
    %v1413 = vmul.f32 %v1412, %v563
    %v1414 = vmul.f32 %v1412, %v565
    %v1415 = vadd.f32 %v1409, %v1413
    %v1416 = vadd.f32 %v1410, %v1414
    %s1417 = sld [smem:[#allocation9 + $0x84]]
    %v1418 = vstv %s1417
    %v1419 = vmul.f32 %v1418, %v572
    %v1420 = vmul.f32 %v1418, %v574
    %v1421 = vadd.f32 %v1415, %v1419
    %v1422 = vadd.f32 %v1416, %v1420
    %s1423 = sld [smem:[#allocation9 + $0x85]]
    %v1424 = vstv %s1423
    %v1425 = vmul.f32 %v1424, %v570
    %v1426 = vmul.f32 %v1424, %v569
    %v1427 = vadd.f32 %v1421, %v1425
    %v1428 = vadd.f32 %v1422, %v1426
    %s1429 = sld [smem:[#allocation9 + $0x86]]
    %v1430 = vstv %s1429
    %v1431 = vmul.f32 %v1430, %v576
    %v1432 = vmul.f32 %v1430, %v578
    %v1433 = vadd.f32 %v1427, %v1431
    %v1434 = vadd.f32 %v1428, %v1432
    %s1435 = sld [smem:[#allocation9 + $0x87]]
    %v1436 = vstv %s1435
    %v1437 = vmul.f32 %v1436, %v585
    %v1438 = vmul.f32 %v1436, %v587
    %v1439 = vadd.f32 %v1433, %v1437
    %v1440 = vadd.f32 %v1434, %v1438
    %s1441 = sld [smem:[#allocation9 + $0x88]]
    %v1442 = vstv %s1441
    %v1443 = vmul.f32 %v1442, %v583
    %v1444 = vmul.f32 %v1442, %v582
    %v1445 = vadd.f32 %v1439, %v1443
    %v1446 = vadd.f32 %v1440, %v1444
    %s1447 = sld [smem:[#allocation9 + $0x89]]
    %v1448 = vstv %s1447
    %v1449 = vmul.f32 %v1448, %v589
    %v1450 = vmul.f32 %v1448, %v591
    %v1451 = vadd.f32 %v1445, %v1449
    %v1452 = vadd.f32 %v1446, %v1450
    %s1453 = sld [smem:[#allocation9 + $0x8a]]
    %v1454 = vstv %s1453
    %v1455 = vmul.f32 %v1454, %v593
    %v1456 = vmul.f32 %v1454, %v595
    %v1457 = vadd.f32 %v1451, %v1455
    %v1458 = vadd.f32 %v1452, %v1456
    %s1459 = sld [smem:[#allocation9 + $0x8b]]
    %v1460 = vstv %s1459
    %v1461 = vmul.f32 %v1460, %v474
    %v1462 = vmul.f32 %v1460, %v475
    %v1463 = vadd.f32 %v1457, %v1461
    %v1464 = vadd.f32 %v1458, %v1462
    %s1465 = sld [smem:[#allocation9 + $0x8c]]
    %v1466 = vstv %s1465
    %v1467 = vmul.f32 %v1466, %v597
    %v1468 = vmul.f32 %v1466, %v599
    %v1469 = vadd.f32 %v1463, %v1467
    %v1470 = vadd.f32 %v1464, %v1468
    %s1471 = sld [smem:[#allocation9 + $0x8d]]
    %v1472 = vstv %s1471
    %v1473 = vmul.f32 %v1472, %v606
    %v1474 = vmul.f32 %v1472, %v608
    %v1475 = vadd.f32 %v1469, %v1473
    %v1476 = vadd.f32 %v1470, %v1474
    %s1477 = sld [smem:[#allocation9 + $0x8e]]
    %v1478 = vstv %s1477
    %v1479 = vmul.f32 %v1478, %v604
    %v1480 = vmul.f32 %v1478, %v603
    %v1481 = vadd.f32 %v1475, %v1479
    %v1482 = vadd.f32 %v1476, %v1480
    %s1483 = sld [smem:[#allocation9 + $0x8f]]
    %v1484 = vstv %s1483
    %v1485 = vmul.f32 %v1484, %v610
    %v1486 = vmul.f32 %v1484, %v612
    %v1487 = vadd.f32 %v1481, %v1485
    %v1488 = vadd.f32 %v1482, %v1486
    %s1489 = sld [smem:[#allocation10 + $0x3]]
    %v1490 = vstv %s1489
    %v1491 = vadd.f32 %v1487, %v1490
    %v1492 = vadd.f32 %v1488, %v1490
    %s1493 = scalar_lea.vmem [#allocation12], 48
    %1494 = vst [vmem:[%s1493] sm:$0xff] %v1491
    %1495 = vst [vmem:[%s1493 + $0x8] sm:$0xff] %v1492
    %s1496 = sld [smem:[#allocation9 + $0x90]]
    %v1497 = vstv %s1496
    %v1498 = vmul.f32 %v1497, %v483
    %v1499 = vmul.f32 %v1497, %v485
    %s1500 = sld [smem:[#allocation9 + $0x91]]
    %v1501 = vstv %s1500
    %v1502 = vmul.f32 %v1501, %v481
    %v1503 = vmul.f32 %v1501, %v480
    %v1504 = vadd.f32 %v1498, %v1502
    %v1505 = vadd.f32 %v1499, %v1503
    %s1506 = sld [smem:[#allocation9 + $0x92]]
    %v1507 = vstv %s1506
    %v1508 = vmul.f32 %v1507, %v487
    %v1509 = vmul.f32 %v1507, %v489
    %v1510 = vadd.f32 %v1504, %v1508
    %v1511 = vadd.f32 %v1505, %v1509
    %s1512 = sld [smem:[#allocation9 + $0x93]]
    %v1513 = vstv %s1512
    %v1514 = vmul.f32 %v1513, %v491
    %v1515 = vmul.f32 %v1513, %v493
    %v1516 = vadd.f32 %v1510, %v1514
    %v1517 = vadd.f32 %v1511, %v1515
    %s1518 = sld [smem:[#allocation9 + $0x94]]
    %v1519 = vstv %s1518
    %v1520 = vmul.f32 %v1519, %v243
    %v1521 = vmul.f32 %v1519, %v244
    %v1522 = vadd.f32 %v1516, %v1520
    %v1523 = vadd.f32 %v1517, %v1521
    %s1524 = sld [smem:[#allocation9 + $0x95]]
    %v1525 = vstv %s1524
    %v1526 = vmul.f32 %v1525, %v495
    %v1527 = vmul.f32 %v1525, %v497
    %v1528 = vadd.f32 %v1522, %v1526
    %v1529 = vadd.f32 %v1523, %v1527
    %s1530 = sld [smem:[#allocation9 + $0x96]]
    %v1531 = vstv %s1530
    %v1532 = vmul.f32 %v1531, %v504
    %v1533 = vmul.f32 %v1531, %v506
    %v1534 = vadd.f32 %v1528, %v1532
    %v1535 = vadd.f32 %v1529, %v1533
    %s1536 = sld [smem:[#allocation9 + $0x97]]
    %v1537 = vstv %s1536
    %v1538 = vmul.f32 %v1537, %v502
    %v1539 = vmul.f32 %v1537, %v501
    %v1540 = vadd.f32 %v1534, %v1538
    %v1541 = vadd.f32 %v1535, %v1539
    %s1542 = sld [smem:[#allocation9 + $0x98]]
    %v1543 = vstv %s1542
    %v1544 = vmul.f32 %v1543, %v508
    %v1545 = vmul.f32 %v1543, %v510
    %v1546 = vadd.f32 %v1540, %v1544
    %v1547 = vadd.f32 %v1541, %v1545
    %s1548 = sld [smem:[#allocation9 + $0x99]]
    %v1549 = vstv %s1548
    %v1550 = vmul.f32 %v1549, %v517
    %v1551 = vmul.f32 %v1549, %v519
    %v1552 = vadd.f32 %v1546, %v1550
    %v1553 = vadd.f32 %v1547, %v1551
    %s1554 = sld [smem:[#allocation9 + $0x9a]]
    %v1555 = vstv %s1554
    %v1556 = vmul.f32 %v1555, %v515
    %v1557 = vmul.f32 %v1555, %v514
    %v1558 = vadd.f32 %v1552, %v1556
    %v1559 = vadd.f32 %v1553, %v1557
    %s1560 = sld [smem:[#allocation9 + $0x9b]]
    %v1561 = vstv %s1560
    %v1562 = vmul.f32 %v1561, %v521
    %v1563 = vmul.f32 %v1561, %v523
    %v1564 = vadd.f32 %v1558, %v1562
    %v1565 = vadd.f32 %v1559, %v1563
    %s1566 = sld [smem:[#allocation9 + $0x9c]]
    %v1567 = vstv %s1566
    %v1568 = vmul.f32 %v1567, %v525
    %v1569 = vmul.f32 %v1567, %v527
    %v1570 = vadd.f32 %v1564, %v1568
    %v1571 = vadd.f32 %v1565, %v1569
    %s1572 = sld [smem:[#allocation9 + $0x9d]]
    %v1573 = vstv %s1572
    %v1574 = vmul.f32 %v1573, %v320
    %v1575 = vmul.f32 %v1573, %v321
    %v1576 = vadd.f32 %v1570, %v1574
    %v1577 = vadd.f32 %v1571, %v1575
    %s1578 = sld [smem:[#allocation9 + $0x9e]]
    %v1579 = vstv %s1578
    %v1580 = vmul.f32 %v1579, %v529
    %v1581 = vmul.f32 %v1579, %v531
    %v1582 = vadd.f32 %v1576, %v1580
    %v1583 = vadd.f32 %v1577, %v1581
    %s1584 = sld [smem:[#allocation9 + $0x9f]]
    %v1585 = vstv %s1584
    %v1586 = vmul.f32 %v1585, %v538
    %v1587 = vmul.f32 %v1585, %v540
    %v1588 = vadd.f32 %v1582, %v1586
    %v1589 = vadd.f32 %v1583, %v1587
    %s1590 = sld [smem:[#allocation9 + $0xa0]]
    %v1591 = vstv %s1590
    %v1592 = vmul.f32 %v1591, %v536
    %v1593 = vmul.f32 %v1591, %v535
    %v1594 = vadd.f32 %v1588, %v1592
    %v1595 = vadd.f32 %v1589, %v1593
    %s1596 = sld [smem:[#allocation9 + $0xa1]]
    %v1597 = vstv %s1596
    %v1598 = vmul.f32 %v1597, %v542
    %v1599 = vmul.f32 %v1597, %v544
    %v1600 = vadd.f32 %v1594, %v1598
    %v1601 = vadd.f32 %v1595, %v1599
    %s1602 = sld [smem:[#allocation9 + $0xa2]]
    %v1603 = vstv %s1602
    %v1604 = vmul.f32 %v1603, %v551
    %v1605 = vmul.f32 %v1603, %v553
    %v1606 = vadd.f32 %v1600, %v1604
    %v1607 = vadd.f32 %v1601, %v1605
    %s1608 = sld [smem:[#allocation9 + $0xa3]]
    %v1609 = vstv %s1608
    %v1610 = vmul.f32 %v1609, %v549
    %v1611 = vmul.f32 %v1609, %v548
    %v1612 = vadd.f32 %v1606, %v1610
    %v1613 = vadd.f32 %v1607, %v1611
    %s1614 = sld [smem:[#allocation9 + $0xa4]]
    %v1615 = vstv %s1614
    %v1616 = vmul.f32 %v1615, %v555
    %v1617 = vmul.f32 %v1615, %v557
    %v1618 = vadd.f32 %v1612, %v1616
    %v1619 = vadd.f32 %v1613, %v1617
    %s1620 = sld [smem:[#allocation9 + $0xa5]]
    %v1621 = vstv %s1620
    %v1622 = vmul.f32 %v1621, %v559
    %v1623 = vmul.f32 %v1621, %v561
    %v1624 = vadd.f32 %v1618, %v1622
    %v1625 = vadd.f32 %v1619, %v1623
    %s1626 = sld [smem:[#allocation9 + $0xa6]]
    %v1627 = vstv %s1626
    %v1628 = vmul.f32 %v1627, %v397
    %v1629 = vmul.f32 %v1627, %v398
    %v1630 = vadd.f32 %v1624, %v1628
    %v1631 = vadd.f32 %v1625, %v1629
    %s1632 = sld [smem:[#allocation9 + $0xa7]]
    %v1633 = vstv %s1632
    %v1634 = vmul.f32 %v1633, %v563
    %v1635 = vmul.f32 %v1633, %v565
    %v1636 = vadd.f32 %v1630, %v1634
    %v1637 = vadd.f32 %v1631, %v1635
    %s1638 = sld [smem:[#allocation9 + $0xa8]]
    %v1639 = vstv %s1638
    %v1640 = vmul.f32 %v1639, %v572
    %v1641 = vmul.f32 %v1639, %v574
    %v1642 = vadd.f32 %v1636, %v1640
    %v1643 = vadd.f32 %v1637, %v1641
    %s1644 = sld [smem:[#allocation9 + $0xa9]]
    %v1645 = vstv %s1644
    %v1646 = vmul.f32 %v1645, %v570
    %v1647 = vmul.f32 %v1645, %v569
    %v1648 = vadd.f32 %v1642, %v1646
    %v1649 = vadd.f32 %v1643, %v1647
    %s1650 = sld [smem:[#allocation9 + $0xaa]]
    %v1651 = vstv %s1650
    %v1652 = vmul.f32 %v1651, %v576
    %v1653 = vmul.f32 %v1651, %v578
    %v1654 = vadd.f32 %v1648, %v1652
    %v1655 = vadd.f32 %v1649, %v1653
    %s1656 = sld [smem:[#allocation9 + $0xab]]
    %v1657 = vstv %s1656
    %v1658 = vmul.f32 %v1657, %v585
    %v1659 = vmul.f32 %v1657, %v587
    %v1660 = vadd.f32 %v1654, %v1658
    %v1661 = vadd.f32 %v1655, %v1659
    %s1662 = sld [smem:[#allocation9 + $0xac]]
    %v1663 = vstv %s1662
    %v1664 = vmul.f32 %v1663, %v583
    %v1665 = vmul.f32 %v1663, %v582
    %v1666 = vadd.f32 %v1660, %v1664
    %v1667 = vadd.f32 %v1661, %v1665
    %s1668 = sld [smem:[#allocation9 + $0xad]]
    %v1669 = vstv %s1668
    %v1670 = vmul.f32 %v1669, %v589
    %v1671 = vmul.f32 %v1669, %v591
    %v1672 = vadd.f32 %v1666, %v1670
    %v1673 = vadd.f32 %v1667, %v1671
    %s1674 = sld [smem:[#allocation9 + $0xae]]
    %v1675 = vstv %s1674
    %v1676 = vmul.f32 %v1675, %v593
    %v1677 = vmul.f32 %v1675, %v595
    %v1678 = vadd.f32 %v1672, %v1676
    %v1679 = vadd.f32 %v1673, %v1677
    %s1680 = sld [smem:[#allocation9 + $0xaf]]
    %v1681 = vstv %s1680
    %v1682 = vmul.f32 %v1681, %v474
    %v1683 = vmul.f32 %v1681, %v475
    %v1684 = vadd.f32 %v1678, %v1682
    %v1685 = vadd.f32 %v1679, %v1683
    %s1686 = sld [smem:[#allocation9 + $0xb0]]
    %v1687 = vstv %s1686
    %v1688 = vmul.f32 %v1687, %v597
    %v1689 = vmul.f32 %v1687, %v599
    %v1690 = vadd.f32 %v1684, %v1688
    %v1691 = vadd.f32 %v1685, %v1689
    %s1692 = sld [smem:[#allocation9 + $0xb1]]
    %v1693 = vstv %s1692
    %v1694 = vmul.f32 %v1693, %v606
    %v1695 = vmul.f32 %v1693, %v608
    %v1696 = vadd.f32 %v1690, %v1694
    %v1697 = vadd.f32 %v1691, %v1695
    %s1698 = sld [smem:[#allocation9 + $0xb2]]
    %v1699 = vstv %s1698
    %v1700 = vmul.f32 %v1699, %v604
    %v1701 = vmul.f32 %v1699, %v603
    %v1702 = vadd.f32 %v1696, %v1700
    %v1703 = vadd.f32 %v1697, %v1701
    %s1704 = sld [smem:[#allocation9 + $0xb3]]
    %v1705 = vstv %s1704
    %v1706 = vmul.f32 %v1705, %v610
    %v1707 = vmul.f32 %v1705, %v612
    %v1708 = vadd.f32 %v1702, %v1706
    %v1709 = vadd.f32 %v1703, %v1707
    %s1710 = sld [smem:[#allocation10 + $0x4]]
    %v1711 = vstv %s1710
    %v1712 = vadd.f32 %v1708, %v1711
    %v1713 = vadd.f32 %v1709, %v1711
    %s1714 = scalar_lea.vmem [#allocation12], 64
    %1715 = vst [vmem:[%s1714] sm:$0xff] %v1712
    %1716 = vst [vmem:[%s1714 + $0x8] sm:$0xff] %v1713
    %s1717 = sld [smem:[#allocation9 + $0xb4]]
    %v1718 = vstv %s1717
    %v1719 = vmul.f32 %v1718, %v483
    %v1720 = vmul.f32 %v1718, %v485
    %s1721 = sld [smem:[#allocation9 + $0xb5]]
    %v1722 = vstv %s1721
    %v1723 = vmul.f32 %v1722, %v481
    %v1724 = vmul.f32 %v1722, %v480
    %v1725 = vadd.f32 %v1719, %v1723
    %v1726 = vadd.f32 %v1720, %v1724
    %s1727 = sld [smem:[#allocation9 + $0xb6]]
    %v1728 = vstv %s1727
    %v1729 = vmul.f32 %v1728, %v487
    %v1730 = vmul.f32 %v1728, %v489
    %v1731 = vadd.f32 %v1725, %v1729
    %v1732 = vadd.f32 %v1726, %v1730
    %s1733 = sld [smem:[#allocation9 + $0xb7]]
    %v1734 = vstv %s1733
    %v1735 = vmul.f32 %v1734, %v491
    %v1736 = vmul.f32 %v1734, %v493
    %v1737 = vadd.f32 %v1731, %v1735
    %v1738 = vadd.f32 %v1732, %v1736
    %s1739 = sld [smem:[#allocation9 + $0xb8]]
    %v1740 = vstv %s1739
    %v1741 = vmul.f32 %v1740, %v243
    %v1742 = vmul.f32 %v1740, %v244
    %v1743 = vadd.f32 %v1737, %v1741
    %v1744 = vadd.f32 %v1738, %v1742
    %s1745 = sld [smem:[#allocation9 + $0xb9]]
    %v1746 = vstv %s1745
    %v1747 = vmul.f32 %v1746, %v495
    %v1748 = vmul.f32 %v1746, %v497
    %v1749 = vadd.f32 %v1743, %v1747
    %v1750 = vadd.f32 %v1744, %v1748
    %s1751 = sld [smem:[#allocation9 + $0xba]]
    %v1752 = vstv %s1751
    %v1753 = vmul.f32 %v1752, %v504
    %v1754 = vmul.f32 %v1752, %v506
    %v1755 = vadd.f32 %v1749, %v1753
    %v1756 = vadd.f32 %v1750, %v1754
    %s1757 = sld [smem:[#allocation9 + $0xbb]]
    %v1758 = vstv %s1757
    %v1759 = vmul.f32 %v1758, %v502
    %v1760 = vmul.f32 %v1758, %v501
    %v1761 = vadd.f32 %v1755, %v1759
    %v1762 = vadd.f32 %v1756, %v1760
    %s1763 = sld [smem:[#allocation9 + $0xbc]]
    %v1764 = vstv %s1763
    %v1765 = vmul.f32 %v1764, %v508
    %v1766 = vmul.f32 %v1764, %v510
    %v1767 = vadd.f32 %v1761, %v1765
    %v1768 = vadd.f32 %v1762, %v1766
    %s1769 = sld [smem:[#allocation9 + $0xbd]]
    %v1770 = vstv %s1769
    %v1771 = vmul.f32 %v1770, %v517
    %v1772 = vmul.f32 %v1770, %v519
    %v1773 = vadd.f32 %v1767, %v1771
    %v1774 = vadd.f32 %v1768, %v1772
    %s1775 = sld [smem:[#allocation9 + $0xbe]]
    %v1776 = vstv %s1775
    %v1777 = vmul.f32 %v1776, %v515
    %v1778 = vmul.f32 %v1776, %v514
    %v1779 = vadd.f32 %v1773, %v1777
    %v1780 = vadd.f32 %v1774, %v1778
    %s1781 = sld [smem:[#allocation9 + $0xbf]]
    %v1782 = vstv %s1781
    %v1783 = vmul.f32 %v1782, %v521
    %v1784 = vmul.f32 %v1782, %v523
    %v1785 = vadd.f32 %v1779, %v1783
    %v1786 = vadd.f32 %v1780, %v1784
    %s1787 = sld [smem:[#allocation9 + $0xc0]]
    %v1788 = vstv %s1787
    %v1789 = vmul.f32 %v1788, %v525
    %v1790 = vmul.f32 %v1788, %v527
    %v1791 = vadd.f32 %v1785, %v1789
    %v1792 = vadd.f32 %v1786, %v1790
    %s1793 = sld [smem:[#allocation9 + $0xc1]]
    %v1794 = vstv %s1793
    %v1795 = vmul.f32 %v1794, %v320
    %v1796 = vmul.f32 %v1794, %v321
    %v1797 = vadd.f32 %v1791, %v1795
    %v1798 = vadd.f32 %v1792, %v1796
    %s1799 = sld [smem:[#allocation9 + $0xc2]]
    %v1800 = vstv %s1799
    %v1801 = vmul.f32 %v1800, %v529
    %v1802 = vmul.f32 %v1800, %v531
    %v1803 = vadd.f32 %v1797, %v1801
    %v1804 = vadd.f32 %v1798, %v1802
    %s1805 = sld [smem:[#allocation9 + $0xc3]]
    %v1806 = vstv %s1805
    %v1807 = vmul.f32 %v1806, %v538
    %v1808 = vmul.f32 %v1806, %v540
    %v1809 = vadd.f32 %v1803, %v1807
    %v1810 = vadd.f32 %v1804, %v1808
    %s1811 = sld [smem:[#allocation9 + $0xc4]]
    %v1812 = vstv %s1811
    %v1813 = vmul.f32 %v1812, %v536
    %v1814 = vmul.f32 %v1812, %v535
    %v1815 = vadd.f32 %v1809, %v1813
    %v1816 = vadd.f32 %v1810, %v1814
    %s1817 = sld [smem:[#allocation9 + $0xc5]]
    %v1818 = vstv %s1817
    %v1819 = vmul.f32 %v1818, %v542
    %v1820 = vmul.f32 %v1818, %v544
    %v1821 = vadd.f32 %v1815, %v1819
    %v1822 = vadd.f32 %v1816, %v1820
    %s1823 = sld [smem:[#allocation9 + $0xc6]]
    %v1824 = vstv %s1823
    %v1825 = vmul.f32 %v1824, %v551
    %v1826 = vmul.f32 %v1824, %v553
    %v1827 = vadd.f32 %v1821, %v1825
    %v1828 = vadd.f32 %v1822, %v1826
    %s1829 = sld [smem:[#allocation9 + $0xc7]]
    %v1830 = vstv %s1829
    %v1831 = vmul.f32 %v1830, %v549
    %v1832 = vmul.f32 %v1830, %v548
    %v1833 = vadd.f32 %v1827, %v1831
    %v1834 = vadd.f32 %v1828, %v1832
    %s1835 = sld [smem:[#allocation9 + $0xc8]]
    %v1836 = vstv %s1835
    %v1837 = vmul.f32 %v1836, %v555
    %v1838 = vmul.f32 %v1836, %v557
    %v1839 = vadd.f32 %v1833, %v1837
    %v1840 = vadd.f32 %v1834, %v1838
    %s1841 = sld [smem:[#allocation9 + $0xc9]]
    %v1842 = vstv %s1841
    %v1843 = vmul.f32 %v1842, %v559
    %v1844 = vmul.f32 %v1842, %v561
    %v1845 = vadd.f32 %v1839, %v1843
    %v1846 = vadd.f32 %v1840, %v1844
    %s1847 = sld [smem:[#allocation9 + $0xca]]
    %v1848 = vstv %s1847
    %v1849 = vmul.f32 %v1848, %v397
    %v1850 = vmul.f32 %v1848, %v398
    %v1851 = vadd.f32 %v1845, %v1849
    %v1852 = vadd.f32 %v1846, %v1850
    %s1853 = sld [smem:[#allocation9 + $0xcb]]
    %v1854 = vstv %s1853
    %v1855 = vmul.f32 %v1854, %v563
    %v1856 = vmul.f32 %v1854, %v565
    %v1857 = vadd.f32 %v1851, %v1855
    %v1858 = vadd.f32 %v1852, %v1856
    %s1859 = sld [smem:[#allocation9 + $0xcc]]
    %v1860 = vstv %s1859
    %v1861 = vmul.f32 %v1860, %v572
    %v1862 = vmul.f32 %v1860, %v574
    %v1863 = vadd.f32 %v1857, %v1861
    %v1864 = vadd.f32 %v1858, %v1862
    %s1865 = sld [smem:[#allocation9 + $0xcd]]
    %v1866 = vstv %s1865
    %v1867 = vmul.f32 %v1866, %v570
    %v1868 = vmul.f32 %v1866, %v569
    %v1869 = vadd.f32 %v1863, %v1867
    %v1870 = vadd.f32 %v1864, %v1868
    %s1871 = sld [smem:[#allocation9 + $0xce]]
    %v1872 = vstv %s1871
    %v1873 = vmul.f32 %v1872, %v576
    %v1874 = vmul.f32 %v1872, %v578
    %v1875 = vadd.f32 %v1869, %v1873
    %v1876 = vadd.f32 %v1870, %v1874
    %s1877 = sld [smem:[#allocation9 + $0xcf]]
    %v1878 = vstv %s1877
    %v1879 = vmul.f32 %v1878, %v585
    %v1880 = vmul.f32 %v1878, %v587
    %v1881 = vadd.f32 %v1875, %v1879
    %v1882 = vadd.f32 %v1876, %v1880
    %s1883 = sld [smem:[#allocation9 + $0xd0]]
    %v1884 = vstv %s1883
    %v1885 = vmul.f32 %v1884, %v583
    %v1886 = vmul.f32 %v1884, %v582
    %v1887 = vadd.f32 %v1881, %v1885
    %v1888 = vadd.f32 %v1882, %v1886
    %s1889 = sld [smem:[#allocation9 + $0xd1]]
    %v1890 = vstv %s1889
    %v1891 = vmul.f32 %v1890, %v589
    %v1892 = vmul.f32 %v1890, %v591
    %v1893 = vadd.f32 %v1887, %v1891
    %v1894 = vadd.f32 %v1888, %v1892
    %s1895 = sld [smem:[#allocation9 + $0xd2]]
    %v1896 = vstv %s1895
    %v1897 = vmul.f32 %v1896, %v593
    %v1898 = vmul.f32 %v1896, %v595
    %v1899 = vadd.f32 %v1893, %v1897
    %v1900 = vadd.f32 %v1894, %v1898
    %s1901 = sld [smem:[#allocation9 + $0xd3]]
    %v1902 = vstv %s1901
    %v1903 = vmul.f32 %v1902, %v474
    %v1904 = vmul.f32 %v1902, %v475
    %v1905 = vadd.f32 %v1899, %v1903
    %v1906 = vadd.f32 %v1900, %v1904
    %s1907 = sld [smem:[#allocation9 + $0xd4]]
    %v1908 = vstv %s1907
    %v1909 = vmul.f32 %v1908, %v597
    %v1910 = vmul.f32 %v1908, %v599
    %v1911 = vadd.f32 %v1905, %v1909
    %v1912 = vadd.f32 %v1906, %v1910
    %s1913 = sld [smem:[#allocation9 + $0xd5]]
    %v1914 = vstv %s1913
    %v1915 = vmul.f32 %v1914, %v606
    %v1916 = vmul.f32 %v1914, %v608
    %v1917 = vadd.f32 %v1911, %v1915
    %v1918 = vadd.f32 %v1912, %v1916
    %s1919 = sld [smem:[#allocation9 + $0xd6]]
    %v1920 = vstv %s1919
    %v1921 = vmul.f32 %v1920, %v604
    %v1922 = vmul.f32 %v1920, %v603
    %v1923 = vadd.f32 %v1917, %v1921
    %v1924 = vadd.f32 %v1918, %v1922
    %s1925 = sld [smem:[#allocation9 + $0xd7]]
    %v1926 = vstv %s1925
    %v1927 = vmul.f32 %v1926, %v610
    %v1928 = vmul.f32 %v1926, %v612
    %v1929 = vadd.f32 %v1923, %v1927
    %v1930 = vadd.f32 %v1924, %v1928
    %s1931 = sld [smem:[#allocation10 + $0x5]]
    %v1932 = vstv %s1931
    %v1933 = vadd.f32 %v1929, %v1932
    %v1934 = vadd.f32 %v1930, %v1932
    %s1935 = scalar_lea.vmem [#allocation12], 80
    %1936 = vst [vmem:[%s1935] sm:$0xff] %v1933
    %1937 = vst [vmem:[%s1935 + $0x8] sm:$0xff] %v1934
    %s1938 = sld [smem:[#allocation9 + $0xd8]]
    %v1939 = vstv %s1938
    %v1940 = vmul.f32 %v1939, %v483
    %v1941 = vmul.f32 %v1939, %v485
    %s1942 = sld [smem:[#allocation9 + $0xd9]]
    %v1943 = vstv %s1942
    %v1944 = vmul.f32 %v1943, %v481
    %v1945 = vmul.f32 %v1943, %v480
    %v1946 = vadd.f32 %v1940, %v1944
    %v1947 = vadd.f32 %v1941, %v1945
    %s1948 = sld [smem:[#allocation9 + $0xda]]
    %v1949 = vstv %s1948
    %v1950 = vmul.f32 %v1949, %v487
    %v1951 = vmul.f32 %v1949, %v489
    %v1952 = vadd.f32 %v1946, %v1950
    %v1953 = vadd.f32 %v1947, %v1951
    %s1954 = sld [smem:[#allocation9 + $0xdb]]
    %v1955 = vstv %s1954
    %v1956 = vmul.f32 %v1955, %v491
    %v1957 = vmul.f32 %v1955, %v493
    %v1958 = vadd.f32 %v1952, %v1956
    %v1959 = vadd.f32 %v1953, %v1957
    %s1960 = sld [smem:[#allocation9 + $0xdc]]
    %v1961 = vstv %s1960
    %v1962 = vmul.f32 %v1961, %v243
    %v1963 = vmul.f32 %v1961, %v244
    %v1964 = vadd.f32 %v1958, %v1962
    %v1965 = vadd.f32 %v1959, %v1963
    %s1966 = sld [smem:[#allocation9 + $0xdd]]
    %v1967 = vstv %s1966
    %v1968 = vmul.f32 %v1967, %v495
    %v1969 = vmul.f32 %v1967, %v497
    %v1970 = vadd.f32 %v1964, %v1968
    %v1971 = vadd.f32 %v1965, %v1969
    %s1972 = sld [smem:[#allocation9 + $0xde]]
    %v1973 = vstv %s1972
    %v1974 = vmul.f32 %v1973, %v504
    %v1975 = vmul.f32 %v1973, %v506
    %v1976 = vadd.f32 %v1970, %v1974
    %v1977 = vadd.f32 %v1971, %v1975
    %s1978 = sld [smem:[#allocation9 + $0xdf]]
    %v1979 = vstv %s1978
    %v1980 = vmul.f32 %v1979, %v502
    %v1981 = vmul.f32 %v1979, %v501
    %v1982 = vadd.f32 %v1976, %v1980
    %v1983 = vadd.f32 %v1977, %v1981
    %s1984 = sld [smem:[#allocation9 + $0xe0]]
    %v1985 = vstv %s1984
    %v1986 = vmul.f32 %v1985, %v508
    %v1987 = vmul.f32 %v1985, %v510
    %v1988 = vadd.f32 %v1982, %v1986
    %v1989 = vadd.f32 %v1983, %v1987
    %s1990 = sld [smem:[#allocation9 + $0xe1]]
    %v1991 = vstv %s1990
    %v1992 = vmul.f32 %v1991, %v517
    %v1993 = vmul.f32 %v1991, %v519
    %v1994 = vadd.f32 %v1988, %v1992
    %v1995 = vadd.f32 %v1989, %v1993
    %s1996 = sld [smem:[#allocation9 + $0xe2]]
    %v1997 = vstv %s1996
    %v1998 = vmul.f32 %v1997, %v515
    %v1999 = vmul.f32 %v1997, %v514
    %v2000 = vadd.f32 %v1994, %v1998
    %v2001 = vadd.f32 %v1995, %v1999
    %s2002 = sld [smem:[#allocation9 + $0xe3]]
    %v2003 = vstv %s2002
    %v2004 = vmul.f32 %v2003, %v521
    %v2005 = vmul.f32 %v2003, %v523
    %v2006 = vadd.f32 %v2000, %v2004
    %v2007 = vadd.f32 %v2001, %v2005
    %s2008 = sld [smem:[#allocation9 + $0xe4]]
    %v2009 = vstv %s2008
    %v2010 = vmul.f32 %v2009, %v525
    %v2011 = vmul.f32 %v2009, %v527
    %v2012 = vadd.f32 %v2006, %v2010
    %v2013 = vadd.f32 %v2007, %v2011
    %s2014 = sld [smem:[#allocation9 + $0xe5]]
    %v2015 = vstv %s2014
    %v2016 = vmul.f32 %v2015, %v320
    %v2017 = vmul.f32 %v2015, %v321
    %v2018 = vadd.f32 %v2012, %v2016
    %v2019 = vadd.f32 %v2013, %v2017
    %s2020 = sld [smem:[#allocation9 + $0xe6]]
    %v2021 = vstv %s2020
    %v2022 = vmul.f32 %v2021, %v529
    %v2023 = vmul.f32 %v2021, %v531
    %v2024 = vadd.f32 %v2018, %v2022
    %v2025 = vadd.f32 %v2019, %v2023
    %s2026 = sld [smem:[#allocation9 + $0xe7]]
    %v2027 = vstv %s2026
    %v2028 = vmul.f32 %v2027, %v538
    %v2029 = vmul.f32 %v2027, %v540
    %v2030 = vadd.f32 %v2024, %v2028
    %v2031 = vadd.f32 %v2025, %v2029
    %s2032 = sld [smem:[#allocation9 + $0xe8]]
    %v2033 = vstv %s2032
    %v2034 = vmul.f32 %v2033, %v536
    %v2035 = vmul.f32 %v2033, %v535
    %v2036 = vadd.f32 %v2030, %v2034
    %v2037 = vadd.f32 %v2031, %v2035
    %s2038 = sld [smem:[#allocation9 + $0xe9]]
    %v2039 = vstv %s2038
    %v2040 = vmul.f32 %v2039, %v542
    %v2041 = vmul.f32 %v2039, %v544
    %v2042 = vadd.f32 %v2036, %v2040
    %v2043 = vadd.f32 %v2037, %v2041
    %s2044 = sld [smem:[#allocation9 + $0xea]]
    %v2045 = vstv %s2044
    %v2046 = vmul.f32 %v2045, %v551
    %v2047 = vmul.f32 %v2045, %v553
    %v2048 = vadd.f32 %v2042, %v2046
    %v2049 = vadd.f32 %v2043, %v2047
    %s2050 = sld [smem:[#allocation9 + $0xeb]]
    %v2051 = vstv %s2050
    %v2052 = vmul.f32 %v2051, %v549
    %v2053 = vmul.f32 %v2051, %v548
    %v2054 = vadd.f32 %v2048, %v2052
    %v2055 = vadd.f32 %v2049, %v2053
    %s2056 = sld [smem:[#allocation9 + $0xec]]
    %v2057 = vstv %s2056
    %v2058 = vmul.f32 %v2057, %v555
    %v2059 = vmul.f32 %v2057, %v557
    %v2060 = vadd.f32 %v2054, %v2058
    %v2061 = vadd.f32 %v2055, %v2059
    %s2062 = sld [smem:[#allocation9 + $0xed]]
    %v2063 = vstv %s2062
    %v2064 = vmul.f32 %v2063, %v559
    %v2065 = vmul.f32 %v2063, %v561
    %v2066 = vadd.f32 %v2060, %v2064
    %v2067 = vadd.f32 %v2061, %v2065
    %s2068 = sld [smem:[#allocation9 + $0xee]]
    %v2069 = vstv %s2068
    %v2070 = vmul.f32 %v2069, %v397
    %v2071 = vmul.f32 %v2069, %v398
    %v2072 = vadd.f32 %v2066, %v2070
    %v2073 = vadd.f32 %v2067, %v2071
    %s2074 = sld [smem:[#allocation9 + $0xef]]
    %v2075 = vstv %s2074
    %v2076 = vmul.f32 %v2075, %v563
    %v2077 = vmul.f32 %v2075, %v565
    %v2078 = vadd.f32 %v2072, %v2076
    %v2079 = vadd.f32 %v2073, %v2077
    %s2080 = sld [smem:[#allocation9 + $0xf0]]
    %v2081 = vstv %s2080
    %v2082 = vmul.f32 %v2081, %v572
    %v2083 = vmul.f32 %v2081, %v574
    %v2084 = vadd.f32 %v2078, %v2082
    %v2085 = vadd.f32 %v2079, %v2083
    %s2086 = sld [smem:[#allocation9 + $0xf1]]
    %v2087 = vstv %s2086
    %v2088 = vmul.f32 %v2087, %v570
    %v2089 = vmul.f32 %v2087, %v569
    %v2090 = vadd.f32 %v2084, %v2088
    %v2091 = vadd.f32 %v2085, %v2089
    %s2092 = sld [smem:[#allocation9 + $0xf2]]
    %v2093 = vstv %s2092
    %v2094 = vmul.f32 %v2093, %v576
    %v2095 = vmul.f32 %v2093, %v578
    %v2096 = vadd.f32 %v2090, %v2094
    %v2097 = vadd.f32 %v2091, %v2095
    %s2098 = sld [smem:[#allocation9 + $0xf3]]
    %v2099 = vstv %s2098
    %v2100 = vmul.f32 %v2099, %v585
    %v2101 = vmul.f32 %v2099, %v587
    %v2102 = vadd.f32 %v2096, %v2100
    %v2103 = vadd.f32 %v2097, %v2101
    %s2104 = sld [smem:[#allocation9 + $0xf4]]
    %v2105 = vstv %s2104
    %v2106 = vmul.f32 %v2105, %v583
    %v2107 = vmul.f32 %v2105, %v582
    %v2108 = vadd.f32 %v2102, %v2106
    %v2109 = vadd.f32 %v2103, %v2107
    %s2110 = sld [smem:[#allocation9 + $0xf5]]
    %v2111 = vstv %s2110
    %v2112 = vmul.f32 %v2111, %v589
    %v2113 = vmul.f32 %v2111, %v591
    %v2114 = vadd.f32 %v2108, %v2112
    %v2115 = vadd.f32 %v2109, %v2113
    %s2116 = sld [smem:[#allocation9 + $0xf6]]
    %v2117 = vstv %s2116
    %v2118 = vmul.f32 %v2117, %v593
    %v2119 = vmul.f32 %v2117, %v595
    %v2120 = vadd.f32 %v2114, %v2118
    %v2121 = vadd.f32 %v2115, %v2119
    %s2122 = sld [smem:[#allocation9 + $0xf7]]
    %v2123 = vstv %s2122
    %v2124 = vmul.f32 %v2123, %v474
    %v2125 = vmul.f32 %v2123, %v475
    %v2126 = vadd.f32 %v2120, %v2124
    %v2127 = vadd.f32 %v2121, %v2125
    %s2128 = sld [smem:[#allocation9 + $0xf8]]
    %v2129 = vstv %s2128
    %v2130 = vmul.f32 %v2129, %v597
    %v2131 = vmul.f32 %v2129, %v599
    %v2132 = vadd.f32 %v2126, %v2130
    %v2133 = vadd.f32 %v2127, %v2131
    %s2134 = sld [smem:[#allocation9 + $0xf9]]
    %v2135 = vstv %s2134
    %v2136 = vmul.f32 %v2135, %v606
    %v2137 = vmul.f32 %v2135, %v608
    %v2138 = vadd.f32 %v2132, %v2136
    %v2139 = vadd.f32 %v2133, %v2137
    %s2140 = sld [smem:[#allocation9 + $0xfa]]
    %v2141 = vstv %s2140
    %v2142 = vmul.f32 %v2141, %v604
    %v2143 = vmul.f32 %v2141, %v603
    %v2144 = vadd.f32 %v2138, %v2142
    %v2145 = vadd.f32 %v2139, %v2143
    %s2146 = sld [smem:[#allocation9 + $0xfb]]
    %v2147 = vstv %s2146
    %v2148 = vmul.f32 %v2147, %v610
    %v2149 = vmul.f32 %v2147, %v612
    %v2150 = vadd.f32 %v2144, %v2148
    %v2151 = vadd.f32 %v2145, %v2149
    %s2152 = sld [smem:[#allocation10 + $0x6]]
    %v2153 = vstv %s2152
    %v2154 = vadd.f32 %v2150, %v2153
    %v2155 = vadd.f32 %v2151, %v2153
    %s2156 = scalar_lea.vmem [#allocation12], 96
    %2157 = vst [vmem:[%s2156] sm:$0xff] %v2154
    %2158 = vst [vmem:[%s2156 + $0x8] sm:$0xff] %v2155
    %s2159 = sld [smem:[#allocation9 + $0xfc]]
    %v2160 = vstv %s2159
    %v2161 = vmul.f32 %v2160, %v483
    %v2162 = vmul.f32 %v2160, %v485
    %s2163 = sld [smem:[#allocation9 + $0xfd]]
    %v2164 = vstv %s2163
    %v2165 = vmul.f32 %v2164, %v481
    %v2166 = vmul.f32 %v2164, %v480
    %v2167 = vadd.f32 %v2161, %v2165
    %v2168 = vadd.f32 %v2162, %v2166
    %s2169 = sld [smem:[#allocation9 + $0xfe]]
    %v2170 = vstv %s2169
    %v2171 = vmul.f32 %v2170, %v487
    %v2172 = vmul.f32 %v2170, %v489
    %v2173 = vadd.f32 %v2167, %v2171
    %v2174 = vadd.f32 %v2168, %v2172
    %s2175 = sld [smem:[#allocation9 + $0xff]]
    %v2176 = vstv %s2175
    %v2177 = vmul.f32 %v2176, %v491
    %v2178 = vmul.f32 %v2176, %v493
    %v2179 = vadd.f32 %v2173, %v2177
    %v2180 = vadd.f32 %v2174, %v2178
    %s2181 = sld [smem:[#allocation9 + $0x100]]
    %v2182 = vstv %s2181
    %v2183 = vmul.f32 %v2182, %v243
    %v2184 = vmul.f32 %v2182, %v244
    %v2185 = vadd.f32 %v2179, %v2183
    %v2186 = vadd.f32 %v2180, %v2184
    %s2187 = sld [smem:[#allocation9 + $0x101]]
    %v2188 = vstv %s2187
    %v2189 = vmul.f32 %v2188, %v495
    %v2190 = vmul.f32 %v2188, %v497
    %v2191 = vadd.f32 %v2185, %v2189
    %v2192 = vadd.f32 %v2186, %v2190
    %s2193 = sld [smem:[#allocation9 + $0x102]]
    %v2194 = vstv %s2193
    %v2195 = vmul.f32 %v2194, %v504
    %v2196 = vmul.f32 %v2194, %v506
    %v2197 = vadd.f32 %v2191, %v2195
    %v2198 = vadd.f32 %v2192, %v2196
    %s2199 = sld [smem:[#allocation9 + $0x103]]
    %v2200 = vstv %s2199
    %v2201 = vmul.f32 %v2200, %v502
    %v2202 = vmul.f32 %v2200, %v501
    %v2203 = vadd.f32 %v2197, %v2201
    %v2204 = vadd.f32 %v2198, %v2202
    %s2205 = sld [smem:[#allocation9 + $0x104]]
    %v2206 = vstv %s2205
    %v2207 = vmul.f32 %v2206, %v508
    %v2208 = vmul.f32 %v2206, %v510
    %v2209 = vadd.f32 %v2203, %v2207
    %v2210 = vadd.f32 %v2204, %v2208
    %s2211 = sld [smem:[#allocation9 + $0x105]]
    %v2212 = vstv %s2211
    %v2213 = vmul.f32 %v2212, %v517
    %v2214 = vmul.f32 %v2212, %v519
    %v2215 = vadd.f32 %v2209, %v2213
    %v2216 = vadd.f32 %v2210, %v2214
    %s2217 = sld [smem:[#allocation9 + $0x106]]
    %v2218 = vstv %s2217
    %v2219 = vmul.f32 %v2218, %v515
    %v2220 = vmul.f32 %v2218, %v514
    %v2221 = vadd.f32 %v2215, %v2219
    %v2222 = vadd.f32 %v2216, %v2220
    %s2223 = sld [smem:[#allocation9 + $0x107]]
    %v2224 = vstv %s2223
    %v2225 = vmul.f32 %v2224, %v521
    %v2226 = vmul.f32 %v2224, %v523
    %v2227 = vadd.f32 %v2221, %v2225
    %v2228 = vadd.f32 %v2222, %v2226
    %s2229 = sld [smem:[#allocation9 + $0x108]]
    %v2230 = vstv %s2229
    %v2231 = vmul.f32 %v2230, %v525
    %v2232 = vmul.f32 %v2230, %v527
    %v2233 = vadd.f32 %v2227, %v2231
    %v2234 = vadd.f32 %v2228, %v2232
    %s2235 = sld [smem:[#allocation9 + $0x109]]
    %v2236 = vstv %s2235
    %v2237 = vmul.f32 %v2236, %v320
    %v2238 = vmul.f32 %v2236, %v321
    %v2239 = vadd.f32 %v2233, %v2237
    %v2240 = vadd.f32 %v2234, %v2238
    %s2241 = sld [smem:[#allocation9 + $0x10a]]
    %v2242 = vstv %s2241
    %v2243 = vmul.f32 %v2242, %v529
    %v2244 = vmul.f32 %v2242, %v531
    %v2245 = vadd.f32 %v2239, %v2243
    %v2246 = vadd.f32 %v2240, %v2244
    %s2247 = sld [smem:[#allocation9 + $0x10b]]
    %v2248 = vstv %s2247
    %v2249 = vmul.f32 %v2248, %v538
    %v2250 = vmul.f32 %v2248, %v540
    %v2251 = vadd.f32 %v2245, %v2249
    %v2252 = vadd.f32 %v2246, %v2250
    %s2253 = sld [smem:[#allocation9 + $0x10c]]
    %v2254 = vstv %s2253
    %v2255 = vmul.f32 %v2254, %v536
    %v2256 = vmul.f32 %v2254, %v535
    %v2257 = vadd.f32 %v2251, %v2255
    %v2258 = vadd.f32 %v2252, %v2256
    %s2259 = sld [smem:[#allocation9 + $0x10d]]
    %v2260 = vstv %s2259
    %v2261 = vmul.f32 %v2260, %v542
    %v2262 = vmul.f32 %v2260, %v544
    %v2263 = vadd.f32 %v2257, %v2261
    %v2264 = vadd.f32 %v2258, %v2262
    %s2265 = sld [smem:[#allocation9 + $0x10e]]
    %v2266 = vstv %s2265
    %v2267 = vmul.f32 %v2266, %v551
    %v2268 = vmul.f32 %v2266, %v553
    %v2269 = vadd.f32 %v2263, %v2267
    %v2270 = vadd.f32 %v2264, %v2268
    %s2271 = sld [smem:[#allocation9 + $0x10f]]
    %v2272 = vstv %s2271
    %v2273 = vmul.f32 %v2272, %v549
    %v2274 = vmul.f32 %v2272, %v548
    %v2275 = vadd.f32 %v2269, %v2273
    %v2276 = vadd.f32 %v2270, %v2274
    %s2277 = sld [smem:[#allocation9 + $0x110]]
    %v2278 = vstv %s2277
    %v2279 = vmul.f32 %v2278, %v555
    %v2280 = vmul.f32 %v2278, %v557
    %v2281 = vadd.f32 %v2275, %v2279
    %v2282 = vadd.f32 %v2276, %v2280
    %s2283 = sld [smem:[#allocation9 + $0x111]]
    %v2284 = vstv %s2283
    %v2285 = vmul.f32 %v2284, %v559
    %v2286 = vmul.f32 %v2284, %v561
    %v2287 = vadd.f32 %v2281, %v2285
    %v2288 = vadd.f32 %v2282, %v2286
    %s2289 = sld [smem:[#allocation9 + $0x112]]
    %v2290 = vstv %s2289
    %v2291 = vmul.f32 %v2290, %v397
    %v2292 = vmul.f32 %v2290, %v398
    %v2293 = vadd.f32 %v2287, %v2291
    %v2294 = vadd.f32 %v2288, %v2292
    %s2295 = sld [smem:[#allocation9 + $0x113]]
    %v2296 = vstv %s2295
    %v2297 = vmul.f32 %v2296, %v563
    %v2298 = vmul.f32 %v2296, %v565
    %v2299 = vadd.f32 %v2293, %v2297
    %v2300 = vadd.f32 %v2294, %v2298
    %s2301 = sld [smem:[#allocation9 + $0x114]]
    %v2302 = vstv %s2301
    %v2303 = vmul.f32 %v2302, %v572
    %v2304 = vmul.f32 %v2302, %v574
    %v2305 = vadd.f32 %v2299, %v2303
    %v2306 = vadd.f32 %v2300, %v2304
    %s2307 = sld [smem:[#allocation9 + $0x115]]
    %v2308 = vstv %s2307
    %v2309 = vmul.f32 %v2308, %v570
    %v2310 = vmul.f32 %v2308, %v569
    %v2311 = vadd.f32 %v2305, %v2309
    %v2312 = vadd.f32 %v2306, %v2310
    %s2313 = sld [smem:[#allocation9 + $0x116]]
    %v2314 = vstv %s2313
    %v2315 = vmul.f32 %v2314, %v576
    %v2316 = vmul.f32 %v2314, %v578
    %v2317 = vadd.f32 %v2311, %v2315
    %v2318 = vadd.f32 %v2312, %v2316
    %s2319 = sld [smem:[#allocation9 + $0x117]]
    %v2320 = vstv %s2319
    %v2321 = vmul.f32 %v2320, %v585
    %v2322 = vmul.f32 %v2320, %v587
    %v2323 = vadd.f32 %v2317, %v2321
    %v2324 = vadd.f32 %v2318, %v2322
    %s2325 = sld [smem:[#allocation9 + $0x118]]
    %v2326 = vstv %s2325
    %v2327 = vmul.f32 %v2326, %v583
    %v2328 = vmul.f32 %v2326, %v582
    %v2329 = vadd.f32 %v2323, %v2327
    %v2330 = vadd.f32 %v2324, %v2328
    %s2331 = sld [smem:[#allocation9 + $0x119]]
    %v2332 = vstv %s2331
    %v2333 = vmul.f32 %v2332, %v589
    %v2334 = vmul.f32 %v2332, %v591
    %v2335 = vadd.f32 %v2329, %v2333
    %v2336 = vadd.f32 %v2330, %v2334
    %s2337 = sld [smem:[#allocation9 + $0x11a]]
    %v2338 = vstv %s2337
    %v2339 = vmul.f32 %v2338, %v593
    %v2340 = vmul.f32 %v2338, %v595
    %v2341 = vadd.f32 %v2335, %v2339
    %v2342 = vadd.f32 %v2336, %v2340
    %s2343 = sld [smem:[#allocation9 + $0x11b]]
    %v2344 = vstv %s2343
    %v2345 = vmul.f32 %v2344, %v474
    %v2346 = vmul.f32 %v2344, %v475
    %v2347 = vadd.f32 %v2341, %v2345
    %v2348 = vadd.f32 %v2342, %v2346
    %s2349 = sld [smem:[#allocation9 + $0x11c]]
    %v2350 = vstv %s2349
    %v2351 = vmul.f32 %v2350, %v597
    %v2352 = vmul.f32 %v2350, %v599
    %v2353 = vadd.f32 %v2347, %v2351
    %v2354 = vadd.f32 %v2348, %v2352
    %s2355 = sld [smem:[#allocation9 + $0x11d]]
    %v2356 = vstv %s2355
    %v2357 = vmul.f32 %v2356, %v606
    %v2358 = vmul.f32 %v2356, %v608
    %v2359 = vadd.f32 %v2353, %v2357
    %v2360 = vadd.f32 %v2354, %v2358
    %s2361 = sld [smem:[#allocation9 + $0x11e]]
    %v2362 = vstv %s2361
    %v2363 = vmul.f32 %v2362, %v604
    %v2364 = vmul.f32 %v2362, %v603
    %v2365 = vadd.f32 %v2359, %v2363
    %v2366 = vadd.f32 %v2360, %v2364
    %s2367 = sld [smem:[#allocation9 + $0x11f]]
    %v2368 = vstv %s2367
    %v2369 = vmul.f32 %v2368, %v610
    %v2370 = vmul.f32 %v2368, %v612
    %v2371 = vadd.f32 %v2365, %v2369
    %v2372 = vadd.f32 %v2366, %v2370
    %s2373 = sld [smem:[#allocation10 + $0x7]]
    %v2374 = vstv %s2373
    %v2375 = vadd.f32 %v2371, %v2374
    %v2376 = vadd.f32 %v2372, %v2374
    %s2377 = scalar_lea.vmem [#allocation12], 112
    %2378 = vst [vmem:[%s2377] sm:$0xff] %v2375
    %2379 = vst [vmem:[%s2377 + $0x8] sm:$0xff] %v2376
    // Predicated region
    $region42: #{tpu_custom_call.1} parent=1 // pred_check
      _
    $region43: #{tpu_custom_call.1} parent=1 // pred_check_branch
      %2381 = sbr.rel (0) target = $region45
    $region44: #{tpu_custom_call.1} parent=1 // pred_region
      %s2383 = ssub.s32 2048, 2048
      %2384 = vsyncadd [#allocation4], %s2383
      %s2385 = sshll.u32 [#allocation12], 4
      %s2386 = int_to_ptr.vmem [resolvable:$true] %s2385
      %2391 = dma.vmem_to_hbm [thread:$0]  %s2386, 2048, %s5, [#allocation4], 128, 128, 8
    $region45: #{tpu_custom_call.1} parent=1 // pred_fallthru
      _
    // Predicated region
    $region46: #{tpu_custom_call.1} parent=1 // pred_check
      _
    $region47: #{tpu_custom_call.1} parent=1 // pred_check_branch
      %2393 = sbr.rel (0) target = $region49
    $region48: #{tpu_custom_call.1} parent=1 // pred_region
      %2394 = dma.done [#allocation4], 2048
    $region49: #{tpu_custom_call.1} parent=1 // pred_fallthru
      _
    %2395 = vsyncpa [#allocation3], 1
    %2396 = vsyncpa [#allocation4], 1
    %2397 = vsyncpa [#allocation5], 1
    %2398 = vsyncpa [#allocation8], 1
    %2399 = vsyncpa [#allocation11], 1

</llo_original>
